<compile_context>
chip_gen: v5e
topology: v5e:2x2
jax: 0.10.0
libtpu: 0.0.40
codegen_flags: <defaults>
</compile_context>

<pallas_src>
import functools

import jax
import jax.numpy as jnp
from jax.experimental import pallas as pl
from jax.experimental.pallas import tpu as pltpu

_SQRT_HALF = 0.7071067811865476


def _erf(x):
    # Abramowitz & Stegun 7.1.26 polynomial (max abs err ~1.5e-7); only uses
    # ops guaranteed to lower on Mosaic (exp / mul / add / where / abs).
    p = 0.3275911
    a1, a2, a3, a4, a5 = (0.254829592, -0.284496736, 1.421413741,
                          -1.453152027, 1.061405429)
    ax = jnp.abs(x)
    t = 1.0 / (1.0 + p * ax)
    poly = ((((a5 * t + a4) * t + a3) * t + a2) * t + a1) * t
    y = 1.0 - poly * jnp.exp(-ax * ax)
    return jnp.where(x < 0, -y, y)


def _gelu_exact(x):
    # torch.nn.GELU() default (erf-based, approximate='none')
    return 0.5 * x * (1.0 + _erf(x * _SQRT_HALF))


# --------- kernel 1 (small, row-tiled): h = LayerNorm(GELU(z @ W_in + b_in))
def _prep_kernel(z_ref, w_in_ref, b_in_ref, gamma_ref, beta_ref, h_ref):
    z = z_ref[0]                                                  # (TP, d_atom)
    h = jnp.dot(z, w_in_ref[...], preferred_element_type=jnp.float32)
    h = h + b_in_ref[...]                                         # (TP, 2H)
    h = _gelu_exact(h)
    mu = jnp.mean(h, axis=-1, keepdims=True)
    var = jnp.mean(jnp.square(h - mu), axis=-1, keepdims=True)
    h = (h - mu) * jax.lax.rsqrt(var + 1e-5)
    h_ref[0] = h * gamma_ref[...] + beta_ref[...]


# --------- kernel 2 (hot): lane-dense pair projection, one MXU matmul / tile
def _pair_kernel(a_ref, v_ref, o_ref):
    # a_ref: (1, TI, H+1)    = [a | 1]
    # v_ref: (1, H+1, TJ*O)  = [V ; b_out row]   (bias folded into the matmul)
    # o_ref: (1, TI, TJ*O)   lane-dense output tile
    out = jnp.dot(a_ref[0], v_ref[0], preferred_element_type=jnp.float32)
    o_ref[0] = out.astype(o_ref.dtype)


@functools.partial(jax.jit, static_argnames=("d_hid", "d_output", "out_dtype"))
def atom_pair_projection(z, params, *, d_hid, d_output, out_dtype=jnp.float32):
    bsz, n, d_atom = z.shape
    hd, od = d_hid, d_output
    h2 = 2 * hd
    hp = hd + 1                      # K of the pair matmul (bias folded in)

    # ---- pad N to a multiple of 128 so the pair plane tiles cleanly --------
    n_pad = max(128, ((n + 127) // 128) * 128)
    if n_pad != n:
        z = jnp.pad(z, ((0, 0), (0, n_pad - n), (0, 0)))

    # ---- Pallas kernel 1: per-row linear_in -> GELU -> LayerNorm ------------
    tp = 128
    hmat = pl.pallas_call(
        _prep_kernel,
        out_shape=jax.ShapeDtypeStruct((bsz, n_pad, h2), jnp.float32),
        grid_spec=pltpu.PrefetchScalarGridSpec(
            num_scalar_prefetch=0,
            grid=(bsz, n_pad // tp),
            in_specs=[
                pl.BlockSpec((1, tp, d_atom), lambda b, r: (b, r, 0)),
                pl.BlockSpec((d_atom, h2), lambda b, r: (0, 0)),
                pl.BlockSpec((1, h2), lambda b, r: (0, 0)),
                pl.BlockSpec((1, h2), lambda b, r: (0, 0)),
                pl.BlockSpec((1, h2), lambda b, r: (0, 0)),
            ],
            out_specs=pl.BlockSpec((1, tp, h2), lambda b, r: (b, r, 0)),
        ),
        compiler_params=pltpu.CompilerParams(
            dimension_semantics=("parallel", "parallel")),
    )(z, params["w_in"], params["b_in"].reshape(1, h2),
      params["gamma"].reshape(1, h2), params["beta"].reshape(1, h2))

    a_part = hmat[:, :, :hd]                                      # (B, Np, H)
    b_part = hmat[:, :, hd:]                                      # (B, Np, H)

    # Bias folded into the matmul: ones column on `a`, b_out row on V.
    a_aug = jnp.concatenate(
        [a_part, jnp.ones((bsz, n_pad, 1), jnp.float32)], axis=-1)  # (B,Np,H+1)

    # Layout plumbing (tiny, O(N*H*H*O) vs the O(N^2*H*O) kernel):
    #   V[b, c, j*O + o] = sum_e b_[b, j, e] * W_out[c*H + e, o]
    # Building this lane-dense factor wrapper-side removes the old
    # tj-replicated w_exp / selection matrix / VPU accumulate loop entirely.
    w3 = params["w_out"].reshape(hd, hd, od)                      # [c, e, o]
    v_all = jnp.einsum('bje,ceo->bcjo', b_part, w3)               # (B,H,Np,O)
    v_all = v_all.reshape(bsz, hd, n_pad * od).astype(jnp.float32)
    bias_row = jnp.broadcast_to(jnp.tile(params["b_out"], n_pad),
                                (bsz, 1, n_pad * od)).astype(jnp.float32)
    v_aug = jnp.concatenate([v_all, bias_row], axis=1)            # (B,H+1,Np*O)

    # ---- tile sizes over the N x N pair plane -------------------------------
    tj = 128
    ti = 256 if (n_pad % 256 == 0
                 and 256 * tj * od * 4 * 2 <= 16 * 2 ** 20) else 128

    out_bytes = ti * tj * od * jnp.dtype(out_dtype).itemsize
    v_bytes = hp * tj * od * 4
    a_bytes = ti * hp * 4
    vmem_limit = int(min(64 * 2 ** 20,
                         max(32 * 2 ** 20,
                             2 * (out_bytes + v_bytes + a_bytes) + 8 * 2 ** 20)))

    # ---- Pallas kernel 2: (b, j, i) grid, one matmul + lane-dense store -----
    out = pl.pallas_call(
        _pair_kernel,
        out_shape=jax.ShapeDtypeStruct((bsz, n_pad, n_pad * od), out_dtype),
        grid_spec=pltpu.PrefetchScalarGridSpec(
            num_scalar_prefetch=0,
            grid=(bsz, n_pad // tj, n_pad // ti),    # i innermost: V reused
            in_specs=[
                pl.BlockSpec((1, ti, hp), lambda b, j, i: (b, i, 0)),
                pl.BlockSpec((1, hp, tj * od), lambda b, j, i: (b, 0, j)),
            ],
            out_specs=pl.BlockSpec((1, ti, tj * od),
                                   lambda b, j, i: (b, i, j)),
        ),
        compiler_params=pltpu.CompilerParams(
            dimension_semantics=("parallel", "parallel", "parallel"),
            vmem_limit_bytes=vmem_limit),
    )(a_aug, v_aug)

    # Free (row-major compatible) reshape, then trim the padding.
    out = out.reshape(bsz, n_pad, n_pad, od)[:, :n, :n, :]
    return out


def reference(z, params, *, d_hid):
    # Pure-JAX mirror of the PyTorch forward (with linear_out := linear_out2).
    h = z @ params["w_in"] + params["b_in"]
    h = _gelu_exact(h)
    mu = jnp.mean(h, -1, keepdims=True)
    var = jnp.mean(jnp.square(h - mu), -1, keepdims=True)
    h = (h - mu) / jnp.sqrt(var + 1e-5) * params["gamma"] + params["beta"]
    a, b = h[..., :d_hid], h[..., d_hid:]
    x = jnp.einsum('...bc,...de->...bdce', a, b)
    x = x.reshape(x.shape[:-2] + (-1,))
    return x @ params["w_out"] + params["b_out"]


if __name__ == "__main__":
    B, N, D_ATOM, D_HID, D_OUT = 2, 8, 16, 8, 32  # d_atom=16, d_hid=8, d_output=32

    key = jax.random.PRNGKey(0)
    ks = jax.random.split(key, 7)
    z = jax.random.normal(ks[0], (B, N, D_ATOM), jnp.float32)

    params = dict(
        w_in=0.1 * jax.random.normal(ks[1], (D_ATOM, 2 * D_HID), jnp.float32),
        b_in=0.01 * jax.random.normal(ks[2], (2 * D_HID,), jnp.float32),
        gamma=1.0 + 0.05 * jax.random.normal(ks[3], (2 * D_HID,), jnp.float32),
        beta=0.01 * jax.random.normal(ks[4], (2 * D_HID,), jnp.float32),
        # linear_out2: (d_hid**2 -> d_output), stored as (in, out)
        w_out=0.1 * jax.random.normal(ks[5], (D_HID * D_HID, D_OUT), jnp.float32),
        b_out=0.01 * jax.random.normal(ks[6], (D_OUT,), jnp.float32),
    )

    out = atom_pair_projection(z, params, d_hid=D_HID, d_output=D_OUT)
    out = jax.block_until_ready(out)

    ref = reference(z, params, d_hid=D_HID)
    assert out.shape == (B, N, N, D_OUT), out.shape
    assert jnp.allclose(out, ref, atol=2e-3, rtol=2e-3), \
        float(jnp.max(jnp.abs(out - ref)))

    print("KERNEL_OK")
</pallas_src>

<mosaic_0001>
module attributes {stable_mosaic.version = 11 : i64} {
  func.func @_prep_kernel(%arg0: i32, %arg1: i32, %arg2: memref<1x128x16xf32, #tpu.memory_space<vmem>>, %arg3: memref<16x16xf32, #tpu.memory_space<vmem>>, %arg4: memref<1x16xf32, #tpu.memory_space<vmem>>, %arg5: memref<1x16xf32, #tpu.memory_space<vmem>>, %arg6: memref<1x16xf32, #tpu.memory_space<vmem>>, %arg7: memref<1x128x16xf32, #tpu.memory_space<vmem>>) attributes {dimension_semantics = [#tpu.dimension_semantics<parallel>, #tpu.dimension_semantics<parallel>], iteration_bounds = array<i64: 2, 1>, scalar_prefetch = 0 : i64, scratch_operands = 0 : i64, tpu.core_type = #tpu.core_type<tc>, window_params = [{transform_indices = @transform_0, window_bounds = array<i64: 1, 128, 16>}, {pipeline_mode = #tpu.pipeline_mode<synchronous>, transform_indices = @transform_1, window_bounds = array<i64: 16, 16>}, {pipeline_mode = #tpu.pipeline_mode<synchronous>, transform_indices = @transform_2, window_bounds = array<i64: 1, 16>}, {pipeline_mode = #tpu.pipeline_mode<synchronous>, transform_indices = @transform_3, window_bounds = array<i64: 1, 16>}, {pipeline_mode = #tpu.pipeline_mode<synchronous>, transform_indices = @transform_4, window_bounds = array<i64: 1, 16>}, {transform_indices = @transform_5, window_bounds = array<i64: 1, 128, 16>}]} {
    %c0 = arith.constant 0 : index
    %c0_0 = arith.constant 0 : index
    %c0_1 = arith.constant 0 : index
    %0 = vector.load %arg2[%c0, %c0_0, %c0_1] : memref<1x128x16xf32, #tpu.memory_space<vmem>>, vector<1x128x16xf32>
    %1 = vector.shape_cast %0 : vector<1x128x16xf32> to vector<128x16xf32>
    %c0_2 = arith.constant 0 : index
    %c0_3 = arith.constant 0 : index
    %2 = vector.load %arg3[%c0_2, %c0_3] : memref<16x16xf32, #tpu.memory_space<vmem>>, vector<16x16xf32>
    %cst = arith.constant dense<0.000000e+00> : vector<128x16xf32>
    %3 = tpu.matmul %1, %2, %cst {dimension_numbers = #tpu.dot_dimension_numbers<[1], [0], [0], [1], [0, 0, 1, 1], [], []>} : vector<128x16xf32>, vector<16x16xf32>, vector<128x16xf32> -> vector<128x16xf32>
    %c0_4 = arith.constant 0 : index
    %c0_5 = arith.constant 0 : index
    %4 = vector.load %arg4[%c0_4, %c0_5] : memref<1x16xf32, #tpu.memory_space<vmem>>, vector<1x16xf32>
    %5 = vector.broadcast %4 : vector<1x16xf32> to vector<128x16xf32>
    %6 = arith.addf %3, %5 : vector<128x16xf32>
    %cst_6 = arith.constant 5.000000e-01 : f32
    %7 = vector.broadcast %cst_6 : f32 to vector<128x16xf32>
    %8 = arith.mulf %7, %6 : vector<128x16xf32>
    %cst_7 = arith.constant 0.707106769 : f32
    %9 = vector.broadcast %cst_7 : f32 to vector<128x16xf32>
    %10 = arith.mulf %6, %9 : vector<128x16xf32>
    %11 = math.absf %10 : vector<128x16xf32>
    %cst_8 = arith.constant 0.327591091 : f32
    %12 = vector.broadcast %cst_8 : f32 to vector<128x16xf32>
    %13 = arith.mulf %12, %11 : vector<128x16xf32>
    %cst_9 = arith.constant 1.000000e+00 : f32
    %14 = vector.broadcast %cst_9 : f32 to vector<128x16xf32>
    %15 = arith.addf %14, %13 : vector<128x16xf32>
    %cst_10 = arith.constant 1.000000e+00 : f32
    %16 = vector.broadcast %cst_10 : f32 to vector<128x16xf32>
    %17 = arith.divf %16, %15 : vector<128x16xf32>
    %cst_11 = arith.constant 1.06140542 : f32
    %18 = vector.broadcast %cst_11 : f32 to vector<128x16xf32>
    %19 = arith.mulf %18, %17 : vector<128x16xf32>
    %cst_12 = arith.constant -1.45315206 : f32
    %20 = vector.broadcast %cst_12 : f32 to vector<128x16xf32>
    %21 = arith.addf %19, %20 : vector<128x16xf32>
    %22 = arith.mulf %21, %17 : vector<128x16xf32>
    %cst_13 = arith.constant 1.42141378 : f32
    %23 = vector.broadcast %cst_13 : f32 to vector<128x16xf32>
    %24 = arith.addf %22, %23 : vector<128x16xf32>
    %25 = arith.mulf %24, %17 : vector<128x16xf32>
    %cst_14 = arith.constant -0.284496725 : f32
    %26 = vector.broadcast %cst_14 : f32 to vector<128x16xf32>
    %27 = arith.addf %25, %26 : vector<128x16xf32>
    %28 = arith.mulf %27, %17 : vector<128x16xf32>
    %cst_15 = arith.constant 0.254829586 : f32
    %29 = vector.broadcast %cst_15 : f32 to vector<128x16xf32>
    %30 = arith.addf %28, %29 : vector<128x16xf32>
    %31 = arith.mulf %30, %17 : vector<128x16xf32>
    %cst_16 = arith.constant 0.000000e+00 : f32
    %32 = vector.broadcast %cst_16 : f32 to vector<128x16xf32>
    %33 = arith.subf %32, %11 : vector<128x16xf32>
    %34 = arith.mulf %33, %11 : vector<128x16xf32>
    %35 = math.exp %34 : vector<128x16xf32>
    %36 = arith.mulf %31, %35 : vector<128x16xf32>
    %cst_17 = arith.constant 1.000000e+00 : f32
    %37 = vector.broadcast %cst_17 : f32 to vector<128x16xf32>
    %38 = arith.subf %37, %36 : vector<128x16xf32>
    %cst_18 = arith.constant 0.000000e+00 : f32
    %39 = vector.broadcast %cst_18 : f32 to vector<128x16xf32>
    %40 = arith.cmpf olt, %10, %39 : vector<128x16xf32>
    %cst_19 = arith.constant 0.000000e+00 : f32
    %41 = vector.broadcast %cst_19 : f32 to vector<128x16xf32>
    %42 = arith.subf %41, %38 : vector<128x16xf32>
    %43 = arith.select %40, %42, %38 : vector<128x16xi1>, vector<128x16xf32>
    %cst_20 = arith.constant 1.000000e+00 : f32
    %44 = vector.broadcast %cst_20 : f32 to vector<128x16xf32>
    %45 = arith.addf %44, %43 : vector<128x16xf32>
    %46 = arith.mulf %8, %45 : vector<128x16xf32>
    %cst_21 = arith.constant dense<0.000000e+00> : vector<128xf32>
    %47 = vector.multi_reduction <add>, %46, %cst_21 [1] : vector<128x16xf32> to vector<128xf32>
    %48 = vector.shape_cast %47 : vector<128xf32> to vector<128x1xf32>
    %cst_22 = arith.constant 1.600000e+01 : f32
    %49 = vector.broadcast %cst_22 : f32 to vector<128x1xf32>
    %50 = arith.divf %48, %49 : vector<128x1xf32>
    %51 = vector.broadcast %50 : vector<128x1xf32> to vector<128x16xf32>
    %52 = arith.subf %46, %51 : vector<128x16xf32>
    %53 = arith.mulf %52, %52 : vector<128x16xf32>
    %cst_23 = arith.constant dense<0.000000e+00> : vector<128xf32>
    %54 = vector.multi_reduction <add>, %53, %cst_23 [1] : vector<128x16xf32> to vector<128xf32>
    %55 = vector.shape_cast %54 : vector<128xf32> to vector<128x1xf32>
    %cst_24 = arith.constant 1.600000e+01 : f32
    %56 = vector.broadcast %cst_24 : f32 to vector<128x1xf32>
    %57 = arith.divf %55, %56 : vector<128x1xf32>
    %58 = vector.broadcast %50 : vector<128x1xf32> to vector<128x16xf32>
    %59 = arith.subf %46, %58 : vector<128x16xf32>
    %cst_25 = arith.constant 9.99999974E-6 : f32
    %60 = vector.broadcast %cst_25 : f32 to vector<128x1xf32>
    %61 = arith.addf %57, %60 : vector<128x1xf32>
    %62 = math.rsqrt %61 : vector<128x1xf32>
    %63 = vector.broadcast %62 : vector<128x1xf32> to vector<128x16xf32>
    %64 = arith.mulf %59, %63 : vector<128x16xf32>
    %c0_26 = arith.constant 0 : index
    %c0_27 = arith.constant 0 : index
    %65 = vector.load %arg5[%c0_26, %c0_27] : memref<1x16xf32, #tpu.memory_space<vmem>>, vector<1x16xf32>
    %66 = vector.broadcast %65 : vector<1x16xf32> to vector<128x16xf32>
    %67 = arith.mulf %64, %66 : vector<128x16xf32>
    %c0_28 = arith.constant 0 : index
    %c0_29 = arith.constant 0 : index
    %68 = vector.load %arg6[%c0_28, %c0_29] : memref<1x16xf32, #tpu.memory_space<vmem>>, vector<1x16xf32>
    %69 = vector.broadcast %68 : vector<1x16xf32> to vector<128x16xf32>
    %70 = arith.addf %67, %69 : vector<128x16xf32>
    %c0_30 = arith.constant 0 : index
    %c0_31 = arith.constant 0 : index
    %c0_32 = arith.constant 0 : index
    %71 = vector.load %arg7[%c0_30, %c0_31, %c0_32] : memref<1x128x16xf32, #tpu.memory_space<vmem>>, vector<1x128x16xf32>
    %72 = vector.shape_cast %71 : vector<1x128x16xf32> to vector<128x16xf32>
    %73 = vector.shape_cast %70 : vector<128x16xf32> to vector<1x128x16xf32>
    tpu.vector_store %arg7[%c0_30, %c0_31, %c0_32], %73 {strides = array<i32>} : memref<1x128x16xf32, #tpu.memory_space<vmem>>, vector<1x128x16xf32>,
    return
  }
  func.func @transform_0(%arg0: i32, %arg1: i32) -> (i32, i32, i32) {
    %c0_i32 = arith.constant 0 : i32
    %c0_i32_0 = arith.constant 0 : i32
    return %arg0, %arg1, %c0_i32 : i32, i32, i32
  }
  func.func @transform_1(%arg0: i32, %arg1: i32) -> (i32, i32) {
    %c0_i32 = arith.constant 0 : i32
    %c0_i32_0 = arith.constant 0 : i32
    %c0_i32_1 = arith.constant 0 : i32
    return %c0_i32, %c0_i32_0 : i32, i32
  }
  func.func @transform_2(%arg0: i32, %arg1: i32) -> (i32, i32) {
    %c0_i32 = arith.constant 0 : i32
    %c0_i32_0 = arith.constant 0 : i32
    %c0_i32_1 = arith.constant 0 : i32
    return %c0_i32, %c0_i32_0 : i32, i32
  }
  func.func @transform_3(%arg0: i32, %arg1: i32) -> (i32, i32) {
    %c0_i32 = arith.constant 0 : i32
    %c0_i32_0 = arith.constant 0 : i32
    %c0_i32_1 = arith.constant 0 : i32
    return %c0_i32, %c0_i32_0 : i32, i32
  }
  func.func @transform_4(%arg0: i32, %arg1: i32) -> (i32, i32) {
    %c0_i32 = arith.constant 0 : i32
    %c0_i32_0 = arith.constant 0 : i32
    %c0_i32_1 = arith.constant 0 : i32
    return %c0_i32, %c0_i32_0 : i32, i32
  }
  func.func @transform_5(%arg0: i32, %arg1: i32) -> (i32, i32, i32) {
    %c0_i32 = arith.constant 0 : i32
    %c0_i32_0 = arith.constant 0 : i32
    return %arg0, %arg1, %c0_i32 : i32, i32, i32
  }
}

module attributes {stable_mosaic.version = 11 : i64} {
  func.func @_pair_kernel(%arg0: i32, %arg1: i32, %arg2: i32, %arg3: memref<1x128x9xf32, #tpu.memory_space<vmem>>, %arg4: memref<1x9x4096xf32, #tpu.memory_space<vmem>>, %arg5: memref<1x128x4096xf32, #tpu.memory_space<vmem>>) attributes {dimension_semantics = [#tpu.dimension_semantics<parallel>, #tpu.dimension_semantics<parallel>, #tpu.dimension_semantics<parallel>], iteration_bounds = array<i64: 2, 1, 1>, scalar_prefetch = 0 : i64, scratch_operands = 0 : i64, tpu.core_type = #tpu.core_type<tc>, window_params = [{transform_indices = @transform_0, window_bounds = array<i64: 1, 128, 9>}, {transform_indices = @transform_1, window_bounds = array<i64: 1, 9, 4096>}, {transform_indices = @transform_2, window_bounds = array<i64: 1, 128, 4096>}]} {
    %c0 = arith.constant 0 : index
    %c0_0 = arith.constant 0 : index
    %c0_1 = arith.constant 0 : index
    %0 = vector.load %arg3[%c0, %c0_0, %c0_1] : memref<1x128x9xf32, #tpu.memory_space<vmem>>, vector<1x128x9xf32>
    %1 = vector.shape_cast %0 : vector<1x128x9xf32> to vector<128x9xf32>
    %c0_2 = arith.constant 0 : index
    %c0_3 = arith.constant 0 : index
    %c0_4 = arith.constant 0 : index
    %2 = vector.load %arg4[%c0_2, %c0_3, %c0_4] : memref<1x9x4096xf32, #tpu.memory_space<vmem>>, vector<1x9x4096xf32>
    %3 = vector.shape_cast %2 : vector<1x9x4096xf32> to vector<9x4096xf32>
    %cst = arith.constant dense<0.000000e+00> : vector<128x4096xf32>
    %4 = tpu.matmul %1, %3, %cst {dimension_numbers = #tpu.dot_dimension_numbers<[1], [0], [0], [1], [0, 0, 1, 1], [], []>} : vector<128x9xf32>, vector<9x4096xf32>, vector<128x4096xf32> -> vector<128x4096xf32>
    %c0_5 = arith.constant 0 : index
    %c0_6 = arith.constant 0 : index
    %c0_7 = arith.constant 0 : index
    %5 = vector.load %arg5[%c0_5, %c0_6, %c0_7] : memref<1x128x4096xf32, #tpu.memory_space<vmem>>, vector<1x128x4096xf32>
    %6 = vector.shape_cast %5 : vector<1x128x4096xf32> to vector<128x4096xf32>
    %7 = vector.shape_cast %4 : vector<128x4096xf32> to vector<1x128x4096xf32>
    tpu.vector_store %arg5[%c0_5, %c0_6, %c0_7], %7 {strides = array<i32>} : memref<1x128x4096xf32, #tpu.memory_space<vmem>>, vector<1x128x4096xf32>,
    return
  }
  func.func @transform_0(%arg0: i32, %arg1: i32, %arg2: i32) -> (i32, i32, i32) {
    %c0_i32 = arith.constant 0 : i32
    %c0_i32_0 = arith.constant 0 : i32
    return %arg0, %arg2, %c0_i32 : i32, i32, i32
  }
  func.func @transform_1(%arg0: i32, %arg1: i32, %arg2: i32) -> (i32, i32, i32) {
    %c0_i32 = arith.constant 0 : i32
    %c0_i32_0 = arith.constant 0 : i32
    return %arg0, %c0_i32, %arg1 : i32, i32, i32
  }
  func.func @transform_2(%arg0: i32, %arg1: i32, %arg2: i32) -> (i32, i32, i32) {
    %c0_i32 = arith.constant 0 : i32
    return %arg0, %arg2, %arg1 : i32, i32, i32
  }
}

</mosaic_0001>

<llo_original>
// kernel: tile.8
$region0: #{tile.8}
  #allocation2 [shape = 's32[1]{0}', space=sflag, size = 0x4, scoped, tag = 'scoped memory for tile.8']
  %s0 = inlined_call_operand.hbm [shape: f32[32], index: 0, kind: input, shape index: {}]
  %s1 = inlined_call_operand.vmem [shape: f32[128,32], index: 1, kind: output, shape index: {}]
  $region1: #{tile.8} parent=0
    #allocation0 [shape = 'u8[512]{0}', space=vmem, size = 0x400, scoped, tag = 'operand span for operand 0']
    #allocation1 [shape = 's32[1]{0}', space=sflag, size = 0x4, scoped, tag = 'scoped memory for tile.8']
    %2 = vsyncpa [#allocation1], 0
    // Predicated region
    $region2: #{tile.8} parent=1 // pred_check
      _
    $region3: #{tile.8} parent=1 // pred_check_branch
      %4 = sbr.rel (0) target = $region5
    $region4: #{tile.8} parent=1 // pred_region
      %6 = vsyncadd [#allocation1], 0
      %s8 = sshll.u32 %s0, 4
      %s9 = int_to_ptr.hbm [resolvable:$true] %s8
      %s10 = sshll.u32 [#allocation0], 4
      %s11 = int_to_ptr.vmem [resolvable:$true] %s10
      %13 = dma.hbm_to_vmem [thread:$0]  %s9, 16, %s11, [#allocation1]
    $region5: #{tile.8} parent=1 // pred_fallthru
      _
    // Predicated region
    $region6: #{tile.8} parent=1 // pred_check
      _
    $region7: #{tile.8} parent=1 // pred_check_branch
      %15 = sbr.rel (0) target = $region9
    $region8: #{tile.8} parent=1 // pred_region
      %17 = dma.done [#allocation1], 16
    $region9: #{tile.8} parent=1 // pred_fallthru
      _
    %v18 = vld [vmem:[#allocation0] ss:$0 sm:$0xff]
    %19 = vst [vmem:[%s1] sm:$0xff] %v18
    %s20 = scalar_lea.vmem %s1, 8
    %21 = vst [vmem:[%s20] sm:$0xff] %v18
    %s22 = scalar_lea.vmem %s1, 16
    %23 = vst [vmem:[%s22] sm:$0xff] %v18
    %s24 = scalar_lea.vmem %s1, 24
    %25 = vst [vmem:[%s24] sm:$0xff] %v18
    %s26 = scalar_lea.vmem %s1, 32
    %27 = vst [vmem:[%s26] sm:$0xff] %v18
    %s28 = scalar_lea.vmem %s1, 40
    %29 = vst [vmem:[%s28] sm:$0xff] %v18
    %s30 = scalar_lea.vmem %s1, 48
    %31 = vst [vmem:[%s30] sm:$0xff] %v18
    %s32 = scalar_lea.vmem %s1, 56
    %33 = vst [vmem:[%s32] sm:$0xff] %v18
    %s34 = scalar_lea.vmem %s1, 64
    %35 = vst [vmem:[%s34] sm:$0xff] %v18
    %s36 = scalar_lea.vmem %s1, 72
    %37 = vst [vmem:[%s36] sm:$0xff] %v18
    %s38 = scalar_lea.vmem %s1, 80
    %39 = vst [vmem:[%s38] sm:$0xff] %v18
    %s40 = scalar_lea.vmem %s1, 88
    %41 = vst [vmem:[%s40] sm:$0xff] %v18
    %s42 = scalar_lea.vmem %s1, 96
    %43 = vst [vmem:[%s42] sm:$0xff] %v18
    %s44 = scalar_lea.vmem %s1, 104
    %45 = vst [vmem:[%s44] sm:$0xff] %v18
    %s46 = scalar_lea.vmem %s1, 112
    %47 = vst [vmem:[%s46] sm:$0xff] %v18
    %s48 = scalar_lea.vmem %s1, 120
    %49 = vst [vmem:[%s48] sm:$0xff] %v18
    %50 = vsyncpa [#allocation1], 1

// kernel: tile.9
$region0: #{tile.9}
  %s0 = inlined_call_operand.vmem [shape: f32[128,32], index: 0, kind: input, shape index: {}]
  %s1 = inlined_call_operand.vmem [shape: f32[4096], index: 1, kind: output, shape index: {}]
  %v2 = vld [vmem:[%s0] ss:$4 sm:$0xff]
  %vm3 = vcmask 261120
  %4 = vst.msk [vmem:[%s1] sm:$0xff] %vm3, %v2
  %s5 = scalar_lea.vmem %s0, 32
  %v6 = vld [vmem:[%s5] ss:$4 sm:$0xff]
  %vm7 = vcmask 261120
  %s8 = scalar_lea.vmem %s1, 8
  %9 = vst.msk [vmem:[%s8] sm:$0xff] %vm7, %v6
  %s10 = scalar_lea.vmem %s0, 64
  %v11 = vld [vmem:[%s10] ss:$4 sm:$0xff]
  %vm12 = vcmask 261120
  %s13 = scalar_lea.vmem %s1, 16
  %14 = vst.msk [vmem:[%s13] sm:$0xff] %vm12, %v11
  %s15 = scalar_lea.vmem %s0, 96
  %v16 = vld [vmem:[%s15] ss:$4 sm:$0xff]
  %vm17 = vcmask 261120
  %s18 = scalar_lea.vmem %s1, 24
  %19 = vst.msk [vmem:[%s18] sm:$0xff] %vm17, %v16
  %s20 = scalar_lea.vmem %s0, 3
  %v21 = vld [vmem:[%s20] ss:$4 sm:$0xff]
  %22 = vrot.lane.b32.xlu0 %v21, 96
  %v23 = vpop.permute.xlu0 %22
  %vm24 = vcmask 1048320
  %25 = vst.msk [vmem:[%s1] sm:$0xff] %vm24, %v23
  %s26 = scalar_lea.vmem %s0, 35
  %v27 = vld [vmem:[%s26] ss:$4 sm:$0xff]
  %28 = vrot.lane.b32.xlu0 %v27, 96
  %v29 = vpop.permute.xlu0 %28
  %vm30 = vcmask 1048320
  %s31 = scalar_lea.vmem %s1, 8
  %32 = vst.msk [vmem:[%s31] sm:$0xff] %vm30, %v29
  %s33 = scalar_lea.vmem %s0, 67
  %v34 = vld [vmem:[%s33] ss:$4 sm:$0xff]
  %35 = vrot.lane.b32.xlu0 %v34, 96
  %v36 = vpop.permute.xlu0 %35
  %vm37 = vcmask 1048320
  %s38 = scalar_lea.vmem %s1, 16
  %39 = vst.msk [vmem:[%s38] sm:$0xff] %vm37, %v36
  %s40 = scalar_lea.vmem %s0, 99
  %v41 = vld [vmem:[%s40] ss:$4 sm:$0xff]
  %42 = vrot.lane.b32.xlu0 %v41, 96
  %v43 = vpop.permute.xlu0 %42
  %vm44 = vcmask 1048320
  %s45 = scalar_lea.vmem %s1, 24
  %46 = vst.msk [vmem:[%s45] sm:$0xff] %vm44, %v43
  %s47 = scalar_lea.vmem %s0, 2
  %v48 = vld [vmem:[%s47] ss:$4 sm:$0xff]
  %49 = vrot.lane.b32.xlu0 %v48, 64
  %v50 = vpop.permute.xlu0 %49
  %vm51 = vcmask 785920
  %52 = vst.msk [vmem:[%s1] sm:$0xff] %vm51, %v50
  %s53 = scalar_lea.vmem %s0, 34
  %v54 = vld [vmem:[%s53] ss:$4 sm:$0xff]
  %55 = vrot.lane.b32.xlu0 %v54, 64
  %v56 = vpop.permute.xlu0 %55
  %vm57 = vcmask 785920
  %s58 = scalar_lea.vmem %s1, 8
  %59 = vst.msk [vmem:[%s58] sm:$0xff] %vm57, %v56
  %s60 = scalar_lea.vmem %s0, 66
  %v61 = vld [vmem:[%s60] ss:$4 sm:$0xff]
  %62 = vrot.lane.b32.xlu0 %v61, 64
  %v63 = vpop.permute.xlu0 %62
  %vm64 = vcmask 785920
  %s65 = scalar_lea.vmem %s1, 16
  %66 = vst.msk [vmem:[%s65] sm:$0xff] %vm64, %v63
  %s67 = scalar_lea.vmem %s0, 98
  %v68 = vld [vmem:[%s67] ss:$4 sm:$0xff]
  %69 = vrot.lane.b32.xlu0 %v68, 64
  %v70 = vpop.permute.xlu0 %69
  %vm71 = vcmask 785920
  %s72 = scalar_lea.vmem %s1, 24
  %73 = vst.msk [vmem:[%s72] sm:$0xff] %vm71, %v70
  %s74 = scalar_lea.vmem %s0, 1
  %v75 = vld [vmem:[%s74] ss:$4 sm:$0xff]
  %76 = vrot.lane.b32.xlu0 %v75, 32
  %v77 = vpop.permute.xlu0 %76
  %vm78 = vcmask 523520
  %79 = vst.msk [vmem:[%s1] sm:$0xff] %vm78, %v77
  %s80 = scalar_lea.vmem %s0, 33
  %v81 = vld [vmem:[%s80] ss:$4 sm:$0xff]
  %82 = vrot.lane.b32.xlu0 %v81, 32
  %v83 = vpop.permute.xlu0 %82
  %vm84 = vcmask 523520
  %s85 = scalar_lea.vmem %s1, 8
  %86 = vst.msk [vmem:[%s85] sm:$0xff] %vm84, %v83
  %s87 = scalar_lea.vmem %s0, 65
  %v88 = vld [vmem:[%s87] ss:$4 sm:$0xff]
  %89 = vrot.lane.b32.xlu0 %v88, 32
  %v90 = vpop.permute.xlu0 %89
  %vm91 = vcmask 523520
  %s92 = scalar_lea.vmem %s1, 16
  %93 = vst.msk [vmem:[%s92] sm:$0xff] %vm91, %v90
  %s94 = scalar_lea.vmem %s0, 97
  %v95 = vld [vmem:[%s94] ss:$4 sm:$0xff]
  %96 = vrot.lane.b32.xlu0 %v95, 32
  %v97 = vpop.permute.xlu0 %96
  %vm98 = vcmask 523520
  %s99 = scalar_lea.vmem %s1, 24
  %100 = vst.msk [vmem:[%s99] sm:$0xff] %vm98, %v97

// kernel: atom_pair_projection.2
$region0: #{atom_pair_projection.2}
  #allocation0 [shape = 'u32[]', space=smem, size = 0x4, offset = 0x4, fixed_abs, tag = 'smem constant byte address 0x4 - core index']
  #allocation1 [shape = 'u32[72,128]{1,0:T(1,128)}', space=vmem, size = 0x9000, scoped, tag = 'internal scratch']
  %s0 = inlined_call_operand.vmem [shape: f32[2,128,16], index: 0, kind: input, shape index: {}]
  %s1 = inlined_call_operand.hbm [shape: f32[16,16], index: 1, kind: input, shape index: {}]
  %s2 = inlined_call_operand.hbm [shape: f32[1,16], index: 2, kind: input, shape index: {}]
  %s3 = inlined_call_operand.hbm [shape: f32[1,16], index: 3, kind: input, shape index: {}]
  %s4 = inlined_call_operand.hbm [shape: f32[1,16], index: 4, kind: input, shape index: {}]
  %s5 = inlined_call_operand.vmem [shape: f32[2,128,16], index: 5, kind: output, shape index: {}]
  %s6 = sld [smem:[#allocation0]]
  $region69: #{atom_pair_projection.2} parent=0
    _
  %s8 = ssub.s32 1, %s6
  %s9 = scalar_select 0, %s8, %s6
  $region1: #{atom_pair_projection.2} parent=0
    #allocation2 [shape = 'u8[8192]{0}', space=vmem, size = 0x2000, scoped, tag = 'input window, operand 1, single buffered']
    #allocation3 [shape = 's32[2]{0}', space=sflag, size = 0x8, scoped, tag = 'scoped memory for atom_pair_projection.2']
    #allocation4 [shape = 'u8[512]{0}', space=vmem, size = 0x400, scoped, tag = 'input window, operand 2, single buffered']
    #allocation5 [shape = 's32[1]{0}', space=sflag, size = 0x4, scoped, tag = 'scoped memory for atom_pair_projection.2']
    #allocation6 [shape = 'u8[512]{0}', space=vmem, size = 0x400, scoped, tag = 'input window, operand 3, single buffered']
    #allocation7 [shape = 'u8[512]{0}', space=vmem, size = 0x400, scoped, tag = 'input window, operand 4, single buffered']
    #allocation8 [shape = 's32[1]{0}', space=sflag, size = 0x4, scoped, tag = 'scoped memory for atom_pair_projection.2']
    %10 = vsyncpa [#allocation3], 0
    %11 = vsyncpa [#allocation5], 0
    %12 = vsyncpa [#allocation8], 0
    loop: start=0, step=1, limit=4
    $region2: #{atom_pair_projection.2} parent=1 // loop_pre_header
      _
    $region3: #{atom_pair_projection.2} parent=1 // loop_header
      %s14 = sphi 0, %s18
      %p15 = scmp.ge.s32.totalorder %s14, 4
      %s21 = sphi 0, %s33
      %s22 = sphi 0, %s29
      %s23 = sphi 0, %s21
      %s24 = sphi 0, %s22
      %s25 = sphi 0, %s23
      %s26 = sphi 0, %s24
      %s38 = sphi 0, %s40
      %s41 = sphi 0, %s38
      %s42 = sphi 0, %s41
      %s58 = sphi 0, %s42
      %s62 = sphi 0, %s62
      %s64 = sphi 0, %s62
      %s65 = sphi 0, %s64
      %s79 = sphi 0, %s65
      %s83 = sphi 0, %s83
      %s85 = sphi 0, %s83
      %s86 = sphi 0, %s85
      %s100 = sphi 0, %s86
      %s104 = sphi 0, %s104
      %s106 = sphi 0, %s104
      %s107 = sphi 0, %s106
      %s121 = sphi 0, %s107
      %s125 = sphi 0, %s125
      %s127 = sphi 0, %s125
      %s128 = sphi 0, %s127
      %s142 = sphi 0, %s128
      %s150 = sphi 0, %s152
      %s153 = sphi 0, %s150
      %s154 = sphi 0, %s153
      %s170 = sphi 0, %s154
    $region4: #{atom_pair_projection.2} parent=1 // loop_header_branch
      %17 = sbr.rel (%p15) target = $region8
    $region5: #{atom_pair_projection.2} parent=1 // loop_body
      %s19 = ssub.s32 %s14, 1
      %s20 = ssub.s32 %s14, 2
      %s27 = sadd.s32 1, %s22
      %p28 = scmp.ge.s32.totalorder %s27, 1
      %s29 = scalar_select %p28, 0, %s27
      %s30 = sadd.s32 1, %s21
      %s31 = scalar_select %p28, %s30, %s21
      %p32 = scmp.ge.s32.totalorder %s31, 2
      %s33 = scalar_select %p32, 0, %s31
      %s34 = ssub.s32 %s21, %s33
      %s35 = ssub.s32 %s22, %s29
      %s36 = sor.u32 %s34, %s35
      %p37 = scmp.eq.s32.totalorder %s36, 0
      %s39 = sadd.s32 %s38, 1
      %s40 = scalar_select %p37, %s38, %s39
      %p43 = pneg %p37
      %p44 = scmp.eq.s32.totalorder %s14, 1
      %p45 = por %p43, %p44
      %p46 = scmp.ne.s32.totalorder %s38, %s41
      %p47 = scmp.eq.s32.totalorder %s14, 0
      %p48 = por %p46, %p47
      %p49 = scmp.ne.s32.totalorder %s38, %s41
      %p50 = scmp.eq.s32.totalorder %s19, 1
      %p51 = por %p49, %p50
      %p52 = scmp.ne.s32.totalorder %s41, %s42
      %p53 = scmp.eq.s32.totalorder %s19, 0
      %p54 = por %p52, %p53
      %p55 = scmp.ne.s32.totalorder %s41, %s42
      %p56 = scmp.eq.s32.totalorder %s20, 1
      %p57 = por %p55, %p56
      %p59 = scmp.ne.s32.totalorder %s42, %s58
      %p60 = scmp.eq.s32.totalorder %s20, 0
      %p61 = por %p59, %p60
      %s63 = sadd.s32 %s62, 1
      %p66 = scmp.eq.s32.totalorder %s14, 1
      %p67 = scmp.ne.s32.totalorder %s62, %s64
      %p68 = scmp.eq.s32.totalorder %s14, 0
      %p69 = por %p67, %p68
      %p70 = scmp.ne.s32.totalorder %s62, %s64
      %p71 = scmp.eq.s32.totalorder %s19, 1
      %p72 = por %p70, %p71
      %p73 = scmp.ne.s32.totalorder %s64, %s65
      %p74 = scmp.eq.s32.totalorder %s19, 0
      %p75 = por %p73, %p74
      %p76 = scmp.ne.s32.totalorder %s64, %s65
      %p77 = scmp.eq.s32.totalorder %s20, 1
      %p78 = por %p76, %p77
      %p80 = scmp.ne.s32.totalorder %s65, %s79
      %p81 = scmp.eq.s32.totalorder %s20, 0
      %p82 = por %p80, %p81
      %s84 = sadd.s32 %s83, 1
      %p87 = scmp.eq.s32.totalorder %s14, 1
      %p88 = scmp.ne.s32.totalorder %s83, %s85
      %p89 = scmp.eq.s32.totalorder %s14, 0
      %p90 = por %p88, %p89
      %p91 = scmp.ne.s32.totalorder %s83, %s85
      %p92 = scmp.eq.s32.totalorder %s19, 1
      %p93 = por %p91, %p92
      %p94 = scmp.ne.s32.totalorder %s85, %s86
      %p95 = scmp.eq.s32.totalorder %s19, 0
      %p96 = por %p94, %p95
      %p97 = scmp.ne.s32.totalorder %s85, %s86
      %p98 = scmp.eq.s32.totalorder %s20, 1
      %p99 = por %p97, %p98
      %p101 = scmp.ne.s32.totalorder %s86, %s100
      %p102 = scmp.eq.s32.totalorder %s20, 0
      %p103 = por %p101, %p102
      %s105 = sadd.s32 %s104, 1
      %p108 = scmp.eq.s32.totalorder %s14, 1
      %p109 = scmp.ne.s32.totalorder %s104, %s106
      %p110 = scmp.eq.s32.totalorder %s14, 0
      %p111 = por %p109, %p110
      %p112 = scmp.ne.s32.totalorder %s104, %s106
      %p113 = scmp.eq.s32.totalorder %s19, 1
      %p114 = por %p112, %p113
      %p115 = scmp.ne.s32.totalorder %s106, %s107
      %p116 = scmp.eq.s32.totalorder %s19, 0
      %p117 = por %p115, %p116
      %p118 = scmp.ne.s32.totalorder %s106, %s107
      %p119 = scmp.eq.s32.totalorder %s20, 1
      %p120 = por %p118, %p119
      %p122 = scmp.ne.s32.totalorder %s107, %s121
      %p123 = scmp.eq.s32.totalorder %s20, 0
      %p124 = por %p122, %p123
      %s126 = sadd.s32 %s125, 1
      %p129 = scmp.eq.s32.totalorder %s14, 1
      %p130 = scmp.ne.s32.totalorder %s125, %s127
      %p131 = scmp.eq.s32.totalorder %s14, 0
      %p132 = por %p130, %p131
      %p133 = scmp.ne.s32.totalorder %s125, %s127
      %p134 = scmp.eq.s32.totalorder %s19, 1
      %p135 = por %p133, %p134
      %p136 = scmp.ne.s32.totalorder %s127, %s128
      %p137 = scmp.eq.s32.totalorder %s19, 0
      %p138 = por %p136, %p137
      %p139 = scmp.ne.s32.totalorder %s127, %s128
      %p140 = scmp.eq.s32.totalorder %s20, 1
      %p141 = por %p139, %p140
      %p143 = scmp.ne.s32.totalorder %s128, %s142
      %p144 = scmp.eq.s32.totalorder %s20, 0
      %p145 = por %p143, %p144
      %s146 = ssub.s32 %s21, %s33
      %s147 = ssub.s32 %s22, %s29
      %s148 = sor.u32 %s146, %s147
      %p149 = scmp.eq.s32.totalorder %s148, 0
      %s151 = sadd.s32 %s150, 1
      %s152 = scalar_select %p149, %s150, %s151
      %p155 = pneg %p149
      %p156 = scmp.eq.s32.totalorder %s14, 1
      %p157 = por %p155, %p156
      %p158 = scmp.ne.s32.totalorder %s150, %s153
      %p159 = scmp.eq.s32.totalorder %s14, 0
      %p160 = por %p158, %p159
      %p161 = scmp.ne.s32.totalorder %s150, %s153
      %p162 = scmp.eq.s32.totalorder %s19, 1
      %p163 = por %p161, %p162
      %p164 = scmp.ne.s32.totalorder %s153, %s154
      %p165 = scmp.eq.s32.totalorder %s19, 0
      %p166 = por %p164, %p165
      %p167 = scmp.ne.s32.totalorder %s153, %s154
      %p168 = scmp.eq.s32.totalorder %s20, 1
      %p169 = por %p167, %p168
      %p171 = scmp.ne.s32.totalorder %s154, %s170
      %p172 = scmp.eq.s32.totalorder %s20, 0
      %p173 = por %p171, %p172
      %p174 = scmp.le.s32.totalorder 1, %s14
      %p175 = scmp.lt.s32.totalorder %s14, 3
      %p176 = pnand %p174, %p175
      %p177 = pneg %p176
      // Predicated region
      $region9: #{atom_pair_projection.2} parent=5 // pred_check
        _
      $region10: #{atom_pair_projection.2} parent=5 // pred_check_branch
        %179 = sbr.rel (%p176) target = $region12
      $region11: #{atom_pair_projection.2} parent=5 // pred_region
        %s180 = ssub.s32 %s14, 1
        // Predicated region
        $region13: #{atom_pair_projection.2} parent=11 // pred_check
          %p181 = pneg %p75
        $region14: #{atom_pair_projection.2} parent=11 // pred_check_branch
          %183 = sbr.rel (%p181) target = $region16
        $region15: #{atom_pair_projection.2} parent=11 // pred_region
          %185 = vsyncadd [#allocation3], 0
          %s186 = sshll.u32 %s1, 4
          %s187 = int_to_ptr.hbm [resolvable:$true] %s186
          %s188 = sshll.u32 [#allocation2], 4
          %s189 = int_to_ptr.vmem [resolvable:$true] %s188
          %194 = dma.hbm_to_vmem [thread:$0]  %s187, 256, %s189, [#allocation3], 128, 128, 8
        $region16: #{atom_pair_projection.2} parent=11 // pred_fallthru
          _
        // Predicated region
        $region17: #{atom_pair_projection.2} parent=11 // pred_check
          %p195 = pneg %p96
        $region18: #{atom_pair_projection.2} parent=11 // pred_check_branch
          %197 = sbr.rel (%p195) target = $region20
        $region19: #{atom_pair_projection.2} parent=11 // pred_region
          %199 = vsyncadd [#allocation5], 0
          %s201 = sshll.u32 %s2, 4
          %s202 = int_to_ptr.hbm [resolvable:$true] %s201
          %s203 = sshll.u32 [#allocation4], 4
          %s204 = int_to_ptr.vmem [resolvable:$true] %s203
          %206 = dma.hbm_to_vmem [thread:$0]  %s202, 16, %s204, [#allocation5]
        $region20: #{atom_pair_projection.2} parent=11 // pred_fallthru
          _
        // Predicated region
        $region21: #{atom_pair_projection.2} parent=11 // pred_check
          %p207 = pneg %p117
        $region22: #{atom_pair_projection.2} parent=11 // pred_check_branch
          %209 = sbr.rel (%p207) target = $region24
        $region23: #{atom_pair_projection.2} parent=11 // pred_region
          %211 = vsyncadd [#allocation5], 0
          %s213 = sshll.u32 %s3, 4
          %s214 = int_to_ptr.hbm [resolvable:$true] %s213
          %s215 = sshll.u32 [#allocation6], 4
          %s216 = int_to_ptr.vmem [resolvable:$true] %s215
          %218 = dma.hbm_to_vmem [thread:$0]  %s214, 16, %s216, [#allocation5]
        $region24: #{atom_pair_projection.2} parent=11 // pred_fallthru
          _
        // Predicated region
        $region25: #{atom_pair_projection.2} parent=11 // pred_check
          %p219 = pneg %p138
        $region26: #{atom_pair_projection.2} parent=11 // pred_check_branch
          %221 = sbr.rel (%p219) target = $region28
        $region27: #{atom_pair_projection.2} parent=11 // pred_region
          %223 = vsyncadd [#allocation8], 0
          %s225 = sshll.u32 %s4, 4
          %s226 = int_to_ptr.hbm [resolvable:$true] %s225
          %s227 = sshll.u32 [#allocation7], 4
          %s228 = int_to_ptr.vmem [resolvable:$true] %s227
          %230 = dma.hbm_to_vmem [thread:$0]  %s226, 16, %s228, [#allocation8]
        $region28: #{atom_pair_projection.2} parent=11 // pred_fallthru
          _
      $region12: #{atom_pair_projection.2} parent=5 // pred_fallthru
        _
      %p231 = scmp.lt.s32.totalorder %s14, 2
      // Predicated region
      $region29: #{atom_pair_projection.2} parent=5 // pred_check
        %p232 = pneg %p231
      $region30: #{atom_pair_projection.2} parent=5 // pred_check_branch
        %234 = sbr.rel (%p232) target = $region32
      $region31: #{atom_pair_projection.2} parent=5 // pred_region
        // Predicated region
        $region33: #{atom_pair_projection.2} parent=31 // pred_check
          %p235 = pneg %p48
        $region34: #{atom_pair_projection.2} parent=31 // pred_check_branch
          %237 = sbr.rel (%p235) target = $region36
        $region35: #{atom_pair_projection.2} parent=31 // pred_region
          %s238 = smul.u32 16, %s22
          %p239 = scmp.lt.s32.totalorder %s21, 1
          %s240 = scalar_select %p239, %s21, 1
          %p241 = scmp.lt.s32.totalorder %s238, 15
          %s242 = scalar_select %p241, %s238, 15
          %s243 = smul.addr %s240, 16
          %s244 = sadd.s32 %s242, %s243
          %s245 = smul.addr %s244, 8
          %s246 = scalar_lea.vmem %s0, %s245
          %s247 = smul.u32 16, %s22
        $region36: #{atom_pair_projection.2} parent=31 // pred_fallthru
          _
      $region32: #{atom_pair_projection.2} parent=5 // pred_fallthru
        _
      %p248 = scmp.le.s32.totalorder 1, %s14
      %p249 = scmp.lt.s32.totalorder %s14, 3
      %p250 = pnand %p248, %p249
      %p251 = pneg %p250
      // Predicated region
      $region37: #{atom_pair_projection.2} parent=5 // pred_check
        _
      $region38: #{atom_pair_projection.2} parent=5 // pred_check_branch
        %253 = sbr.rel (%p250) target = $region40
      $region39: #{atom_pair_projection.2} parent=5 // pred_region
        %s254 = ssub.s32 %s14, 1
        // Predicated region
        $region41: #{atom_pair_projection.2} parent=39 // pred_check
          %p255 = pneg %p75
        $region42: #{atom_pair_projection.2} parent=39 // pred_check_branch
          %257 = sbr.rel (%p255) target = $region44
        $region43: #{atom_pair_projection.2} parent=39 // pred_region
          %259 = dma.done [#allocation3], 256
        $region44: #{atom_pair_projection.2} parent=39 // pred_fallthru
          _
        // Predicated region
        $region45: #{atom_pair_projection.2} parent=39 // pred_check
          %p260 = pneg %p96
        $region46: #{atom_pair_projection.2} parent=39 // pred_check_branch
          %262 = sbr.rel (%p260) target = $region48
        $region47: #{atom_pair_projection.2} parent=39 // pred_region
          %264 = dma.done [#allocation5], 16
        $region48: #{atom_pair_projection.2} parent=39 // pred_fallthru
          _
        // Predicated region
        $region49: #{atom_pair_projection.2} parent=39 // pred_check
          %p265 = pneg %p117
        $region50: #{atom_pair_projection.2} parent=39 // pred_check_branch
          %267 = sbr.rel (%p265) target = $region52
        $region51: #{atom_pair_projection.2} parent=39 // pred_region
          %269 = dma.done [#allocation5], 16
        $region52: #{atom_pair_projection.2} parent=39 // pred_fallthru
          _
        // Predicated region
        $region53: #{atom_pair_projection.2} parent=39 // pred_check
          %p270 = pneg %p138
        $region54: #{atom_pair_projection.2} parent=39 // pred_check_branch
          %272 = sbr.rel (%p270) target = $region56
        $region55: #{atom_pair_projection.2} parent=39 // pred_region
          %274 = dma.done [#allocation8], 16
        $region56: #{atom_pair_projection.2} parent=39 // pred_fallthru
          _
        %s275 = smul.u32 16, %s24
        %p276 = scmp.lt.s32.totalorder %s23, 1
        %s277 = scalar_select %p276, %s23, 1
        %p278 = scmp.lt.s32.totalorder %s275, 15
        %s279 = scalar_select %p278, %s275, 15
        %s280 = smul.addr %s277, 16
        %s281 = sadd.s32 %s279, %s280
        %s282 = smul.addr %s281, 8
        %s283 = scalar_lea.vmem %s0, %s282
        %p284 = pneg %p54
        %p285 = pneg %p51
        %p286 = pneg %p75
        %p287 = pneg %p72
        %p288 = pneg %p96
        %p289 = pneg %p93
        %p290 = pneg %p117
        %p291 = pneg %p114
        %p292 = pneg %p138
        %p293 = pneg %p135
        %p294 = pneg %p166
        %p295 = pneg %p163
        %s296 = smul.u32 16, %s24
        %p297 = scmp.lt.s32.totalorder %s23, 1
        %s298 = scalar_select %p297, %s23, 1
        %p299 = scmp.lt.s32.totalorder %s296, 15
        %s300 = scalar_select %p299, %s296, 15
        %s301 = smul.addr %s298, 16
        %s302 = sadd.s32 %s300, %s301
        %s303 = smul.addr %s302, 8
        %s304 = scalar_lea.vmem %s5, %s303
        %s305 = smul.u32 16, %s24
        %p306 = scmp.lt.s32.totalorder %s23, 1
        %s307 = scalar_select %p306, %s23, 1
        %p308 = scmp.lt.s32.totalorder %s305, 15
        %s309 = scalar_select %p308, %s305, 15
        %s310 = smul.addr %s307, 16
        %s311 = sadd.s32 %s309, %s310
        %s312 = smul.addr %s311, 8
        %s313 = scalar_lea.vmem %s0, %s312
        %s314 = smul.u32 16, %s24
        %s315 = smul.u32 16, %s24
        %p316 = scmp.lt.s32.totalorder %s23, 1
        %s317 = scalar_select %p316, %s23, 1
        %p318 = scmp.lt.s32.totalorder %s315, 15
        %s319 = scalar_select %p318, %s315, 15
        %s320 = smul.addr %s317, 16
        %s321 = sadd.s32 %s319, %s320
        %s322 = smul.addr %s321, 8
        %s323 = scalar_lea.vmem %s5, %s322
        %s324 = smul.u32 16, %s24
        %v325 = vld [vmem:[%s313] sm:$0xff]
        %v326 = vld [vmem:[%s313 + $0x8] sm:$0xff]
        %v327 = vld [vmem:[%s313 + $0x10] sm:$0xff]
        %v328 = vld [vmem:[%s313 + $0x18] sm:$0xff]
        %v329 = vld [vmem:[%s313 + $0x20] sm:$0xff]
        %v330 = vld [vmem:[%s313 + $0x28] sm:$0xff]
        %v331 = vld [vmem:[%s313 + $0x30] sm:$0xff]
        %v332 = vld [vmem:[%s313 + $0x38] sm:$0xff]
        %v333 = vld [vmem:[%s313 + $0x40] sm:$0xff]
        %v334 = vld [vmem:[%s313 + $0x48] sm:$0xff]
        %v335 = vld [vmem:[%s313 + $0x50] sm:$0xff]
        %v336 = vld [vmem:[%s313 + $0x58] sm:$0xff]
        %v337 = vld [vmem:[%s313 + $0x60] sm:$0xff]
        %v338 = vld [vmem:[%s313 + $0x68] sm:$0xff]
        %v339 = vld [vmem:[%s313 + $0x70] sm:$0xff]
        %v340 = vld [vmem:[%s313 + $0x78] sm:$0xff]
        %v341 = vld [vmem:[#allocation2] sm:$0xff]
        %v342 = vld [vmem:[#allocation2 + $0x8] sm:$0xff]
        %v343 = vld [vmem:[#allocation4] sm:$0x1]
        %v345 = vperm.slane %v343, 0
        %vm347 = vcmask 130048
        %v349 = vsel %vm347, %v325, 0
        %v352 = vsel %vm347, %v326, 0
        %v355 = vsel %vm347, %v327, 0
        %v358 = vsel %vm347, %v328, 0
        %v361 = vsel %vm347, %v329, 0
        %v364 = vsel %vm347, %v330, 0
        %v367 = vsel %vm347, %v331, 0
        %v370 = vsel %vm347, %v332, 0
        %v373 = vsel %vm347, %v333, 0
        %v376 = vsel %vm347, %v334, 0
        %v379 = vsel %vm347, %v335, 0
        %v382 = vsel %vm347, %v336, 0
        %v385 = vsel %vm347, %v337, 0
        %v388 = vsel %vm347, %v338, 0
        %v391 = vsel %vm347, %v339, 0
        %v394 = vsel %vm347, %v340, 0
        %396 = vmatpush.msra.mxu0 0.0
        %397 = vmatpush.msra.mxu0 0.0
        %398 = vmatpush.msra.mxu0 0.0
        %399 = vmatpush.msra.mxu0 0.0
        %400 = vmatpush.msra.mxu0 0.0
        %401 = vmatpush.msra.mxu0 0.0
        %402 = vmatpush.msra.mxu0 0.0
        %403 = vmatpush.msra.mxu0 0.0
        %404 = vmatpush.msra.mxu0 0.0
        %405 = vmatpush.msra.mxu0 0.0
        %406 = vmatpush.msra.mxu0 0.0
        %407 = vmatpush.msra.mxu0 0.0
        %408 = vmatpush.msra.mxu0 0.0
        %409 = vmatpush.msra.mxu0 0.0
        %410 = vmatpush.msra.mxu0 %v342
        %411 = vmatpush.msra.mxu0 %v341
        %412 = vmatmul.f32.gmra.mxu0 %v349
        %v413 = vpop.f32.mrf.mxu0
        %v414 = vadd.f32 %v345, %v413
        %415 = vmatmul.f32.gmra.mxu0 %v352
        %v416 = vpop.f32.mrf.mxu0
        %v417 = vadd.f32 %v345, %v416
        %418 = vmatmul.f32.gmra.mxu0 %v355
        %v419 = vpop.f32.mrf.mxu0
        %v420 = vadd.f32 %v345, %v419
        %421 = vmatmul.f32.gmra.mxu0 %v358
        %v422 = vpop.f32.mrf.mxu0
        %v423 = vadd.f32 %v345, %v422
        %424 = vmatmul.f32.gmra.mxu0 %v361
        %v425 = vpop.f32.mrf.mxu0
        %v426 = vadd.f32 %v345, %v425
        %427 = vmatmul.f32.gmra.mxu0 %v364
        %v428 = vpop.f32.mrf.mxu0
        %v429 = vadd.f32 %v345, %v428
        %430 = vmatmul.f32.gmra.mxu0 %v367
        %v431 = vpop.f32.mrf.mxu0
        %v432 = vadd.f32 %v345, %v431
        %433 = vmatmul.f32.gmra.mxu0 %v370
        %v434 = vpop.f32.mrf.mxu0
        %v435 = vadd.f32 %v345, %v434
        %436 = vmatmul.f32.gmra.mxu0 %v373
        %v437 = vpop.f32.mrf.mxu0
        %v438 = vadd.f32 %v345, %v437
        %439 = vmatmul.f32.gmra.mxu0 %v376
        %v440 = vpop.f32.mrf.mxu0
        %v441 = vadd.f32 %v345, %v440
        %442 = vmatmul.f32.gmra.mxu0 %v379
        %v443 = vpop.f32.mrf.mxu0
        %v444 = vadd.f32 %v345, %v443
        %445 = vmatmul.f32.gmra.mxu0 %v382
        %v446 = vpop.f32.mrf.mxu0
        %v447 = vadd.f32 %v345, %v446
        %448 = vmatmul.f32.gmra.mxu0 %v385
        %v449 = vpop.f32.mrf.mxu0
        %v450 = vadd.f32 %v345, %v449
        %451 = vmatmul.f32.gmra.mxu0 %v388
        %v452 = vpop.f32.mrf.mxu0
        %v453 = vadd.f32 %v345, %v452
        %454 = vmatmul.f32.gmra.mxu0 %v391
        %v455 = vpop.f32.mrf.mxu0
        %v456 = vadd.f32 %v345, %v455
        %457 = vmatmul.f32.gmra.mxu0 %v394
        %v458 = vpop.f32.mrf.mxu0
        %v459 = vadd.f32 %v345, %v458
        %460 = vdwg.mxu0
        %v461 = vmul.f32 %v414, 0.5
        %v462 = vmul.f32 %v417, 0.5
        %v463 = vmul.f32 %v420, 0.5
        %v464 = vmul.f32 %v423, 0.5
        %v465 = vmul.f32 %v426, 0.5
        %v466 = vmul.f32 %v429, 0.5
        %v467 = vmul.f32 %v432, 0.5
        %v468 = vmul.f32 %v435, 0.5
        %v469 = vmul.f32 %v438, 0.5
        %v470 = vmul.f32 %v441, 0.5
        %v471 = vmul.f32 %v444, 0.5
        %v472 = vmul.f32 %v447, 0.5
        %v473 = vmul.f32 %v450, 0.5
        %v474 = vmul.f32 %v453, 0.5
        %v475 = vmul.f32 %v456, 0.5
        %v476 = vmul.f32 %v459, 0.5
        %v477 = vmul.f32 %v414, 0.70710677
        %v478 = vmul.f32 %v417, 0.70710677
        %v479 = vmul.f32 %v420, 0.70710677
        %v480 = vmul.f32 %v423, 0.70710677
        %v481 = vmul.f32 %v426, 0.70710677
        %v482 = vmul.f32 %v429, 0.70710677
        %v483 = vmul.f32 %v432, 0.70710677
        %v484 = vmul.f32 %v435, 0.70710677
        %v485 = vmul.f32 %v438, 0.70710677
        %v486 = vmul.f32 %v441, 0.70710677
        %v487 = vmul.f32 %v444, 0.70710677
        %v488 = vmul.f32 %v447, 0.70710677
        %v489 = vmul.f32 %v450, 0.70710677
        %v490 = vmul.f32 %v453, 0.70710677
        %v491 = vmul.f32 %v456, 0.70710677
        %v492 = vmul.f32 %v459, 0.70710677
        %v493 = vand.u32 2147483647, %v477
        %v494 = vand.u32 2147483647, %v478
        %v495 = vand.u32 2147483647, %v479
        %v496 = vand.u32 2147483647, %v480
        %v497 = vand.u32 2147483647, %v481
        %v498 = vand.u32 2147483647, %v482
        %v499 = vand.u32 2147483647, %v483
        %v500 = vand.u32 2147483647, %v484
        %v501 = vand.u32 2147483647, %v485
        %v502 = vand.u32 2147483647, %v486
        %v503 = vand.u32 2147483647, %v487
        %v504 = vand.u32 2147483647, %v488
        %v505 = vand.u32 2147483647, %v489
        %v506 = vand.u32 2147483647, %v490
        %v507 = vand.u32 2147483647, %v491
        %v508 = vand.u32 2147483647, %v492
        %v509 = vmul.f32 %v493, 0.3275911
        %v510 = vmul.f32 %v494, 0.3275911
        %v511 = vmul.f32 %v495, 0.3275911
        %v512 = vmul.f32 %v496, 0.3275911
        %v513 = vmul.f32 %v497, 0.3275911
        %v514 = vmul.f32 %v498, 0.3275911
        %v515 = vmul.f32 %v499, 0.3275911
        %v516 = vmul.f32 %v500, 0.3275911
        %v517 = vmul.f32 %v501, 0.3275911
        %v518 = vmul.f32 %v502, 0.3275911
        %v519 = vmul.f32 %v503, 0.3275911
        %v520 = vmul.f32 %v504, 0.3275911
        %v521 = vmul.f32 %v505, 0.3275911
        %v522 = vmul.f32 %v506, 0.3275911
        %v523 = vmul.f32 %v507, 0.3275911
        %v524 = vmul.f32 %v508, 0.3275911
        %v525 = vadd.f32 %v509, 1.0
        %v526 = vadd.f32 %v510, 1.0
        %v527 = vadd.f32 %v511, 1.0
        %v528 = vadd.f32 %v512, 1.0
        %v529 = vadd.f32 %v513, 1.0
        %v530 = vadd.f32 %v514, 1.0
        %v531 = vadd.f32 %v515, 1.0
        %v532 = vadd.f32 %v516, 1.0
        %v533 = vadd.f32 %v517, 1.0
        %v534 = vadd.f32 %v518, 1.0
        %v535 = vadd.f32 %v519, 1.0
        %v536 = vadd.f32 %v520, 1.0
        %v537 = vadd.f32 %v521, 1.0
        %v538 = vadd.f32 %v522, 1.0
        %v539 = vadd.f32 %v523, 1.0
        %v540 = vadd.f32 %v524, 1.0
        %v541 = vrcp.pop %v525
        %v542 = vmul.f32 %v525, %v541
        %v543 = vsub.f32 1.0, %v542
        %v544 = vmul.f32 %v541, %v543
        %v545 = vadd.f32 %v541, %v544
        %vm546 = vweird.f32 %v525
        %vm547 = vweird.f32 %v541
        %vm548 = vmor %vm546, %vm547
        %v549 = vsel %vm548, %v541, %v545
        %v550 = vand.u32 2147483647, %v525
        %vm551 = vcmp.eq.f32.partialorder %v550, 8.507059e+37
        %v552 = vand.u32 %v525, 2147483648
        %v553 = vor.u32 1.1754944e-38, %v552
        %v554 = vsel %vm551, %v553, %v549
        %v555 = vmul.f32 1.0, %v554
        %v556 = vrcp.pop %v526
        %v557 = vmul.f32 %v526, %v556
        %v558 = vsub.f32 1.0, %v557
        %v559 = vmul.f32 %v556, %v558
        %v560 = vadd.f32 %v556, %v559
        %vm561 = vweird.f32 %v526
        %vm562 = vweird.f32 %v556
        %vm563 = vmor %vm561, %vm562
        %v564 = vsel %vm563, %v556, %v560
        %v565 = vand.u32 2147483647, %v526
        %vm566 = vcmp.eq.f32.partialorder %v565, 8.507059e+37
        %v567 = vand.u32 %v526, 2147483648
        %v568 = vor.u32 1.1754944e-38, %v567
        %v569 = vsel %vm566, %v568, %v564
        %v570 = vmul.f32 1.0, %v569
        %v571 = vrcp.pop %v527
        %v572 = vmul.f32 %v527, %v571
        %v573 = vsub.f32 1.0, %v572
        %v574 = vmul.f32 %v571, %v573
        %v575 = vadd.f32 %v571, %v574
        %vm576 = vweird.f32 %v527
        %vm577 = vweird.f32 %v571
        %vm578 = vmor %vm576, %vm577
        %v579 = vsel %vm578, %v571, %v575
        %v580 = vand.u32 2147483647, %v527
        %vm581 = vcmp.eq.f32.partialorder %v580, 8.507059e+37
        %v582 = vand.u32 %v527, 2147483648
        %v583 = vor.u32 1.1754944e-38, %v582
        %v584 = vsel %vm581, %v583, %v579
        %v585 = vmul.f32 1.0, %v584
        %v586 = vrcp.pop %v528
        %v587 = vmul.f32 %v528, %v586
        %v588 = vsub.f32 1.0, %v587
        %v589 = vmul.f32 %v586, %v588
        %v590 = vadd.f32 %v586, %v589
        %vm591 = vweird.f32 %v528
        %vm592 = vweird.f32 %v586
        %vm593 = vmor %vm591, %vm592
        %v594 = vsel %vm593, %v586, %v590
        %v595 = vand.u32 2147483647, %v528
        %vm596 = vcmp.eq.f32.partialorder %v595, 8.507059e+37
        %v597 = vand.u32 %v528, 2147483648
        %v598 = vor.u32 1.1754944e-38, %v597
        %v599 = vsel %vm596, %v598, %v594
        %v600 = vmul.f32 1.0, %v599
        %v601 = vrcp.pop %v529
        %v602 = vmul.f32 %v529, %v601
        %v603 = vsub.f32 1.0, %v602
        %v604 = vmul.f32 %v601, %v603
        %v605 = vadd.f32 %v601, %v604
        %vm606 = vweird.f32 %v529
        %vm607 = vweird.f32 %v601
        %vm608 = vmor %vm606, %vm607
        %v609 = vsel %vm608, %v601, %v605
        %v610 = vand.u32 2147483647, %v529
        %vm611 = vcmp.eq.f32.partialorder %v610, 8.507059e+37
        %v612 = vand.u32 %v529, 2147483648
        %v613 = vor.u32 1.1754944e-38, %v612
        %v614 = vsel %vm611, %v613, %v609
        %v615 = vmul.f32 1.0, %v614
        %v616 = vrcp.pop %v530
        %v617 = vmul.f32 %v530, %v616
        %v618 = vsub.f32 1.0, %v617
        %v619 = vmul.f32 %v616, %v618
        %v620 = vadd.f32 %v616, %v619
        %vm621 = vweird.f32 %v530
        %vm622 = vweird.f32 %v616
        %vm623 = vmor %vm621, %vm622
        %v624 = vsel %vm623, %v616, %v620
        %v625 = vand.u32 2147483647, %v530
        %vm626 = vcmp.eq.f32.partialorder %v625, 8.507059e+37
        %v627 = vand.u32 %v530, 2147483648
        %v628 = vor.u32 1.1754944e-38, %v627
        %v629 = vsel %vm626, %v628, %v624
        %v630 = vmul.f32 1.0, %v629
        %v631 = vrcp.pop %v531
        %v632 = vmul.f32 %v531, %v631
        %v633 = vsub.f32 1.0, %v632
        %v634 = vmul.f32 %v631, %v633
        %v635 = vadd.f32 %v631, %v634
        %vm636 = vweird.f32 %v531
        %vm637 = vweird.f32 %v631
        %vm638 = vmor %vm636, %vm637
        %v639 = vsel %vm638, %v631, %v635
        %v640 = vand.u32 2147483647, %v531
        %vm641 = vcmp.eq.f32.partialorder %v640, 8.507059e+37
        %v642 = vand.u32 %v531, 2147483648
        %v643 = vor.u32 1.1754944e-38, %v642
        %v644 = vsel %vm641, %v643, %v639
        %v645 = vmul.f32 1.0, %v644
        %v646 = vrcp.pop %v532
        %v647 = vmul.f32 %v532, %v646
        %v648 = vsub.f32 1.0, %v647
        %v649 = vmul.f32 %v646, %v648
        %v650 = vadd.f32 %v646, %v649
        %vm651 = vweird.f32 %v532
        %vm652 = vweird.f32 %v646
        %vm653 = vmor %vm651, %vm652
        %v654 = vsel %vm653, %v646, %v650
        %v655 = vand.u32 2147483647, %v532
        %vm656 = vcmp.eq.f32.partialorder %v655, 8.507059e+37
        %v657 = vand.u32 %v532, 2147483648
        %v658 = vor.u32 1.1754944e-38, %v657
        %v659 = vsel %vm656, %v658, %v654
        %v660 = vmul.f32 1.0, %v659
        %v661 = vrcp.pop %v533
        %v662 = vmul.f32 %v533, %v661
        %v663 = vsub.f32 1.0, %v662
        %v664 = vmul.f32 %v661, %v663
        %v665 = vadd.f32 %v661, %v664
        %vm666 = vweird.f32 %v533
        %vm667 = vweird.f32 %v661
        %vm668 = vmor %vm666, %vm667
        %v669 = vsel %vm668, %v661, %v665
        %v670 = vand.u32 2147483647, %v533
        %vm671 = vcmp.eq.f32.partialorder %v670, 8.507059e+37
        %v672 = vand.u32 %v533, 2147483648
        %v673 = vor.u32 1.1754944e-38, %v672
        %v674 = vsel %vm671, %v673, %v669
        %v675 = vmul.f32 1.0, %v674
        %v676 = vrcp.pop %v534
        %v677 = vmul.f32 %v534, %v676
        %v678 = vsub.f32 1.0, %v677
        %v679 = vmul.f32 %v676, %v678
        %v680 = vadd.f32 %v676, %v679
        %vm681 = vweird.f32 %v534
        %vm682 = vweird.f32 %v676
        %vm683 = vmor %vm681, %vm682
        %v684 = vsel %vm683, %v676, %v680
        %v685 = vand.u32 2147483647, %v534
        %vm686 = vcmp.eq.f32.partialorder %v685, 8.507059e+37
        %v687 = vand.u32 %v534, 2147483648
        %v688 = vor.u32 1.1754944e-38, %v687
        %v689 = vsel %vm686, %v688, %v684
        %v690 = vmul.f32 1.0, %v689
        %v691 = vrcp.pop %v535
        %v692 = vmul.f32 %v535, %v691
        %v693 = vsub.f32 1.0, %v692
        %v694 = vmul.f32 %v691, %v693
        %v695 = vadd.f32 %v691, %v694
        %vm696 = vweird.f32 %v535
        %vm697 = vweird.f32 %v691
        %vm698 = vmor %vm696, %vm697
        %v699 = vsel %vm698, %v691, %v695
        %v700 = vand.u32 2147483647, %v535
        %vm701 = vcmp.eq.f32.partialorder %v700, 8.507059e+37
        %v702 = vand.u32 %v535, 2147483648
        %v703 = vor.u32 1.1754944e-38, %v702
        %v704 = vsel %vm701, %v703, %v699
        %v705 = vmul.f32 1.0, %v704
        %v706 = vrcp.pop %v536
        %v707 = vmul.f32 %v536, %v706
        %v708 = vsub.f32 1.0, %v707
        %v709 = vmul.f32 %v706, %v708
        %v710 = vadd.f32 %v706, %v709
        %vm711 = vweird.f32 %v536
        %vm712 = vweird.f32 %v706
        %vm713 = vmor %vm711, %vm712
        %v714 = vsel %vm713, %v706, %v710
        %v715 = vand.u32 2147483647, %v536
        %vm716 = vcmp.eq.f32.partialorder %v715, 8.507059e+37
        %v717 = vand.u32 %v536, 2147483648
        %v718 = vor.u32 1.1754944e-38, %v717
        %v719 = vsel %vm716, %v718, %v714
        %v720 = vmul.f32 1.0, %v719
        %v721 = vrcp.pop %v537
        %v722 = vmul.f32 %v537, %v721
        %v723 = vsub.f32 1.0, %v722
        %v724 = vmul.f32 %v721, %v723
        %v725 = vadd.f32 %v721, %v724
        %vm726 = vweird.f32 %v537
        %vm727 = vweird.f32 %v721
        %vm728 = vmor %vm726, %vm727
        %v729 = vsel %vm728, %v721, %v725
        %v730 = vand.u32 2147483647, %v537
        %vm731 = vcmp.eq.f32.partialorder %v730, 8.507059e+37
        %v732 = vand.u32 %v537, 2147483648
        %v733 = vor.u32 1.1754944e-38, %v732
        %v734 = vsel %vm731, %v733, %v729
        %v735 = vmul.f32 1.0, %v734
        %v736 = vrcp.pop %v538
        %v737 = vmul.f32 %v538, %v736
        %v738 = vsub.f32 1.0, %v737
        %v739 = vmul.f32 %v736, %v738
        %v740 = vadd.f32 %v736, %v739
        %vm741 = vweird.f32 %v538
        %vm742 = vweird.f32 %v736
        %vm743 = vmor %vm741, %vm742
        %v744 = vsel %vm743, %v736, %v740
        %v745 = vand.u32 2147483647, %v538
        %vm746 = vcmp.eq.f32.partialorder %v745, 8.507059e+37
        %v747 = vand.u32 %v538, 2147483648
        %v748 = vor.u32 1.1754944e-38, %v747
        %v749 = vsel %vm746, %v748, %v744
        %v750 = vmul.f32 1.0, %v749
        %v751 = vrcp.pop %v539
        %v752 = vmul.f32 %v539, %v751
        %v753 = vsub.f32 1.0, %v752
        %v754 = vmul.f32 %v751, %v753
        %v755 = vadd.f32 %v751, %v754
        %vm756 = vweird.f32 %v539
        %vm757 = vweird.f32 %v751
        %vm758 = vmor %vm756, %vm757
        %v759 = vsel %vm758, %v751, %v755
        %v760 = vand.u32 2147483647, %v539
        %vm761 = vcmp.eq.f32.partialorder %v760, 8.507059e+37
        %v762 = vand.u32 %v539, 2147483648
        %v763 = vor.u32 1.1754944e-38, %v762
        %v764 = vsel %vm761, %v763, %v759
        %v765 = vmul.f32 1.0, %v764
        %v766 = vrcp.pop %v540
        %v767 = vmul.f32 %v540, %v766
        %v768 = vsub.f32 1.0, %v767
        %v769 = vmul.f32 %v766, %v768
        %v770 = vadd.f32 %v766, %v769
        %vm771 = vweird.f32 %v540
        %vm772 = vweird.f32 %v766
        %vm773 = vmor %vm771, %vm772
        %v774 = vsel %vm773, %v766, %v770
        %v775 = vand.u32 2147483647, %v540
        %vm776 = vcmp.eq.f32.partialorder %v775, 8.507059e+37
        %v777 = vand.u32 %v540, 2147483648
        %v778 = vor.u32 1.1754944e-38, %v777
        %v779 = vsel %vm776, %v778, %v774
        %v780 = vmul.f32 1.0, %v779
        %v781 = vmul.f32 %v555, 1.0614054
        %v782 = vmul.f32 %v570, 1.0614054
        %v783 = vmul.f32 %v585, 1.0614054
        %v784 = vmul.f32 %v600, 1.0614054
        %v785 = vmul.f32 %v615, 1.0614054
        %v786 = vmul.f32 %v630, 1.0614054
        %v787 = vmul.f32 %v645, 1.0614054
        %v788 = vmul.f32 %v660, 1.0614054
        %v789 = vmul.f32 %v675, 1.0614054
        %v790 = vmul.f32 %v690, 1.0614054
        %v791 = vmul.f32 %v705, 1.0614054
        %v792 = vmul.f32 %v720, 1.0614054
        %v793 = vmul.f32 %v735, 1.0614054
        %v794 = vmul.f32 %v750, 1.0614054
        %v795 = vmul.f32 %v765, 1.0614054
        %v796 = vmul.f32 %v780, 1.0614054
        %v797 = vadd.f32 %v781, -1.4531521
        %v798 = vadd.f32 %v782, -1.4531521
        %v799 = vadd.f32 %v783, -1.4531521
        %v800 = vadd.f32 %v784, -1.4531521
        %v801 = vadd.f32 %v785, -1.4531521
        %v802 = vadd.f32 %v786, -1.4531521
        %v803 = vadd.f32 %v787, -1.4531521
        %v804 = vadd.f32 %v788, -1.4531521
        %v805 = vadd.f32 %v789, -1.4531521
        %v806 = vadd.f32 %v790, -1.4531521
        %v807 = vadd.f32 %v791, -1.4531521
        %v808 = vadd.f32 %v792, -1.4531521
        %v809 = vadd.f32 %v793, -1.4531521
        %v810 = vadd.f32 %v794, -1.4531521
        %v811 = vadd.f32 %v795, -1.4531521
        %v812 = vadd.f32 %v796, -1.4531521
        %v813 = vmul.f32 %v797, %v555
        %v814 = vmul.f32 %v798, %v570
        %v815 = vmul.f32 %v799, %v585
        %v816 = vmul.f32 %v800, %v600
        %v817 = vmul.f32 %v801, %v615
        %v818 = vmul.f32 %v802, %v630
        %v819 = vmul.f32 %v803, %v645
        %v820 = vmul.f32 %v804, %v660
        %v821 = vmul.f32 %v805, %v675
        %v822 = vmul.f32 %v806, %v690
        %v823 = vmul.f32 %v807, %v705
        %v824 = vmul.f32 %v808, %v720
        %v825 = vmul.f32 %v809, %v735
        %v826 = vmul.f32 %v810, %v750
        %v827 = vmul.f32 %v811, %v765
        %v828 = vmul.f32 %v812, %v780
        %v829 = vadd.f32 %v813, 1.4214138
        %v830 = vadd.f32 %v814, 1.4214138
        %v831 = vadd.f32 %v815, 1.4214138
        %v832 = vadd.f32 %v816, 1.4214138
        %v833 = vadd.f32 %v817, 1.4214138
        %v834 = vadd.f32 %v818, 1.4214138
        %v835 = vadd.f32 %v819, 1.4214138
        %v836 = vadd.f32 %v820, 1.4214138
        %v837 = vadd.f32 %v821, 1.4214138
        %v838 = vadd.f32 %v822, 1.4214138
        %v839 = vadd.f32 %v823, 1.4214138
        %v840 = vadd.f32 %v824, 1.4214138
        %v841 = vadd.f32 %v825, 1.4214138
        %v842 = vadd.f32 %v826, 1.4214138
        %v843 = vadd.f32 %v827, 1.4214138
        %v844 = vadd.f32 %v828, 1.4214138
        %v845 = vmul.f32 %v829, %v555
        %v846 = vmul.f32 %v830, %v570
        %v847 = vmul.f32 %v831, %v585
        %v848 = vmul.f32 %v832, %v600
        %v849 = vmul.f32 %v833, %v615
        %v850 = vmul.f32 %v834, %v630
        %v851 = vmul.f32 %v835, %v645
        %v852 = vmul.f32 %v836, %v660
        %v853 = vmul.f32 %v837, %v675
        %v854 = vmul.f32 %v838, %v690
        %v855 = vmul.f32 %v839, %v705
        %v856 = vmul.f32 %v840, %v720
        %v857 = vmul.f32 %v841, %v735
        %v858 = vmul.f32 %v842, %v750
        %v859 = vmul.f32 %v843, %v765
        %v860 = vmul.f32 %v844, %v780
        %v861 = vadd.f32 %v845, -0.28449672
        %v862 = vadd.f32 %v846, -0.28449672
        %v863 = vadd.f32 %v847, -0.28449672
        %v864 = vadd.f32 %v848, -0.28449672
        %v865 = vadd.f32 %v849, -0.28449672
        %v866 = vadd.f32 %v850, -0.28449672
        %v867 = vadd.f32 %v851, -0.28449672
        %v868 = vadd.f32 %v852, -0.28449672
        %v869 = vadd.f32 %v853, -0.28449672
        %v870 = vadd.f32 %v854, -0.28449672
        %v871 = vadd.f32 %v855, -0.28449672
        %v872 = vadd.f32 %v856, -0.28449672
        %v873 = vadd.f32 %v857, -0.28449672
        %v874 = vadd.f32 %v858, -0.28449672
        %v875 = vadd.f32 %v859, -0.28449672
        %v876 = vadd.f32 %v860, -0.28449672
        %v877 = vmul.f32 %v861, %v555
        %v878 = vmul.f32 %v862, %v570
        %v879 = vmul.f32 %v863, %v585
        %v880 = vmul.f32 %v864, %v600
        %v881 = vmul.f32 %v865, %v615
        %v882 = vmul.f32 %v866, %v630
        %v883 = vmul.f32 %v867, %v645
        %v884 = vmul.f32 %v868, %v660
        %v885 = vmul.f32 %v869, %v675
        %v886 = vmul.f32 %v870, %v690
        %v887 = vmul.f32 %v871, %v705
        %v888 = vmul.f32 %v872, %v720
        %v889 = vmul.f32 %v873, %v735
        %v890 = vmul.f32 %v874, %v750
        %v891 = vmul.f32 %v875, %v765
        %v892 = vmul.f32 %v876, %v780
        %v893 = vadd.f32 %v877, 0.2548296
        %v894 = vadd.f32 %v878, 0.2548296
        %v895 = vadd.f32 %v879, 0.2548296
        %v896 = vadd.f32 %v880, 0.2548296
        %v897 = vadd.f32 %v881, 0.2548296
        %v898 = vadd.f32 %v882, 0.2548296
        %v899 = vadd.f32 %v883, 0.2548296
        %v900 = vadd.f32 %v884, 0.2548296
        %v901 = vadd.f32 %v885, 0.2548296
        %v902 = vadd.f32 %v886, 0.2548296
        %v903 = vadd.f32 %v887, 0.2548296
        %v904 = vadd.f32 %v888, 0.2548296
        %v905 = vadd.f32 %v889, 0.2548296
        %v906 = vadd.f32 %v890, 0.2548296
        %v907 = vadd.f32 %v891, 0.2548296
        %v908 = vadd.f32 %v892, 0.2548296
        %v909 = vmul.f32 %v893, %v555
        %v910 = vmul.f32 %v894, %v570
        %v911 = vmul.f32 %v895, %v585
        %v912 = vmul.f32 %v896, %v600
        %v913 = vmul.f32 %v897, %v615
        %v914 = vmul.f32 %v898, %v630
        %v915 = vmul.f32 %v899, %v645
        %v916 = vmul.f32 %v900, %v660
        %v917 = vmul.f32 %v901, %v675
        %v918 = vmul.f32 %v902, %v690
        %v919 = vmul.f32 %v903, %v705
        %v920 = vmul.f32 %v904, %v720
        %v921 = vmul.f32 %v905, %v735
        %v922 = vmul.f32 %v906, %v750
        %v923 = vmul.f32 %v907, %v765
        %v924 = vmul.f32 %v908, %v780
        %v925 = vsub.f32 0.0, %v493
        %v926 = vsub.f32 0.0, %v494
        %v927 = vsub.f32 0.0, %v495
        %v928 = vsub.f32 0.0, %v496
        %v929 = vsub.f32 0.0, %v497
        %v930 = vsub.f32 0.0, %v498
        %v931 = vsub.f32 0.0, %v499
        %v932 = vsub.f32 0.0, %v500
        %v933 = vsub.f32 0.0, %v501
        %v934 = vsub.f32 0.0, %v502
        %v935 = vsub.f32 0.0, %v503
        %v936 = vsub.f32 0.0, %v504
        %v937 = vsub.f32 0.0, %v505
        %v938 = vsub.f32 0.0, %v506
        %v939 = vsub.f32 0.0, %v507
        %v940 = vsub.f32 0.0, %v508
        %v941 = vmul.f32 %v925, %v493
        %v942 = vmul.f32 %v926, %v494
        %v943 = vmul.f32 %v927, %v495
        %v944 = vmul.f32 %v928, %v496
        %v945 = vmul.f32 %v929, %v497
        %v946 = vmul.f32 %v930, %v498
        %v947 = vmul.f32 %v931, %v499
        %v948 = vmul.f32 %v932, %v500
        %v949 = vmul.f32 %v933, %v501
        %v950 = vmul.f32 %v934, %v502
        %v951 = vmul.f32 %v935, %v503
        %v952 = vmul.f32 %v936, %v504
        %v953 = vmul.f32 %v937, %v505
        %v954 = vmul.f32 %v938, %v506
        %v955 = vmul.f32 %v939, %v507
        %v956 = vmul.f32 %v940, %v508
        %v957 = vmul.f32 %v941, 1.442695
        %v958 = vpow.pop %v957
        %v959 = vmul.f32 %v942, 1.442695
        %v960 = vpow.pop %v959
        %v961 = vmul.f32 %v943, 1.442695
        %v962 = vpow.pop %v961
        %v963 = vmul.f32 %v944, 1.442695
        %v964 = vpow.pop %v963
        %v965 = vmul.f32 %v945, 1.442695
        %v966 = vpow.pop %v965
        %v967 = vmul.f32 %v946, 1.442695
        %v968 = vpow.pop %v967
        %v969 = vmul.f32 %v947, 1.442695
        %v970 = vpow.pop %v969
        %v971 = vmul.f32 %v948, 1.442695
        %v972 = vpow.pop %v971
        %v973 = vmul.f32 %v949, 1.442695
        %v974 = vpow.pop %v973
        %v975 = vmul.f32 %v950, 1.442695
        %v976 = vpow.pop %v975
        %v977 = vmul.f32 %v951, 1.442695
        %v978 = vpow.pop %v977
        %v979 = vmul.f32 %v952, 1.442695
        %v980 = vpow.pop %v979
        %v981 = vmul.f32 %v953, 1.442695
        %v982 = vpow.pop %v981
        %v983 = vmul.f32 %v954, 1.442695
        %v984 = vpow.pop %v983
        %v985 = vmul.f32 %v955, 1.442695
        %v986 = vpow.pop %v985
        %v987 = vmul.f32 %v956, 1.442695
        %v988 = vpow.pop %v987
        %v989 = vmul.f32 %v909, %v958
        %v990 = vmul.f32 %v910, %v960
        %v991 = vmul.f32 %v911, %v962
        %v992 = vmul.f32 %v912, %v964
        %v993 = vmul.f32 %v913, %v966
        %v994 = vmul.f32 %v914, %v968
        %v995 = vmul.f32 %v915, %v970
        %v996 = vmul.f32 %v916, %v972
        %v997 = vmul.f32 %v917, %v974
        %v998 = vmul.f32 %v918, %v976
        %v999 = vmul.f32 %v919, %v978
        %v1000 = vmul.f32 %v920, %v980
        %v1001 = vmul.f32 %v921, %v982
        %v1002 = vmul.f32 %v922, %v984
        %v1003 = vmul.f32 %v923, %v986
        %v1004 = vmul.f32 %v924, %v988
        %v1005 = vsub.f32 1.0, %v989
        %v1006 = vsub.f32 1.0, %v990
        %v1007 = vsub.f32 1.0, %v991
        %v1008 = vsub.f32 1.0, %v992
        %v1009 = vsub.f32 1.0, %v993
        %v1010 = vsub.f32 1.0, %v994
        %v1011 = vsub.f32 1.0, %v995
        %v1012 = vsub.f32 1.0, %v996
        %v1013 = vsub.f32 1.0, %v997
        %v1014 = vsub.f32 1.0, %v998
        %v1015 = vsub.f32 1.0, %v999
        %v1016 = vsub.f32 1.0, %v1000
        %v1017 = vsub.f32 1.0, %v1001
        %v1018 = vsub.f32 1.0, %v1002
        %v1019 = vsub.f32 1.0, %v1003
        %v1020 = vsub.f32 1.0, %v1004
        %vm1021 = vcmp.lt.f32.partialorder %v477, 0.0
        %vm1022 = vcmp.lt.f32.partialorder %v478, 0.0
        %vm1023 = vcmp.lt.f32.partialorder %v479, 0.0
        %vm1024 = vcmp.lt.f32.partialorder %v480, 0.0
        %vm1025 = vcmp.lt.f32.partialorder %v481, 0.0
        %vm1026 = vcmp.lt.f32.partialorder %v482, 0.0
        %vm1027 = vcmp.lt.f32.partialorder %v483, 0.0
        %vm1028 = vcmp.lt.f32.partialorder %v484, 0.0
        %vm1029 = vcmp.lt.f32.partialorder %v485, 0.0
        %vm1030 = vcmp.lt.f32.partialorder %v486, 0.0
        %vm1031 = vcmp.lt.f32.partialorder %v487, 0.0
        %vm1032 = vcmp.lt.f32.partialorder %v488, 0.0
        %vm1033 = vcmp.lt.f32.partialorder %v489, 0.0
        %vm1034 = vcmp.lt.f32.partialorder %v490, 0.0
        %vm1035 = vcmp.lt.f32.partialorder %v491, 0.0
        %vm1036 = vcmp.lt.f32.partialorder %v492, 0.0
        %v1037 = vsub.f32 0.0, %v1005
        %v1038 = vsub.f32 0.0, %v1006
        %v1039 = vsub.f32 0.0, %v1007
        %v1040 = vsub.f32 0.0, %v1008
        %v1041 = vsub.f32 0.0, %v1009
        %v1042 = vsub.f32 0.0, %v1010
        %v1043 = vsub.f32 0.0, %v1011
        %v1044 = vsub.f32 0.0, %v1012
        %v1045 = vsub.f32 0.0, %v1013
        %v1046 = vsub.f32 0.0, %v1014
        %v1047 = vsub.f32 0.0, %v1015
        %v1048 = vsub.f32 0.0, %v1016
        %v1049 = vsub.f32 0.0, %v1017
        %v1050 = vsub.f32 0.0, %v1018
        %v1051 = vsub.f32 0.0, %v1019
        %v1052 = vsub.f32 0.0, %v1020
        %v1053 = vsel %vm1021, %v1037, %v1005
        %v1054 = vsel %vm1022, %v1038, %v1006
        %v1055 = vsel %vm1023, %v1039, %v1007
        %v1056 = vsel %vm1024, %v1040, %v1008
        %v1057 = vsel %vm1025, %v1041, %v1009
        %v1058 = vsel %vm1026, %v1042, %v1010
        %v1059 = vsel %vm1027, %v1043, %v1011
        %v1060 = vsel %vm1028, %v1044, %v1012
        %v1061 = vsel %vm1029, %v1045, %v1013
        %v1062 = vsel %vm1030, %v1046, %v1014
        %v1063 = vsel %vm1031, %v1047, %v1015
        %v1064 = vsel %vm1032, %v1048, %v1016
        %v1065 = vsel %vm1033, %v1049, %v1017
        %v1066 = vsel %vm1034, %v1050, %v1018
        %v1067 = vsel %vm1035, %v1051, %v1019
        %v1068 = vsel %vm1036, %v1052, %v1020
        %v1069 = vadd.f32 %v1053, 1.0
        %v1070 = vadd.f32 %v1054, 1.0
        %v1071 = vadd.f32 %v1055, 1.0
        %v1072 = vadd.f32 %v1056, 1.0
        %v1073 = vadd.f32 %v1057, 1.0
        %v1074 = vadd.f32 %v1058, 1.0
        %v1075 = vadd.f32 %v1059, 1.0
        %v1076 = vadd.f32 %v1060, 1.0
        %v1077 = vadd.f32 %v1061, 1.0
        %v1078 = vadd.f32 %v1062, 1.0
        %v1079 = vadd.f32 %v1063, 1.0
        %v1080 = vadd.f32 %v1064, 1.0
        %v1081 = vadd.f32 %v1065, 1.0
        %v1082 = vadd.f32 %v1066, 1.0
        %v1083 = vadd.f32 %v1067, 1.0
        %v1084 = vadd.f32 %v1068, 1.0
        %v1085 = vmul.f32 %v461, %v1069
        %v1086 = vmul.f32 %v462, %v1070
        %v1087 = vmul.f32 %v463, %v1071
        %v1088 = vmul.f32 %v464, %v1072
        %v1089 = vmul.f32 %v465, %v1073
        %v1090 = vmul.f32 %v466, %v1074
        %v1091 = vmul.f32 %v467, %v1075
        %v1092 = vmul.f32 %v468, %v1076
        %v1093 = vmul.f32 %v469, %v1077
        %v1094 = vmul.f32 %v470, %v1078
        %v1095 = vmul.f32 %v471, %v1079
        %v1096 = vmul.f32 %v472, %v1080
        %v1097 = vmul.f32 %v473, %v1081
        %v1098 = vmul.f32 %v474, %v1082
        %v1099 = vmul.f32 %v475, %v1083
        %v1100 = vmul.f32 %v476, %v1084
        %v1101 = vsel %vm347, %v1085, 0.0
        %1102 = vadd.xlane.f32.xlu0 %v1101
        %v1103 = vpop.xlane.xlu0 %1102
        %v1104 = vsel %vm347, %v1086, 0.0
        %1105 = vadd.xlane.f32.xlu0 %v1104
        %v1106 = vpop.xlane.xlu0 %1105
        %v1107 = vsel %vm347, %v1087, 0.0
        %1108 = vadd.xlane.f32.xlu0 %v1107
        %v1109 = vpop.xlane.xlu0 %1108
        %v1110 = vsel %vm347, %v1088, 0.0
        %1111 = vadd.xlane.f32.xlu0 %v1110
        %v1112 = vpop.xlane.xlu0 %1111
        %v1113 = vsel %vm347, %v1089, 0.0
        %1114 = vadd.xlane.f32.xlu0 %v1113
        %v1115 = vpop.xlane.xlu0 %1114
        %v1116 = vsel %vm347, %v1090, 0.0
        %1117 = vadd.xlane.f32.xlu0 %v1116
        %v1118 = vpop.xlane.xlu0 %1117
        %v1119 = vsel %vm347, %v1091, 0.0
        %1120 = vadd.xlane.f32.xlu0 %v1119
        %v1121 = vpop.xlane.xlu0 %1120
        %v1122 = vsel %vm347, %v1092, 0.0
        %1123 = vadd.xlane.f32.xlu0 %v1122
        %v1124 = vpop.xlane.xlu0 %1123
        %v1125 = vsel %vm347, %v1093, 0.0
        %1126 = vadd.xlane.f32.xlu0 %v1125
        %v1127 = vpop.xlane.xlu0 %1126
        %v1128 = vsel %vm347, %v1094, 0.0
        %1129 = vadd.xlane.f32.xlu0 %v1128
        %v1130 = vpop.xlane.xlu0 %1129
        %v1131 = vsel %vm347, %v1095, 0.0
        %1132 = vadd.xlane.f32.xlu0 %v1131
        %v1133 = vpop.xlane.xlu0 %1132
        %v1134 = vsel %vm347, %v1096, 0.0
        %1135 = vadd.xlane.f32.xlu0 %v1134
        %v1136 = vpop.xlane.xlu0 %1135
        %v1137 = vsel %vm347, %v1097, 0.0
        %1138 = vadd.xlane.f32.xlu0 %v1137
        %v1139 = vpop.xlane.xlu0 %1138
        %v1140 = vsel %vm347, %v1098, 0.0
        %1141 = vadd.xlane.f32.xlu0 %v1140
        %v1142 = vpop.xlane.xlu0 %1141
        %v1143 = vsel %vm347, %v1099, 0.0
        %1144 = vadd.xlane.f32.xlu0 %v1143
        %v1145 = vpop.xlane.xlu0 %1144
        %v1146 = vsel %vm347, %v1100, 0.0
        %1147 = vadd.xlane.f32.xlu0 %v1146
        %v1148 = vpop.xlane.xlu0 %1147
        %v1149 = vrcp.pop 16.0
        %v1150 = vmul.f32 16.0, %v1149
        %v1151 = vsub.f32 1.0, %v1150
        %v1152 = vmul.f32 %v1149, %v1151
        %v1153 = vadd.f32 %v1149, %v1152
        %vm1154 = vweird.f32 %v1149
        %v1155 = vsel %vm1154, %v1149, %v1153
        %v1156 = vmul.f32 %v1103, %v1155
        %v1157 = vmul.f32 %v1106, %v1155
        %v1158 = vmul.f32 %v1109, %v1155
        %v1159 = vmul.f32 %v1112, %v1155
        %v1160 = vmul.f32 %v1115, %v1155
        %v1161 = vmul.f32 %v1118, %v1155
        %v1162 = vmul.f32 %v1121, %v1155
        %v1163 = vmul.f32 %v1124, %v1155
        %v1164 = vmul.f32 %v1127, %v1155
        %v1165 = vmul.f32 %v1130, %v1155
        %v1166 = vmul.f32 %v1133, %v1155
        %v1167 = vmul.f32 %v1136, %v1155
        %v1168 = vmul.f32 %v1139, %v1155
        %v1169 = vmul.f32 %v1142, %v1155
        %v1170 = vmul.f32 %v1145, %v1155
        %v1171 = vmul.f32 %v1148, %v1155
        %v1172 = vsub.f32 %v1085, %v1156
        %v1173 = vsub.f32 %v1086, %v1157
        %v1174 = vsub.f32 %v1087, %v1158
        %v1175 = vsub.f32 %v1088, %v1159
        %v1176 = vsub.f32 %v1089, %v1160
        %v1177 = vsub.f32 %v1090, %v1161
        %v1178 = vsub.f32 %v1091, %v1162
        %v1179 = vsub.f32 %v1092, %v1163
        %v1180 = vsub.f32 %v1093, %v1164
        %v1181 = vsub.f32 %v1094, %v1165
        %v1182 = vsub.f32 %v1095, %v1166
        %v1183 = vsub.f32 %v1096, %v1167
        %v1184 = vsub.f32 %v1097, %v1168
        %v1185 = vsub.f32 %v1098, %v1169
        %v1186 = vsub.f32 %v1099, %v1170
        %v1187 = vsub.f32 %v1100, %v1171
        %v1188 = vmul.f32 %v1172, %v1172
        %v1189 = vmul.f32 %v1173, %v1173
        %v1190 = vmul.f32 %v1174, %v1174
        %v1191 = vmul.f32 %v1175, %v1175
        %v1192 = vmul.f32 %v1176, %v1176
        %v1193 = vmul.f32 %v1177, %v1177
        %v1194 = vmul.f32 %v1178, %v1178
        %v1195 = vmul.f32 %v1179, %v1179
        %v1196 = vmul.f32 %v1180, %v1180
        %v1197 = vmul.f32 %v1181, %v1181
        %v1198 = vmul.f32 %v1182, %v1182
        %v1199 = vmul.f32 %v1183, %v1183
        %v1200 = vmul.f32 %v1184, %v1184
        %v1201 = vmul.f32 %v1185, %v1185
        %v1202 = vmul.f32 %v1186, %v1186
        %v1203 = vmul.f32 %v1187, %v1187
        %v1204 = vsel %vm347, %v1188, 0.0
        %1205 = vadd.xlane.f32.xlu0 %v1204
        %v1206 = vpop.xlane.xlu0 %1205
        %v1207 = vsel %vm347, %v1189, 0.0
        %1208 = vadd.xlane.f32.xlu0 %v1207
        %v1209 = vpop.xlane.xlu0 %1208
        %v1210 = vsel %vm347, %v1190, 0.0
        %1211 = vadd.xlane.f32.xlu0 %v1210
        %v1212 = vpop.xlane.xlu0 %1211
        %v1213 = vsel %vm347, %v1191, 0.0
        %1214 = vadd.xlane.f32.xlu0 %v1213
        %v1215 = vpop.xlane.xlu0 %1214
        %v1216 = vsel %vm347, %v1192, 0.0
        %1217 = vadd.xlane.f32.xlu0 %v1216
        %v1218 = vpop.xlane.xlu0 %1217
        %v1219 = vsel %vm347, %v1193, 0.0
        %1220 = vadd.xlane.f32.xlu0 %v1219
        %v1221 = vpop.xlane.xlu0 %1220
        %v1222 = vsel %vm347, %v1194, 0.0
        %1223 = vadd.xlane.f32.xlu0 %v1222
        %v1224 = vpop.xlane.xlu0 %1223
        %v1225 = vsel %vm347, %v1195, 0.0
        %1226 = vadd.xlane.f32.xlu0 %v1225
        %v1227 = vpop.xlane.xlu0 %1226
        %v1228 = vsel %vm347, %v1196, 0.0
        %1229 = vadd.xlane.f32.xlu0 %v1228
        %v1230 = vpop.xlane.xlu0 %1229
        %v1231 = vsel %vm347, %v1197, 0.0
        %1232 = vadd.xlane.f32.xlu0 %v1231
        %v1233 = vpop.xlane.xlu0 %1232
        %v1234 = vsel %vm347, %v1198, 0.0
        %1235 = vadd.xlane.f32.xlu0 %v1234
        %v1236 = vpop.xlane.xlu0 %1235
        %v1237 = vsel %vm347, %v1199, 0.0
        %1238 = vadd.xlane.f32.xlu0 %v1237
        %v1239 = vpop.xlane.xlu0 %1238
        %v1240 = vsel %vm347, %v1200, 0.0
        %1241 = vadd.xlane.f32.xlu0 %v1240
        %v1242 = vpop.xlane.xlu0 %1241
        %v1243 = vsel %vm347, %v1201, 0.0
        %1244 = vadd.xlane.f32.xlu0 %v1243
        %v1245 = vpop.xlane.xlu0 %1244
        %v1246 = vsel %vm347, %v1202, 0.0
        %1247 = vadd.xlane.f32.xlu0 %v1246
        %v1248 = vpop.xlane.xlu0 %1247
        %v1249 = vsel %vm347, %v1203, 0.0
        %1250 = vadd.xlane.f32.xlu0 %v1249
        %v1251 = vpop.xlane.xlu0 %1250
        %v1252 = vmul.f32 %v1206, %v1155
        %v1253 = vmul.f32 %v1209, %v1155
        %v1254 = vmul.f32 %v1212, %v1155
        %v1255 = vmul.f32 %v1215, %v1155
        %v1256 = vmul.f32 %v1218, %v1155
        %v1257 = vmul.f32 %v1221, %v1155
        %v1258 = vmul.f32 %v1224, %v1155
        %v1259 = vmul.f32 %v1227, %v1155
        %v1260 = vmul.f32 %v1230, %v1155
        %v1261 = vmul.f32 %v1233, %v1155
        %v1262 = vmul.f32 %v1236, %v1155
        %v1263 = vmul.f32 %v1239, %v1155
        %v1264 = vmul.f32 %v1242, %v1155
        %v1265 = vmul.f32 %v1245, %v1155
        %v1266 = vmul.f32 %v1248, %v1155
        %v1267 = vmul.f32 %v1251, %v1155
        %v1268 = vadd.f32 %v1252, 1e-05
        %v1269 = vadd.f32 %v1253, 1e-05
        %v1270 = vadd.f32 %v1254, 1e-05
        %v1271 = vadd.f32 %v1255, 1e-05
        %v1272 = vadd.f32 %v1256, 1e-05
        %v1273 = vadd.f32 %v1257, 1e-05
        %v1274 = vadd.f32 %v1258, 1e-05
        %v1275 = vadd.f32 %v1259, 1e-05
        %v1276 = vadd.f32 %v1260, 1e-05
        %v1277 = vadd.f32 %v1261, 1e-05
        %v1278 = vadd.f32 %v1262, 1e-05
        %v1279 = vadd.f32 %v1263, 1e-05
        %v1280 = vadd.f32 %v1264, 1e-05
        %v1281 = vadd.f32 %v1265, 1e-05
        %v1282 = vadd.f32 %v1266, 1e-05
        %v1283 = vadd.f32 %v1267, 1e-05
        %v1284 = vrsqrt.pop %v1268
        %v1285 = vmul.f32 %v1284, %v1268
        %v1286 = vmul.f32 %v1285, %v1284
        %v1287 = vmul.f32 0.5, %v1286
        %v1288 = vsub.f32 1.5, %v1287
        %v1289 = vmul.f32 %v1284, %v1288
        %vm1290 = vweird.f32 %v1268
        %vm1291 = vweird.f32 %v1284
        %vm1292 = vmor %vm1290, %vm1291
        %v1293 = vsel %vm1292, %v1284, %v1289
        %v1294 = vrsqrt.pop %v1269
        %v1295 = vmul.f32 %v1294, %v1269
        %v1296 = vmul.f32 %v1295, %v1294
        %v1297 = vmul.f32 0.5, %v1296
        %v1298 = vsub.f32 1.5, %v1297
        %v1299 = vmul.f32 %v1294, %v1298
        %vm1300 = vweird.f32 %v1269
        %vm1301 = vweird.f32 %v1294
        %vm1302 = vmor %vm1300, %vm1301
        %v1303 = vsel %vm1302, %v1294, %v1299
        %v1304 = vrsqrt.pop %v1270
        %v1305 = vmul.f32 %v1304, %v1270
        %v1306 = vmul.f32 %v1305, %v1304
        %v1307 = vmul.f32 0.5, %v1306
        %v1308 = vsub.f32 1.5, %v1307
        %v1309 = vmul.f32 %v1304, %v1308
        %vm1310 = vweird.f32 %v1270
        %vm1311 = vweird.f32 %v1304
        %vm1312 = vmor %vm1310, %vm1311
        %v1313 = vsel %vm1312, %v1304, %v1309
        %v1314 = vrsqrt.pop %v1271
        %v1315 = vmul.f32 %v1314, %v1271
        %v1316 = vmul.f32 %v1315, %v1314
        %v1317 = vmul.f32 0.5, %v1316
        %v1318 = vsub.f32 1.5, %v1317
        %v1319 = vmul.f32 %v1314, %v1318
        %vm1320 = vweird.f32 %v1271
        %vm1321 = vweird.f32 %v1314
        %vm1322 = vmor %vm1320, %vm1321
        %v1323 = vsel %vm1322, %v1314, %v1319
        %v1324 = vrsqrt.pop %v1272
        %v1325 = vmul.f32 %v1324, %v1272
        %v1326 = vmul.f32 %v1325, %v1324
        %v1327 = vmul.f32 0.5, %v1326
        %v1328 = vsub.f32 1.5, %v1327
        %v1329 = vmul.f32 %v1324, %v1328
        %vm1330 = vweird.f32 %v1272
        %vm1331 = vweird.f32 %v1324
        %vm1332 = vmor %vm1330, %vm1331
        %v1333 = vsel %vm1332, %v1324, %v1329
        %v1334 = vrsqrt.pop %v1273
        %v1335 = vmul.f32 %v1334, %v1273
        %v1336 = vmul.f32 %v1335, %v1334
        %v1337 = vmul.f32 0.5, %v1336
        %v1338 = vsub.f32 1.5, %v1337
        %v1339 = vmul.f32 %v1334, %v1338
        %vm1340 = vweird.f32 %v1273
        %vm1341 = vweird.f32 %v1334
        %vm1342 = vmor %vm1340, %vm1341
        %v1343 = vsel %vm1342, %v1334, %v1339
        %v1344 = vrsqrt.pop %v1274
        %v1345 = vmul.f32 %v1344, %v1274
        %v1346 = vmul.f32 %v1345, %v1344
        %v1347 = vmul.f32 0.5, %v1346
        %v1348 = vsub.f32 1.5, %v1347
        %v1349 = vmul.f32 %v1344, %v1348
        %vm1350 = vweird.f32 %v1274
        %vm1351 = vweird.f32 %v1344
        %vm1352 = vmor %vm1350, %vm1351
        %v1353 = vsel %vm1352, %v1344, %v1349
        %v1354 = vrsqrt.pop %v1275
        %v1355 = vmul.f32 %v1354, %v1275
        %v1356 = vmul.f32 %v1355, %v1354
        %v1357 = vmul.f32 0.5, %v1356
        %v1358 = vsub.f32 1.5, %v1357
        %v1359 = vmul.f32 %v1354, %v1358
        %vm1360 = vweird.f32 %v1275
        %vm1361 = vweird.f32 %v1354
        %vm1362 = vmor %vm1360, %vm1361
        %v1363 = vsel %vm1362, %v1354, %v1359
        %v1364 = vrsqrt.pop %v1276
        %v1365 = vmul.f32 %v1364, %v1276
        %v1366 = vmul.f32 %v1365, %v1364
        %v1367 = vmul.f32 0.5, %v1366
        %v1368 = vsub.f32 1.5, %v1367
        %v1369 = vmul.f32 %v1364, %v1368
        %vm1370 = vweird.f32 %v1276
        %vm1371 = vweird.f32 %v1364
        %vm1372 = vmor %vm1370, %vm1371
        %v1373 = vsel %vm1372, %v1364, %v1369
        %v1374 = vrsqrt.pop %v1277
        %v1375 = vmul.f32 %v1374, %v1277
        %v1376 = vmul.f32 %v1375, %v1374
        %v1377 = vmul.f32 0.5, %v1376
        %v1378 = vsub.f32 1.5, %v1377
        %v1379 = vmul.f32 %v1374, %v1378
        %vm1380 = vweird.f32 %v1277
        %vm1381 = vweird.f32 %v1374
        %vm1382 = vmor %vm1380, %vm1381
        %v1383 = vsel %vm1382, %v1374, %v1379
        %v1384 = vrsqrt.pop %v1278
        %v1385 = vmul.f32 %v1384, %v1278
        %v1386 = vmul.f32 %v1385, %v1384
        %v1387 = vmul.f32 0.5, %v1386
        %v1388 = vsub.f32 1.5, %v1387
        %v1389 = vmul.f32 %v1384, %v1388
        %vm1390 = vweird.f32 %v1278
        %vm1391 = vweird.f32 %v1384
        %vm1392 = vmor %vm1390, %vm1391
        %v1393 = vsel %vm1392, %v1384, %v1389
        %v1394 = vrsqrt.pop %v1279
        %v1395 = vmul.f32 %v1394, %v1279
        %v1396 = vmul.f32 %v1395, %v1394
        %v1397 = vmul.f32 0.5, %v1396
        %v1398 = vsub.f32 1.5, %v1397
        %v1399 = vmul.f32 %v1394, %v1398
        %vm1400 = vweird.f32 %v1279
        %vm1401 = vweird.f32 %v1394
        %vm1402 = vmor %vm1400, %vm1401
        %v1403 = vsel %vm1402, %v1394, %v1399
        %v1404 = vrsqrt.pop %v1280
        %v1405 = vmul.f32 %v1404, %v1280
        %v1406 = vmul.f32 %v1405, %v1404
        %v1407 = vmul.f32 0.5, %v1406
        %v1408 = vsub.f32 1.5, %v1407
        %v1409 = vmul.f32 %v1404, %v1408
        %vm1410 = vweird.f32 %v1280
        %vm1411 = vweird.f32 %v1404
        %vm1412 = vmor %vm1410, %vm1411
        %v1413 = vsel %vm1412, %v1404, %v1409
        %v1414 = vrsqrt.pop %v1281
        %v1415 = vmul.f32 %v1414, %v1281
        %v1416 = vmul.f32 %v1415, %v1414
        %v1417 = vmul.f32 0.5, %v1416
        %v1418 = vsub.f32 1.5, %v1417
        %v1419 = vmul.f32 %v1414, %v1418
        %vm1420 = vweird.f32 %v1281
        %vm1421 = vweird.f32 %v1414
        %vm1422 = vmor %vm1420, %vm1421
        %v1423 = vsel %vm1422, %v1414, %v1419
        %v1424 = vrsqrt.pop %v1282
        %v1425 = vmul.f32 %v1424, %v1282
        %v1426 = vmul.f32 %v1425, %v1424
        %v1427 = vmul.f32 0.5, %v1426
        %v1428 = vsub.f32 1.5, %v1427
        %v1429 = vmul.f32 %v1424, %v1428
        %vm1430 = vweird.f32 %v1282
        %vm1431 = vweird.f32 %v1424
        %vm1432 = vmor %vm1430, %vm1431
        %v1433 = vsel %vm1432, %v1424, %v1429
        %v1434 = vrsqrt.pop %v1283
        %v1435 = vmul.f32 %v1434, %v1283
        %v1436 = vmul.f32 %v1435, %v1434
        %v1437 = vmul.f32 0.5, %v1436
        %v1438 = vsub.f32 1.5, %v1437
        %v1439 = vmul.f32 %v1434, %v1438
        %vm1440 = vweird.f32 %v1283
        %vm1441 = vweird.f32 %v1434
        %vm1442 = vmor %vm1440, %vm1441
        %v1443 = vsel %vm1442, %v1434, %v1439
        %v1444 = vmul.f32 %v1172, %v1293
        %v1445 = vmul.f32 %v1173, %v1303
        %v1446 = vmul.f32 %v1174, %v1313
        %v1447 = vmul.f32 %v1175, %v1323
        %v1448 = vmul.f32 %v1176, %v1333
        %v1449 = vmul.f32 %v1177, %v1343
        %v1450 = vmul.f32 %v1178, %v1353
        %v1451 = vmul.f32 %v1179, %v1363
        %v1452 = vmul.f32 %v1180, %v1373
        %v1453 = vmul.f32 %v1181, %v1383
        %v1454 = vmul.f32 %v1182, %v1393
        %v1455 = vmul.f32 %v1183, %v1403
        %v1456 = vmul.f32 %v1184, %v1413
        %v1457 = vmul.f32 %v1185, %v1423
        %v1458 = vmul.f32 %v1186, %v1433
        %v1459 = vmul.f32 %v1187, %v1443
        %v1460 = vld [vmem:[#allocation6] sm:$0x1]
        %v1462 = vperm.slane %v1460, 0
        %v1464 = vmul.f32 %v1444, %v1462
        %v1465 = vmul.f32 %v1445, %v1462
        %v1466 = vmul.f32 %v1446, %v1462
        %v1467 = vmul.f32 %v1447, %v1462
        %v1468 = vmul.f32 %v1448, %v1462
        %v1469 = vmul.f32 %v1449, %v1462
        %v1470 = vmul.f32 %v1450, %v1462
        %v1471 = vmul.f32 %v1451, %v1462
        %v1472 = vmul.f32 %v1452, %v1462
        %v1473 = vmul.f32 %v1453, %v1462
        %v1474 = vmul.f32 %v1454, %v1462
        %v1475 = vmul.f32 %v1455, %v1462
        %v1476 = vmul.f32 %v1456, %v1462
        %v1477 = vmul.f32 %v1457, %v1462
        %v1478 = vmul.f32 %v1458, %v1462
        %v1479 = vmul.f32 %v1459, %v1462
        %v1480 = vld [vmem:[#allocation7] sm:$0x1]
        %v1482 = vperm.slane %v1480, 0
        %v1484 = vadd.f32 %v1464, %v1482
        %v1485 = vadd.f32 %v1465, %v1482
        %v1486 = vadd.f32 %v1466, %v1482
        %v1487 = vadd.f32 %v1467, %v1482
        %v1488 = vadd.f32 %v1468, %v1482
        %v1489 = vadd.f32 %v1469, %v1482
        %v1490 = vadd.f32 %v1470, %v1482
        %v1491 = vadd.f32 %v1471, %v1482
        %v1492 = vadd.f32 %v1472, %v1482
        %v1493 = vadd.f32 %v1473, %v1482
        %v1494 = vadd.f32 %v1474, %v1482
        %v1495 = vadd.f32 %v1475, %v1482
        %v1496 = vadd.f32 %v1476, %v1482
        %v1497 = vadd.f32 %v1477, %v1482
        %v1498 = vadd.f32 %v1478, %v1482
        %v1499 = vadd.f32 %v1479, %v1482
        %1500 = vst.msk [vmem:[%s323] sm:$0xff] %vm347, %v1484
        %1501 = vst.msk [vmem:[%s323 + $0x8] sm:$0xff] %vm347, %v1485
        %1502 = vst.msk [vmem:[%s323 + $0x10] sm:$0xff] %vm347, %v1486
        %1503 = vst.msk [vmem:[%s323 + $0x18] sm:$0xff] %vm347, %v1487
        %1504 = vst.msk [vmem:[%s323 + $0x20] sm:$0xff] %vm347, %v1488
        %1505 = vst.msk [vmem:[%s323 + $0x28] sm:$0xff] %vm347, %v1489
        %1506 = vst.msk [vmem:[%s323 + $0x30] sm:$0xff] %vm347, %v1490
        %1507 = vst.msk [vmem:[%s323 + $0x38] sm:$0xff] %vm347, %v1491
        %1508 = vst.msk [vmem:[%s323 + $0x40] sm:$0xff] %vm347, %v1492
        %1509 = vst.msk [vmem:[%s323 + $0x48] sm:$0xff] %vm347, %v1493
        %1510 = vst.msk [vmem:[%s323 + $0x50] sm:$0xff] %vm347, %v1494
        %1511 = vst.msk [vmem:[%s323 + $0x58] sm:$0xff] %vm347, %v1495
        %1512 = vst.msk [vmem:[%s323 + $0x60] sm:$0xff] %vm347, %v1496
        %1513 = vst.msk [vmem:[%s323 + $0x68] sm:$0xff] %vm347, %v1497
        %1514 = vst.msk [vmem:[%s323 + $0x70] sm:$0xff] %vm347, %v1498
        %1515 = vst.msk [vmem:[%s323 + $0x78] sm:$0xff] %vm347, %v1499
        %s1516 = smul.u32 16, %s24
        %p1517 = scmp.lt.s32.totalorder %s23, 1
        %s1518 = scalar_select %p1517, %s23, 1
        %p1519 = scmp.lt.s32.totalorder %s1516, 15
        %s1520 = scalar_select %p1519, %s1516, 15
        %s1521 = smul.addr %s1518, 16
        %s1522 = sadd.s32 %s1520, %s1521
        %s1523 = smul.addr %s1522, 8
        %s1524 = scalar_lea.vmem %s5, %s1523
        // Predicated region
        $region57: #{atom_pair_projection.2} parent=39 // pred_check
          %p1525 = pneg %p163
        $region58: #{atom_pair_projection.2} parent=39 // pred_check_branch
          %1527 = sbr.rel (%p1525) target = $region60
        $region59: #{atom_pair_projection.2} parent=39 // pred_region
          %s1528 = smul.u32 16, %s24
        $region60: #{atom_pair_projection.2} parent=39 // pred_fallthru
          _
      $region40: #{atom_pair_projection.2} parent=5 // pred_fallthru
        _
      %p1529 = scmp.le.s32.totalorder 2, %s14
      // Predicated region
      $region61: #{atom_pair_projection.2} parent=5 // pred_check
        %p1530 = pneg %p1529
      $region62: #{atom_pair_projection.2} parent=5 // pred_check_branch
        %1532 = sbr.rel (%p1530) target = $region64
      $region63: #{atom_pair_projection.2} parent=5 // pred_region
        %s1533 = ssub.s32 %s14, 2
        // Predicated region
        $region65: #{atom_pair_projection.2} parent=63 // pred_check
          %p1534 = pneg %p169
        $region66: #{atom_pair_projection.2} parent=63 // pred_check_branch
          %1536 = sbr.rel (%p1534) target = $region68
        $region67: #{atom_pair_projection.2} parent=63 // pred_region
          %s1537 = smul.u32 16, %s26
          %p1538 = scmp.lt.s32.totalorder %s25, 1
          %s1539 = scalar_select %p1538, %s25, 1
          %p1540 = scmp.lt.s32.totalorder %s1537, 15
          %s1541 = scalar_select %p1540, %s1537, 15
          %s1542 = smul.addr %s1539, 16
          %s1543 = sadd.s32 %s1541, %s1542
          %s1544 = smul.addr %s1543, 8
          %s1545 = scalar_lea.vmem %s5, %s1544
        $region68: #{atom_pair_projection.2} parent=63 // pred_fallthru
          _
      $region64: #{atom_pair_projection.2} parent=5 // pred_fallthru
        _
    $region6: #{atom_pair_projection.2} parent=1 // loop_footer
      %s18 = sadd.s32 1, %s14
    $region7: #{atom_pair_projection.2} parent=1 // loop_footer_branch
      %13 = sbr.rel target = $region3
    $region8: #{atom_pair_projection.2} parent=1 // loop_exit
      _
    %1546 = vsyncpa [#allocation3], 1
    %s1547 = scalar_lea.sflag [#allocation3], 1
    %1548 = vsyncpa %s1547, 1
    %1549 = vsyncpa [#allocation5], 1
    %1550 = vsyncpa [#allocation8], 1

// kernel: atom_pair_projection.3
$region0: #{atom_pair_projection.3}
  #allocation0 [shape = 'u32[]', space=smem, size = 0x4, offset = 0x4, fixed_abs, tag = 'smem constant byte address 0x4 - core index']
  #allocation1 [shape = 'u32[72,128]{1,0:T(1,128)}', space=vmem, size = 0x9000, scoped, tag = 'internal scratch']
  %s0 = inlined_call_operand.vmem [shape: f32[2,128,9], index: 0, kind: input, shape index: {}]
  %s1 = inlined_call_operand.vmem [shape: f32[2,9,4096], index: 1, kind: input, shape index: {}]
  %s2 = inlined_call_operand.vmem [shape: f32[2,128,4096], index: 2, kind: output, shape index: {}]
  %s3 = sld [smem:[#allocation0]]
  $region41: #{atom_pair_projection.3} parent=0
    _
  %s5 = ssub.s32 1, %s3
  %s6 = scalar_select 0, %s5, %s3
  loop: start=0, step=1, limit=4
  $region2: #{atom_pair_projection.3} parent=0 // loop_pre_header
    _
  $region3: #{atom_pair_projection.3} parent=0 // loop_header
    %s8 = sphi 0, %s12
    %p9 = scmp.ge.s32.totalorder %s8, 4
    %s15 = sphi 0, %s34
    %s16 = sphi 0, %s30
    %s17 = sphi 0, %s26
    %s18 = sphi 0, %s15
    %s19 = sphi 0, %s16
    %s20 = sphi 0, %s17
    %s21 = sphi 0, %s18
    %s22 = sphi 0, %s19
    %s23 = sphi 0, %s20
    %s39 = sphi 0, %s41
    %s42 = sphi 0, %s39
    %s43 = sphi 0, %s42
    %s59 = sphi 0, %s43
    %s67 = sphi 0, %s69
    %s70 = sphi 0, %s67
    %s71 = sphi 0, %s70
    %s87 = sphi 0, %s71
    %s97 = sphi 0, %s99
    %s100 = sphi 0, %s97
    %s101 = sphi 0, %s100
    %s117 = sphi 0, %s101
  $region4: #{atom_pair_projection.3} parent=0 // loop_header_branch
    %11 = sbr.rel (%p9) target = $region8
  $region5: #{atom_pair_projection.3} parent=0 // loop_body
    %s13 = ssub.s32 %s8, 1
    %s14 = ssub.s32 %s8, 2
    %s24 = sadd.s32 1, %s17
    %p25 = scmp.ge.s32.totalorder %s24, 1
    %s26 = scalar_select %p25, 0, %s24
    %s27 = sadd.s32 1, %s16
    %s28 = scalar_select %p25, %s27, %s16
    %p29 = scmp.ge.s32.totalorder %s28, 1
    %s30 = scalar_select %p29, 0, %s28
    %s31 = sadd.s32 1, %s15
    %s32 = scalar_select %p29, %s31, %s15
    %p33 = scmp.ge.s32.totalorder %s32, 2
    %s34 = scalar_select %p33, 0, %s32
    %s35 = ssub.s32 %s15, %s34
    %s36 = ssub.s32 %s17, %s26
    %s37 = sor.u32 %s35, %s36
    %p38 = scmp.eq.s32.totalorder %s37, 0
    %s40 = sadd.s32 %s39, 1
    %s41 = scalar_select %p38, %s39, %s40
    %p44 = pneg %p38
    %p45 = scmp.eq.s32.totalorder %s8, 1
    %p46 = por %p44, %p45
    %p47 = scmp.ne.s32.totalorder %s39, %s42
    %p48 = scmp.eq.s32.totalorder %s8, 0
    %p49 = por %p47, %p48
    %p50 = scmp.ne.s32.totalorder %s39, %s42
    %p51 = scmp.eq.s32.totalorder %s13, 1
    %p52 = por %p50, %p51
    %p53 = scmp.ne.s32.totalorder %s42, %s43
    %p54 = scmp.eq.s32.totalorder %s13, 0
    %p55 = por %p53, %p54
    %p56 = scmp.ne.s32.totalorder %s42, %s43
    %p57 = scmp.eq.s32.totalorder %s14, 1
    %p58 = por %p56, %p57
    %p60 = scmp.ne.s32.totalorder %s43, %s59
    %p61 = scmp.eq.s32.totalorder %s14, 0
    %p62 = por %p60, %p61
    %s63 = ssub.s32 %s15, %s34
    %s64 = ssub.s32 %s16, %s30
    %s65 = sor.u32 %s63, %s64
    %p66 = scmp.eq.s32.totalorder %s65, 0
    %s68 = sadd.s32 %s67, 1
    %s69 = scalar_select %p66, %s67, %s68
    %p72 = pneg %p66
    %p73 = scmp.eq.s32.totalorder %s8, 1
    %p74 = por %p72, %p73
    %p75 = scmp.ne.s32.totalorder %s67, %s70
    %p76 = scmp.eq.s32.totalorder %s8, 0
    %p77 = por %p75, %p76
    %p78 = scmp.ne.s32.totalorder %s67, %s70
    %p79 = scmp.eq.s32.totalorder %s13, 1
    %p80 = por %p78, %p79
    %p81 = scmp.ne.s32.totalorder %s70, %s71
    %p82 = scmp.eq.s32.totalorder %s13, 0
    %p83 = por %p81, %p82
    %p84 = scmp.ne.s32.totalorder %s70, %s71
    %p85 = scmp.eq.s32.totalorder %s14, 1
    %p86 = por %p84, %p85
    %p88 = scmp.ne.s32.totalorder %s71, %s87
    %p89 = scmp.eq.s32.totalorder %s14, 0
    %p90 = por %p88, %p89
    %s91 = ssub.s32 %s15, %s34
    %s92 = ssub.s32 %s17, %s26
    %s93 = sor.u32 %s91, %s92
    %s94 = ssub.s32 %s16, %s30
    %s95 = sor.u32 %s93, %s94
    %p96 = scmp.eq.s32.totalorder %s95, 0
    %s98 = sadd.s32 %s97, 1
    %s99 = scalar_select %p96, %s97, %s98
    %p102 = pneg %p96
    %p103 = scmp.eq.s32.totalorder %s8, 1
    %p104 = por %p102, %p103
    %p105 = scmp.ne.s32.totalorder %s97, %s100
    %p106 = scmp.eq.s32.totalorder %s8, 0
    %p107 = por %p105, %p106
    %p108 = scmp.ne.s32.totalorder %s97, %s100
    %p109 = scmp.eq.s32.totalorder %s13, 1
    %p110 = por %p108, %p109
    %p111 = scmp.ne.s32.totalorder %s100, %s101
    %p112 = scmp.eq.s32.totalorder %s13, 0
    %p113 = por %p111, %p112
    %p114 = scmp.ne.s32.totalorder %s100, %s101
    %p115 = scmp.eq.s32.totalorder %s14, 1
    %p116 = por %p114, %p115
    %p118 = scmp.ne.s32.totalorder %s101, %s117
    %p119 = scmp.eq.s32.totalorder %s14, 0
    %p120 = por %p118, %p119
    %p121 = scmp.le.s32.totalorder 1, %s8
    %p122 = scmp.lt.s32.totalorder %s8, 3
    %p123 = pnand %p121, %p122
    %p124 = pneg %p123
    // Predicated region
    $region9: #{atom_pair_projection.3} parent=5 // pred_check
      _
    $region10: #{atom_pair_projection.3} parent=5 // pred_check_branch
      %126 = sbr.rel (%p123) target = $region12
    $region11: #{atom_pair_projection.3} parent=5 // pred_region
      %s127 = ssub.s32 %s8, 1
    $region12: #{atom_pair_projection.3} parent=5 // pred_fallthru
      _
    %p128 = scmp.lt.s32.totalorder %s8, 2
    // Predicated region
    $region13: #{atom_pair_projection.3} parent=5 // pred_check
      %p129 = pneg %p128
    $region14: #{atom_pair_projection.3} parent=5 // pred_check_branch
      %131 = sbr.rel (%p129) target = $region16
    $region15: #{atom_pair_projection.3} parent=5 // pred_region
      // Predicated region
      $region17: #{atom_pair_projection.3} parent=15 // pred_check
        %p132 = pneg %p49
      $region18: #{atom_pair_projection.3} parent=15 // pred_check_branch
        %134 = sbr.rel (%p132) target = $region20
      $region19: #{atom_pair_projection.3} parent=15 // pred_region
        %s135 = smul.u32 16, %s17
        %p136 = scmp.lt.s32.totalorder %s15, 1
        %s137 = scalar_select %p136, %s15, 1
        %p138 = scmp.lt.s32.totalorder %s135, 15
        %s139 = scalar_select %p138, %s135, 15
        %s140 = smul.addr %s137, 16
        %s141 = sadd.s32 %s139, %s140
        %s142 = smul.addr %s141, 8
        %s143 = scalar_lea.vmem %s0, %s142
        %s144 = smul.u32 16, %s17
      $region20: #{atom_pair_projection.3} parent=15 // pred_fallthru
        _
      // Predicated region
      $region21: #{atom_pair_projection.3} parent=15 // pred_check
        %p145 = pneg %p77
      $region22: #{atom_pair_projection.3} parent=15 // pred_check_branch
        %147 = sbr.rel (%p145) target = $region24
      $region23: #{atom_pair_projection.3} parent=15 // pred_region
        %s148 = smul.u32 32, %s16
        %p149 = scmp.lt.s32.totalorder %s15, 1
        %s150 = scalar_select %p149, %s15, 1
        %p151 = scmp.lt.s32.totalorder %s148, 31
        %s152 = scalar_select %p151, %s148, 31
        %s153 = smul.addr %s150, 64
        %s154 = sadd.s32 %s152, %s153
        %s155 = smul.addr %s154, 8
        %s156 = scalar_lea.vmem %s1, %s155
        %s157 = smul.u32 32, %s16
      $region24: #{atom_pair_projection.3} parent=15 // pred_fallthru
        _
    $region16: #{atom_pair_projection.3} parent=5 // pred_fallthru
      _
    %p158 = scmp.le.s32.totalorder 1, %s8
    %p159 = scmp.lt.s32.totalorder %s8, 3
    %p160 = pnand %p158, %p159
    %p161 = pneg %p160
    // Predicated region
    $region25: #{atom_pair_projection.3} parent=5 // pred_check
      _
    $region26: #{atom_pair_projection.3} parent=5 // pred_check_branch
      %163 = sbr.rel (%p160) target = $region28
    $region27: #{atom_pair_projection.3} parent=5 // pred_region
      %s164 = ssub.s32 %s8, 1
      %s165 = smul.u32 16, %s20
      %p166 = scmp.lt.s32.totalorder %s18, 1
      %s167 = scalar_select %p166, %s18, 1
      %p168 = scmp.lt.s32.totalorder %s165, 15
      %s169 = scalar_select %p168, %s165, 15
      %s170 = smul.addr %s167, 16
      %s171 = sadd.s32 %s169, %s170
      %s172 = smul.addr %s171, 8
      %s173 = scalar_lea.vmem %s0, %s172
      %p174 = pneg %p55
      %p175 = pneg %p52
      %s176 = smul.u32 32, %s19
      %p177 = scmp.lt.s32.totalorder %s18, 1
      %s178 = scalar_select %p177, %s18, 1
      %p179 = scmp.lt.s32.totalorder %s176, 31
      %s180 = scalar_select %p179, %s176, 31
      %s181 = smul.addr %s178, 64
      %s182 = sadd.s32 %s180, %s181
      %s183 = smul.addr %s182, 8
      %s184 = scalar_lea.vmem %s1, %s183
      %p185 = pneg %p83
      %p186 = pneg %p80
      %p187 = pneg %p113
      %p188 = pneg %p110
      %s189 = smul.u32 16, %s20
      %s190 = smul.u32 32, %s19
      %p191 = scmp.lt.s32.totalorder %s18, 1
      %s192 = scalar_select %p191, %s18, 1
      %p193 = scmp.lt.s32.totalorder %s189, 15
      %s194 = scalar_select %p193, %s189, 15
      %p195 = scmp.lt.s32.totalorder %s190, 31
      %s196 = scalar_select %p195, %s190, 31
      %s197 = smul.addr %s194, 32
      %s198 = sadd.s32 %s196, %s197
      %s199 = smul.addr %s192, 512
      %s200 = sadd.s32 %s198, %s199
      %s201 = smul.addr %s200, 8
      %s202 = scalar_lea.vmem %s2, %s201
      %s203 = smul.u32 16, %s20
      %p204 = scmp.lt.s32.totalorder %s18, 1
      %s205 = scalar_select %p204, %s18, 1
      %p206 = scmp.lt.s32.totalorder %s203, 15
      %s207 = scalar_select %p206, %s203, 15
      %s208 = smul.addr %s205, 16
      %s209 = sadd.s32 %s207, %s208
      %s210 = smul.addr %s209, 8
      %s211 = scalar_lea.vmem %s0, %s210
      %s212 = smul.u32 16, %s20
      %s213 = smul.u32 32, %s19
      %p214 = scmp.lt.s32.totalorder %s18, 1
      %s215 = scalar_select %p214, %s18, 1
      %p216 = scmp.lt.s32.totalorder %s213, 31
      %s217 = scalar_select %p216, %s213, 31
      %s218 = smul.addr %s215, 64
      %s219 = sadd.s32 %s217, %s218
      %s220 = smul.addr %s219, 8
      %s221 = scalar_lea.vmem %s1, %s220
      %s222 = smul.u32 32, %s19
      %s223 = smul.u32 16, %s20
      %s224 = smul.u32 32, %s19
      %p225 = scmp.lt.s32.totalorder %s18, 1
      %s226 = scalar_select %p225, %s18, 1
      %p227 = scmp.lt.s32.totalorder %s223, 15
      %s228 = scalar_select %p227, %s223, 15
      %p229 = scmp.lt.s32.totalorder %s224, 31
      %s230 = scalar_select %p229, %s224, 31
      %s231 = smul.addr %s228, 32
      %s232 = sadd.s32 %s230, %s231
      %s233 = smul.addr %s226, 512
      %s234 = sadd.s32 %s232, %s233
      %s235 = smul.addr %s234, 8
      %s236 = scalar_lea.vmem %s2, %s235
      %s237 = smul.u32 16, %s20
      %s238 = smul.u32 32, %s19
      %v239 = vld [vmem:[%s211] sm:$0xff]
      %v240 = vld [vmem:[%s211 + $0x8] sm:$0xff]
      %v241 = vld [vmem:[%s211 + $0x10] sm:$0xff]
      %v242 = vld [vmem:[%s211 + $0x18] sm:$0xff]
      %v243 = vld [vmem:[%s211 + $0x20] sm:$0xff]
      %v244 = vld [vmem:[%s211 + $0x28] sm:$0xff]
      %v245 = vld [vmem:[%s211 + $0x30] sm:$0xff]
      %v246 = vld [vmem:[%s211 + $0x38] sm:$0xff]
      %v247 = vld [vmem:[%s211 + $0x40] sm:$0xff]
      %v248 = vld [vmem:[%s211 + $0x48] sm:$0xff]
      %v249 = vld [vmem:[%s211 + $0x50] sm:$0xff]
      %v250 = vld [vmem:[%s211 + $0x58] sm:$0xff]
      %v251 = vld [vmem:[%s211 + $0x60] sm:$0xff]
      %v252 = vld [vmem:[%s211 + $0x68] sm:$0xff]
      %v253 = vld [vmem:[%s211 + $0x70] sm:$0xff]
      %v254 = vld [vmem:[%s211 + $0x78] sm:$0xff]
      %v255 = vld [vmem:[%s221] sm:$0xff]
      %v256 = vld [vmem:[%s221 + $0x8] sm:$0xff]
      %v257 = vld [vmem:[%s221 + $0x10] sm:$0xff]
      %v258 = vld [vmem:[%s221 + $0x18] sm:$0xff]
      %v259 = vld [vmem:[%s221 + $0x20] sm:$0xff]
      %v260 = vld [vmem:[%s221 + $0x28] sm:$0xff]
      %v261 = vld [vmem:[%s221 + $0x30] sm:$0xff]
      %v262 = vld [vmem:[%s221 + $0x38] sm:$0xff]
      %v263 = vld [vmem:[%s221 + $0x40] sm:$0xff]
      %v264 = vld [vmem:[%s221 + $0x48] sm:$0xff]
      %v265 = vld [vmem:[%s221 + $0x50] sm:$0xff]
      %v266 = vld [vmem:[%s221 + $0x58] sm:$0xff]
      %v267 = vld [vmem:[%s221 + $0x60] sm:$0xff]
      %v268 = vld [vmem:[%s221 + $0x68] sm:$0xff]
      %v269 = vld [vmem:[%s221 + $0x70] sm:$0xff]
      %v270 = vld [vmem:[%s221 + $0x78] sm:$0xff]
      %v271 = vld [vmem:[%s221 + $0x80] sm:$0xff]
      %v272 = vld [vmem:[%s221 + $0x88] sm:$0xff]
      %v273 = vld [vmem:[%s221 + $0x90] sm:$0xff]
      %v274 = vld [vmem:[%s221 + $0x98] sm:$0xff]
      %v275 = vld [vmem:[%s221 + $0xa0] sm:$0xff]
      %v276 = vld [vmem:[%s221 + $0xa8] sm:$0xff]
      %v277 = vld [vmem:[%s221 + $0xb0] sm:$0xff]
      %v278 = vld [vmem:[%s221 + $0xb8] sm:$0xff]
      %v279 = vld [vmem:[%s221 + $0xc0] sm:$0xff]
      %v280 = vld [vmem:[%s221 + $0xc8] sm:$0xff]
      %v281 = vld [vmem:[%s221 + $0xd0] sm:$0xff]
      %v282 = vld [vmem:[%s221 + $0xd8] sm:$0xff]
      %v283 = vld [vmem:[%s221 + $0xe0] sm:$0xff]
      %v284 = vld [vmem:[%s221 + $0xe8] sm:$0xff]
      %v285 = vld [vmem:[%s221 + $0xf0] sm:$0xff]
      %v286 = vld [vmem:[%s221 + $0xf8] sm:$0xff]
      %v287 = vld [vmem:[%s221 + $0x100] sm:$0x1]
      %v288 = vld [vmem:[%s221 + $0x108] sm:$0x1]
      %v289 = vld [vmem:[%s221 + $0x110] sm:$0x1]
      %v290 = vld [vmem:[%s221 + $0x118] sm:$0x1]
      %v291 = vld [vmem:[%s221 + $0x120] sm:$0x1]
      %v292 = vld [vmem:[%s221 + $0x128] sm:$0x1]
      %v293 = vld [vmem:[%s221 + $0x130] sm:$0x1]
      %v294 = vld [vmem:[%s221 + $0x138] sm:$0x1]
      %v295 = vld [vmem:[%s221 + $0x140] sm:$0x1]
      %v296 = vld [vmem:[%s221 + $0x148] sm:$0x1]
      %v297 = vld [vmem:[%s221 + $0x150] sm:$0x1]
      %v298 = vld [vmem:[%s221 + $0x158] sm:$0x1]
      %v299 = vld [vmem:[%s221 + $0x160] sm:$0x1]
      %v300 = vld [vmem:[%s221 + $0x168] sm:$0x1]
      %v301 = vld [vmem:[%s221 + $0x170] sm:$0x1]
      %v302 = vld [vmem:[%s221 + $0x178] sm:$0x1]
      %v303 = vld [vmem:[%s221 + $0x180] sm:$0x1]
      %v304 = vld [vmem:[%s221 + $0x188] sm:$0x1]
      %v305 = vld [vmem:[%s221 + $0x190] sm:$0x1]
      %v306 = vld [vmem:[%s221 + $0x198] sm:$0x1]
      %v307 = vld [vmem:[%s221 + $0x1a0] sm:$0x1]
      %v308 = vld [vmem:[%s221 + $0x1a8] sm:$0x1]
      %v309 = vld [vmem:[%s221 + $0x1b0] sm:$0x1]
      %v310 = vld [vmem:[%s221 + $0x1b8] sm:$0x1]
      %v311 = vld [vmem:[%s221 + $0x1c0] sm:$0x1]
      %v312 = vld [vmem:[%s221 + $0x1c8] sm:$0x1]
      %v313 = vld [vmem:[%s221 + $0x1d0] sm:$0x1]
      %v314 = vld [vmem:[%s221 + $0x1d8] sm:$0x1]
      %v315 = vld [vmem:[%s221 + $0x1e0] sm:$0x1]
      %v316 = vld [vmem:[%s221 + $0x1e8] sm:$0x1]
      %v317 = vld [vmem:[%s221 + $0x1f0] sm:$0x1]
      %v318 = vld [vmem:[%s221 + $0x1f8] sm:$0x1]
      %vm319 = vcmask 72704
      %v321 = vsel %vm319, %v239, 0
      %v324 = vsel %vm319, %v240, 0
      %v327 = vsel %vm319, %v241, 0
      %v330 = vsel %vm319, %v242, 0
      %v333 = vsel %vm319, %v243, 0
      %v336 = vsel %vm319, %v244, 0
      %v339 = vsel %vm319, %v245, 0
      %v342 = vsel %vm319, %v246, 0
      %v345 = vsel %vm319, %v247, 0
      %v348 = vsel %vm319, %v248, 0
      %v351 = vsel %vm319, %v249, 0
      %v354 = vsel %vm319, %v250, 0
      %v357 = vsel %vm319, %v251, 0
      %v360 = vsel %vm319, %v252, 0
      %v363 = vsel %vm319, %v253, 0
      %v366 = vsel %vm319, %v254, 0
      %vm368 = vcmask 1040384
      %v370 = vsel %vm368, %v287, 0
      %v373 = vsel %vm368, %v288, 0
      %v376 = vsel %vm368, %v289, 0
      %v379 = vsel %vm368, %v290, 0
      %v382 = vsel %vm368, %v291, 0
      %v385 = vsel %vm368, %v292, 0
      %v388 = vsel %vm368, %v293, 0
      %v391 = vsel %vm368, %v294, 0
      %v394 = vsel %vm368, %v295, 0
      %v397 = vsel %vm368, %v296, 0
      %v400 = vsel %vm368, %v297, 0
      %v403 = vsel %vm368, %v298, 0
      %v406 = vsel %vm368, %v299, 0
      %v409 = vsel %vm368, %v300, 0
      %v412 = vsel %vm368, %v301, 0
      %v415 = vsel %vm368, %v302, 0
      %v418 = vsel %vm368, %v303, 0
      %v421 = vsel %vm368, %v304, 0
      %v424 = vsel %vm368, %v305, 0
      %v427 = vsel %vm368, %v306, 0
      %v430 = vsel %vm368, %v307, 0
      %v433 = vsel %vm368, %v308, 0
      %v436 = vsel %vm368, %v309, 0
      %v439 = vsel %vm368, %v310, 0
      %v442 = vsel %vm368, %v311, 0
      %v445 = vsel %vm368, %v312, 0
      %v448 = vsel %vm368, %v313, 0
      %v451 = vsel %vm368, %v314, 0
      %v454 = vsel %vm368, %v315, 0
      %v457 = vsel %vm368, %v316, 0
      %v460 = vsel %vm368, %v317, 0
      %v463 = vsel %vm368, %v318, 0
      %465 = vmatpush.msra.mxu0 0.0
      %466 = vmatpush.msra.mxu0 0.0
      %467 = vmatpush.msra.mxu0 0.0
      %468 = vmatpush.msra.mxu0 0.0
      %469 = vmatpush.msra.mxu0 0.0
      %470 = vmatpush.msra.mxu0 0.0
      %471 = vmatpush.msra.mxu0 0.0
      %472 = vmatpush.msra.mxu0 0.0
      %473 = vmatpush.msra.mxu0 0.0
      %474 = vmatpush.msra.mxu0 0.0
      %475 = vmatpush.msra.mxu0 0.0
      %476 = vmatpush.msra.mxu0 0.0
      %477 = vmatpush.msra.mxu0 0.0
      %478 = vmatpush.msra.mxu0 0.0
      %479 = vmatpush.msra.mxu0 %v370
      %480 = vmatpush.msra.mxu0 %v255
      %481 = vmatmul.f32.gmra.mxu0 %v321
      %v482 = vpop.f32.mrf.mxu0
      %v483 = vadd.f32 0.0, %v482
      %484 = vmatmul.f32.gmra.mxu0 %v324
      %v485 = vpop.f32.mrf.mxu0
      %v486 = vadd.f32 0.0, %v485
      %487 = vmatmul.f32.gmra.mxu0 %v327
      %v488 = vpop.f32.mrf.mxu0
      %v489 = vadd.f32 0.0, %v488
      %490 = vmatmul.f32.gmra.mxu0 %v330
      %v491 = vpop.f32.mrf.mxu0
      %v492 = vadd.f32 0.0, %v491
      %493 = vmatmul.f32.gmra.mxu0 %v333
      %v494 = vpop.f32.mrf.mxu0
      %v495 = vadd.f32 0.0, %v494
      %496 = vmatmul.f32.gmra.mxu0 %v336
      %v497 = vpop.f32.mrf.mxu0
      %v498 = vadd.f32 0.0, %v497
      %499 = vmatmul.f32.gmra.mxu0 %v339
      %v500 = vpop.f32.mrf.mxu0
      %v501 = vadd.f32 0.0, %v500
      %502 = vmatmul.f32.gmra.mxu0 %v342
      %v503 = vpop.f32.mrf.mxu0
      %v504 = vadd.f32 0.0, %v503
      %505 = vmatmul.f32.gmra.mxu0 %v345
      %v506 = vpop.f32.mrf.mxu0
      %v507 = vadd.f32 0.0, %v506
      %508 = vmatmul.f32.gmra.mxu0 %v348
      %v509 = vpop.f32.mrf.mxu0
      %v510 = vadd.f32 0.0, %v509
      %511 = vmatmul.f32.gmra.mxu0 %v351
      %v512 = vpop.f32.mrf.mxu0
      %v513 = vadd.f32 0.0, %v512
      %514 = vmatmul.f32.gmra.mxu0 %v354
      %v515 = vpop.f32.mrf.mxu0
      %v516 = vadd.f32 0.0, %v515
      %517 = vmatmul.f32.gmra.mxu0 %v357
      %v518 = vpop.f32.mrf.mxu0
      %v519 = vadd.f32 0.0, %v518
      %520 = vmatmul.f32.gmra.mxu0 %v360
      %v521 = vpop.f32.mrf.mxu0
      %v522 = vadd.f32 0.0, %v521
      %523 = vmatmul.f32.gmra.mxu0 %v363
      %v524 = vpop.f32.mrf.mxu0
      %v525 = vadd.f32 0.0, %v524
      %526 = vmatmul.f32.gmra.mxu0 %v366
      %v527 = vpop.f32.mrf.mxu0
      %v528 = vadd.f32 0.0, %v527
      %529 = vdwg.mxu0
      %530 = vmatpush.msra.mxu0 0.0
      %531 = vmatpush.msra.mxu0 0.0
      %532 = vmatpush.msra.mxu0 0.0
      %533 = vmatpush.msra.mxu0 0.0
      %534 = vmatpush.msra.mxu0 0.0
      %535 = vmatpush.msra.mxu0 0.0
      %536 = vmatpush.msra.mxu0 0.0
      %537 = vmatpush.msra.mxu0 0.0
      %538 = vmatpush.msra.mxu0 0.0
      %539 = vmatpush.msra.mxu0 0.0
      %540 = vmatpush.msra.mxu0 0.0
      %541 = vmatpush.msra.mxu0 0.0
      %542 = vmatpush.msra.mxu0 0.0
      %543 = vmatpush.msra.mxu0 0.0
      %544 = vmatpush.msra.mxu0 %v373
      %545 = vmatpush.msra.mxu0 %v256
      %546 = vmatmul.f32.gmra.mxu0 %v321
      %v547 = vpop.f32.mrf.mxu0
      %v548 = vadd.f32 0.0, %v547
      %549 = vmatmul.f32.gmra.mxu0 %v324
      %v550 = vpop.f32.mrf.mxu0
      %v551 = vadd.f32 0.0, %v550
      %552 = vmatmul.f32.gmra.mxu0 %v327
      %v553 = vpop.f32.mrf.mxu0
      %v554 = vadd.f32 0.0, %v553
      %555 = vmatmul.f32.gmra.mxu0 %v330
      %v556 = vpop.f32.mrf.mxu0
      %v557 = vadd.f32 0.0, %v556
      %558 = vmatmul.f32.gmra.mxu0 %v333
      %v559 = vpop.f32.mrf.mxu0
      %v560 = vadd.f32 0.0, %v559
      %561 = vmatmul.f32.gmra.mxu0 %v336
      %v562 = vpop.f32.mrf.mxu0
      %v563 = vadd.f32 0.0, %v562
      %564 = vmatmul.f32.gmra.mxu0 %v339
      %v565 = vpop.f32.mrf.mxu0
      %v566 = vadd.f32 0.0, %v565
      %567 = vmatmul.f32.gmra.mxu0 %v342
      %v568 = vpop.f32.mrf.mxu0
      %v569 = vadd.f32 0.0, %v568
      %570 = vmatmul.f32.gmra.mxu0 %v345
      %v571 = vpop.f32.mrf.mxu0
      %v572 = vadd.f32 0.0, %v571
      %573 = vmatmul.f32.gmra.mxu0 %v348
      %v574 = vpop.f32.mrf.mxu0
      %v575 = vadd.f32 0.0, %v574
      %576 = vmatmul.f32.gmra.mxu0 %v351
      %v577 = vpop.f32.mrf.mxu0
      %v578 = vadd.f32 0.0, %v577
      %579 = vmatmul.f32.gmra.mxu0 %v354
      %v580 = vpop.f32.mrf.mxu0
      %v581 = vadd.f32 0.0, %v580
      %582 = vmatmul.f32.gmra.mxu0 %v357
      %v583 = vpop.f32.mrf.mxu0
      %v584 = vadd.f32 0.0, %v583
      %585 = vmatmul.f32.gmra.mxu0 %v360
      %v586 = vpop.f32.mrf.mxu0
      %v587 = vadd.f32 0.0, %v586
      %588 = vmatmul.f32.gmra.mxu0 %v363
      %v589 = vpop.f32.mrf.mxu0
      %v590 = vadd.f32 0.0, %v589
      %591 = vmatmul.f32.gmra.mxu0 %v366
      %v592 = vpop.f32.mrf.mxu0
      %v593 = vadd.f32 0.0, %v592
      %594 = vdwg.mxu0
      %595 = vmatpush.msra.mxu0 0.0
      %596 = vmatpush.msra.mxu0 0.0
      %597 = vmatpush.msra.mxu0 0.0
      %598 = vmatpush.msra.mxu0 0.0
      %599 = vmatpush.msra.mxu0 0.0
      %600 = vmatpush.msra.mxu0 0.0
      %601 = vmatpush.msra.mxu0 0.0
      %602 = vmatpush.msra.mxu0 0.0
      %603 = vmatpush.msra.mxu0 0.0
      %604 = vmatpush.msra.mxu0 0.0
      %605 = vmatpush.msra.mxu0 0.0
      %606 = vmatpush.msra.mxu0 0.0
      %607 = vmatpush.msra.mxu0 0.0
      %608 = vmatpush.msra.mxu0 0.0
      %609 = vmatpush.msra.mxu0 %v376
      %610 = vmatpush.msra.mxu0 %v257
      %611 = vmatmul.f32.gmra.mxu0 %v321
      %v612 = vpop.f32.mrf.mxu0
      %v613 = vadd.f32 0.0, %v612
      %614 = vmatmul.f32.gmra.mxu0 %v324
      %v615 = vpop.f32.mrf.mxu0
      %v616 = vadd.f32 0.0, %v615
      %617 = vmatmul.f32.gmra.mxu0 %v327
      %v618 = vpop.f32.mrf.mxu0
      %v619 = vadd.f32 0.0, %v618
      %620 = vmatmul.f32.gmra.mxu0 %v330
      %v621 = vpop.f32.mrf.mxu0
      %v622 = vadd.f32 0.0, %v621
      %623 = vmatmul.f32.gmra.mxu0 %v333
      %v624 = vpop.f32.mrf.mxu0
      %v625 = vadd.f32 0.0, %v624
      %626 = vmatmul.f32.gmra.mxu0 %v336
      %v627 = vpop.f32.mrf.mxu0
      %v628 = vadd.f32 0.0, %v627
      %629 = vmatmul.f32.gmra.mxu0 %v339
      %v630 = vpop.f32.mrf.mxu0
      %v631 = vadd.f32 0.0, %v630
      %632 = vmatmul.f32.gmra.mxu0 %v342
      %v633 = vpop.f32.mrf.mxu0
      %v634 = vadd.f32 0.0, %v633
      %635 = vmatmul.f32.gmra.mxu0 %v345
      %v636 = vpop.f32.mrf.mxu0
      %v637 = vadd.f32 0.0, %v636
      %638 = vmatmul.f32.gmra.mxu0 %v348
      %v639 = vpop.f32.mrf.mxu0
      %v640 = vadd.f32 0.0, %v639
      %641 = vmatmul.f32.gmra.mxu0 %v351
      %v642 = vpop.f32.mrf.mxu0
      %v643 = vadd.f32 0.0, %v642
      %644 = vmatmul.f32.gmra.mxu0 %v354
      %v645 = vpop.f32.mrf.mxu0
      %v646 = vadd.f32 0.0, %v645
      %647 = vmatmul.f32.gmra.mxu0 %v357
      %v648 = vpop.f32.mrf.mxu0
      %v649 = vadd.f32 0.0, %v648
      %650 = vmatmul.f32.gmra.mxu0 %v360
      %v651 = vpop.f32.mrf.mxu0
      %v652 = vadd.f32 0.0, %v651
      %653 = vmatmul.f32.gmra.mxu0 %v363
      %v654 = vpop.f32.mrf.mxu0
      %v655 = vadd.f32 0.0, %v654
      %656 = vmatmul.f32.gmra.mxu0 %v366
      %v657 = vpop.f32.mrf.mxu0
      %v658 = vadd.f32 0.0, %v657
      %659 = vdwg.mxu0
      %660 = vmatpush.msra.mxu0 0.0
      %661 = vmatpush.msra.mxu0 0.0
      %662 = vmatpush.msra.mxu0 0.0
      %663 = vmatpush.msra.mxu0 0.0
      %664 = vmatpush.msra.mxu0 0.0
      %665 = vmatpush.msra.mxu0 0.0
      %666 = vmatpush.msra.mxu0 0.0
      %667 = vmatpush.msra.mxu0 0.0
      %668 = vmatpush.msra.mxu0 0.0
      %669 = vmatpush.msra.mxu0 0.0
      %670 = vmatpush.msra.mxu0 0.0
      %671 = vmatpush.msra.mxu0 0.0
      %672 = vmatpush.msra.mxu0 0.0
      %673 = vmatpush.msra.mxu0 0.0
      %674 = vmatpush.msra.mxu0 %v379
      %675 = vmatpush.msra.mxu0 %v258
      %676 = vmatmul.f32.gmra.mxu0 %v321
      %v677 = vpop.f32.mrf.mxu0
      %v678 = vadd.f32 0.0, %v677
      %679 = vmatmul.f32.gmra.mxu0 %v324
      %v680 = vpop.f32.mrf.mxu0
      %v681 = vadd.f32 0.0, %v680
      %682 = vmatmul.f32.gmra.mxu0 %v327
      %v683 = vpop.f32.mrf.mxu0
      %v684 = vadd.f32 0.0, %v683
      %685 = vmatmul.f32.gmra.mxu0 %v330
      %v686 = vpop.f32.mrf.mxu0
      %v687 = vadd.f32 0.0, %v686
      %688 = vmatmul.f32.gmra.mxu0 %v333
      %v689 = vpop.f32.mrf.mxu0
      %v690 = vadd.f32 0.0, %v689
      %691 = vmatmul.f32.gmra.mxu0 %v336
      %v692 = vpop.f32.mrf.mxu0
      %v693 = vadd.f32 0.0, %v692
      %694 = vmatmul.f32.gmra.mxu0 %v339
      %v695 = vpop.f32.mrf.mxu0
      %v696 = vadd.f32 0.0, %v695
      %697 = vmatmul.f32.gmra.mxu0 %v342
      %v698 = vpop.f32.mrf.mxu0
      %v699 = vadd.f32 0.0, %v698
      %700 = vmatmul.f32.gmra.mxu0 %v345
      %v701 = vpop.f32.mrf.mxu0
      %v702 = vadd.f32 0.0, %v701
      %703 = vmatmul.f32.gmra.mxu0 %v348
      %v704 = vpop.f32.mrf.mxu0
      %v705 = vadd.f32 0.0, %v704
      %706 = vmatmul.f32.gmra.mxu0 %v351
      %v707 = vpop.f32.mrf.mxu0
      %v708 = vadd.f32 0.0, %v707
      %709 = vmatmul.f32.gmra.mxu0 %v354
      %v710 = vpop.f32.mrf.mxu0
      %v711 = vadd.f32 0.0, %v710
      %712 = vmatmul.f32.gmra.mxu0 %v357
      %v713 = vpop.f32.mrf.mxu0
      %v714 = vadd.f32 0.0, %v713
      %715 = vmatmul.f32.gmra.mxu0 %v360
      %v716 = vpop.f32.mrf.mxu0
      %v717 = vadd.f32 0.0, %v716
      %718 = vmatmul.f32.gmra.mxu0 %v363
      %v719 = vpop.f32.mrf.mxu0
      %v720 = vadd.f32 0.0, %v719
      %721 = vmatmul.f32.gmra.mxu0 %v366
      %v722 = vpop.f32.mrf.mxu0
      %v723 = vadd.f32 0.0, %v722
      %724 = vdwg.mxu0
      %725 = vmatpush.msra.mxu0 0.0
      %726 = vmatpush.msra.mxu0 0.0
      %727 = vmatpush.msra.mxu0 0.0
      %728 = vmatpush.msra.mxu0 0.0
      %729 = vmatpush.msra.mxu0 0.0
      %730 = vmatpush.msra.mxu0 0.0
      %731 = vmatpush.msra.mxu0 0.0
      %732 = vmatpush.msra.mxu0 0.0
      %733 = vmatpush.msra.mxu0 0.0
      %734 = vmatpush.msra.mxu0 0.0
      %735 = vmatpush.msra.mxu0 0.0
      %736 = vmatpush.msra.mxu0 0.0
      %737 = vmatpush.msra.mxu0 0.0
      %738 = vmatpush.msra.mxu0 0.0
      %739 = vmatpush.msra.mxu0 %v382
      %740 = vmatpush.msra.mxu0 %v259
      %741 = vmatmul.f32.gmra.mxu0 %v321
      %v742 = vpop.f32.mrf.mxu0
      %v743 = vadd.f32 0.0, %v742
      %744 = vmatmul.f32.gmra.mxu0 %v324
      %v745 = vpop.f32.mrf.mxu0
      %v746 = vadd.f32 0.0, %v745
      %747 = vmatmul.f32.gmra.mxu0 %v327
      %v748 = vpop.f32.mrf.mxu0
      %v749 = vadd.f32 0.0, %v748
      %750 = vmatmul.f32.gmra.mxu0 %v330
      %v751 = vpop.f32.mrf.mxu0
      %v752 = vadd.f32 0.0, %v751
      %753 = vmatmul.f32.gmra.mxu0 %v333
      %v754 = vpop.f32.mrf.mxu0
      %v755 = vadd.f32 0.0, %v754
      %756 = vmatmul.f32.gmra.mxu0 %v336
      %v757 = vpop.f32.mrf.mxu0
      %v758 = vadd.f32 0.0, %v757
      %759 = vmatmul.f32.gmra.mxu0 %v339
      %v760 = vpop.f32.mrf.mxu0
      %v761 = vadd.f32 0.0, %v760
      %762 = vmatmul.f32.gmra.mxu0 %v342
      %v763 = vpop.f32.mrf.mxu0
      %v764 = vadd.f32 0.0, %v763
      %765 = vmatmul.f32.gmra.mxu0 %v345
      %v766 = vpop.f32.mrf.mxu0
      %v767 = vadd.f32 0.0, %v766
      %768 = vmatmul.f32.gmra.mxu0 %v348
      %v769 = vpop.f32.mrf.mxu0
      %v770 = vadd.f32 0.0, %v769
      %771 = vmatmul.f32.gmra.mxu0 %v351
      %v772 = vpop.f32.mrf.mxu0
      %v773 = vadd.f32 0.0, %v772
      %774 = vmatmul.f32.gmra.mxu0 %v354
      %v775 = vpop.f32.mrf.mxu0
      %v776 = vadd.f32 0.0, %v775
      %777 = vmatmul.f32.gmra.mxu0 %v357
      %v778 = vpop.f32.mrf.mxu0
      %v779 = vadd.f32 0.0, %v778
      %780 = vmatmul.f32.gmra.mxu0 %v360
      %v781 = vpop.f32.mrf.mxu0
      %v782 = vadd.f32 0.0, %v781
      %783 = vmatmul.f32.gmra.mxu0 %v363
      %v784 = vpop.f32.mrf.mxu0
      %v785 = vadd.f32 0.0, %v784
      %786 = vmatmul.f32.gmra.mxu0 %v366
      %v787 = vpop.f32.mrf.mxu0
      %v788 = vadd.f32 0.0, %v787
      %789 = vdwg.mxu0
      %790 = vmatpush.msra.mxu0 0.0
      %791 = vmatpush.msra.mxu0 0.0
      %792 = vmatpush.msra.mxu0 0.0
      %793 = vmatpush.msra.mxu0 0.0
      %794 = vmatpush.msra.mxu0 0.0
      %795 = vmatpush.msra.mxu0 0.0
      %796 = vmatpush.msra.mxu0 0.0
      %797 = vmatpush.msra.mxu0 0.0
      %798 = vmatpush.msra.mxu0 0.0
      %799 = vmatpush.msra.mxu0 0.0
      %800 = vmatpush.msra.mxu0 0.0
      %801 = vmatpush.msra.mxu0 0.0
      %802 = vmatpush.msra.mxu0 0.0
      %803 = vmatpush.msra.mxu0 0.0
      %804 = vmatpush.msra.mxu0 %v385
      %805 = vmatpush.msra.mxu0 %v260
      %806 = vmatmul.f32.gmra.mxu0 %v321
      %v807 = vpop.f32.mrf.mxu0
      %v808 = vadd.f32 0.0, %v807
      %809 = vmatmul.f32.gmra.mxu0 %v324
      %v810 = vpop.f32.mrf.mxu0
      %v811 = vadd.f32 0.0, %v810
      %812 = vmatmul.f32.gmra.mxu0 %v327
      %v813 = vpop.f32.mrf.mxu0
      %v814 = vadd.f32 0.0, %v813
      %815 = vmatmul.f32.gmra.mxu0 %v330
      %v816 = vpop.f32.mrf.mxu0
      %v817 = vadd.f32 0.0, %v816
      %818 = vmatmul.f32.gmra.mxu0 %v333
      %v819 = vpop.f32.mrf.mxu0
      %v820 = vadd.f32 0.0, %v819
      %821 = vmatmul.f32.gmra.mxu0 %v336
      %v822 = vpop.f32.mrf.mxu0
      %v823 = vadd.f32 0.0, %v822
      %824 = vmatmul.f32.gmra.mxu0 %v339
      %v825 = vpop.f32.mrf.mxu0
      %v826 = vadd.f32 0.0, %v825
      %827 = vmatmul.f32.gmra.mxu0 %v342
      %v828 = vpop.f32.mrf.mxu0
      %v829 = vadd.f32 0.0, %v828
      %830 = vmatmul.f32.gmra.mxu0 %v345
      %v831 = vpop.f32.mrf.mxu0
      %v832 = vadd.f32 0.0, %v831
      %833 = vmatmul.f32.gmra.mxu0 %v348
      %v834 = vpop.f32.mrf.mxu0
      %v835 = vadd.f32 0.0, %v834
      %836 = vmatmul.f32.gmra.mxu0 %v351
      %v837 = vpop.f32.mrf.mxu0
      %v838 = vadd.f32 0.0, %v837
      %839 = vmatmul.f32.gmra.mxu0 %v354
      %v840 = vpop.f32.mrf.mxu0
      %v841 = vadd.f32 0.0, %v840
      %842 = vmatmul.f32.gmra.mxu0 %v357
      %v843 = vpop.f32.mrf.mxu0
      %v844 = vadd.f32 0.0, %v843
      %845 = vmatmul.f32.gmra.mxu0 %v360
      %v846 = vpop.f32.mrf.mxu0
      %v847 = vadd.f32 0.0, %v846
      %848 = vmatmul.f32.gmra.mxu0 %v363
      %v849 = vpop.f32.mrf.mxu0
      %v850 = vadd.f32 0.0, %v849
      %851 = vmatmul.f32.gmra.mxu0 %v366
      %v852 = vpop.f32.mrf.mxu0
      %v853 = vadd.f32 0.0, %v852
      %854 = vdwg.mxu0
      %855 = vmatpush.msra.mxu0 0.0
      %856 = vmatpush.msra.mxu0 0.0
      %857 = vmatpush.msra.mxu0 0.0
      %858 = vmatpush.msra.mxu0 0.0
      %859 = vmatpush.msra.mxu0 0.0
      %860 = vmatpush.msra.mxu0 0.0
      %861 = vmatpush.msra.mxu0 0.0
      %862 = vmatpush.msra.mxu0 0.0
      %863 = vmatpush.msra.mxu0 0.0
      %864 = vmatpush.msra.mxu0 0.0
      %865 = vmatpush.msra.mxu0 0.0
      %866 = vmatpush.msra.mxu0 0.0
      %867 = vmatpush.msra.mxu0 0.0
      %868 = vmatpush.msra.mxu0 0.0
      %869 = vmatpush.msra.mxu0 %v388
      %870 = vmatpush.msra.mxu0 %v261
      %871 = vmatmul.f32.gmra.mxu0 %v321
      %v872 = vpop.f32.mrf.mxu0
      %v873 = vadd.f32 0.0, %v872
      %874 = vmatmul.f32.gmra.mxu0 %v324
      %v875 = vpop.f32.mrf.mxu0
      %v876 = vadd.f32 0.0, %v875
      %877 = vmatmul.f32.gmra.mxu0 %v327
      %v878 = vpop.f32.mrf.mxu0
      %v879 = vadd.f32 0.0, %v878
      %880 = vmatmul.f32.gmra.mxu0 %v330
      %v881 = vpop.f32.mrf.mxu0
      %v882 = vadd.f32 0.0, %v881
      %883 = vmatmul.f32.gmra.mxu0 %v333
      %v884 = vpop.f32.mrf.mxu0
      %v885 = vadd.f32 0.0, %v884
      %886 = vmatmul.f32.gmra.mxu0 %v336
      %v887 = vpop.f32.mrf.mxu0
      %v888 = vadd.f32 0.0, %v887
      %889 = vmatmul.f32.gmra.mxu0 %v339
      %v890 = vpop.f32.mrf.mxu0
      %v891 = vadd.f32 0.0, %v890
      %892 = vmatmul.f32.gmra.mxu0 %v342
      %v893 = vpop.f32.mrf.mxu0
      %v894 = vadd.f32 0.0, %v893
      %895 = vmatmul.f32.gmra.mxu0 %v345
      %v896 = vpop.f32.mrf.mxu0
      %v897 = vadd.f32 0.0, %v896
      %898 = vmatmul.f32.gmra.mxu0 %v348
      %v899 = vpop.f32.mrf.mxu0
      %v900 = vadd.f32 0.0, %v899
      %901 = vmatmul.f32.gmra.mxu0 %v351
      %v902 = vpop.f32.mrf.mxu0
      %v903 = vadd.f32 0.0, %v902
      %904 = vmatmul.f32.gmra.mxu0 %v354
      %v905 = vpop.f32.mrf.mxu0
      %v906 = vadd.f32 0.0, %v905
      %907 = vmatmul.f32.gmra.mxu0 %v357
      %v908 = vpop.f32.mrf.mxu0
      %v909 = vadd.f32 0.0, %v908
      %910 = vmatmul.f32.gmra.mxu0 %v360
      %v911 = vpop.f32.mrf.mxu0
      %v912 = vadd.f32 0.0, %v911
      %913 = vmatmul.f32.gmra.mxu0 %v363
      %v914 = vpop.f32.mrf.mxu0
      %v915 = vadd.f32 0.0, %v914
      %916 = vmatmul.f32.gmra.mxu0 %v366
      %v917 = vpop.f32.mrf.mxu0
      %v918 = vadd.f32 0.0, %v917
      %919 = vdwg.mxu0
      %920 = vmatpush.msra.mxu0 0.0
      %921 = vmatpush.msra.mxu0 0.0
      %922 = vmatpush.msra.mxu0 0.0
      %923 = vmatpush.msra.mxu0 0.0
      %924 = vmatpush.msra.mxu0 0.0
      %925 = vmatpush.msra.mxu0 0.0
      %926 = vmatpush.msra.mxu0 0.0
      %927 = vmatpush.msra.mxu0 0.0
      %928 = vmatpush.msra.mxu0 0.0
      %929 = vmatpush.msra.mxu0 0.0
      %930 = vmatpush.msra.mxu0 0.0
      %931 = vmatpush.msra.mxu0 0.0
      %932 = vmatpush.msra.mxu0 0.0
      %933 = vmatpush.msra.mxu0 0.0
      %934 = vmatpush.msra.mxu0 %v391
      %935 = vmatpush.msra.mxu0 %v262
      %936 = vmatmul.f32.gmra.mxu0 %v321
      %v937 = vpop.f32.mrf.mxu0
      %v938 = vadd.f32 0.0, %v937
      %939 = vmatmul.f32.gmra.mxu0 %v324
      %v940 = vpop.f32.mrf.mxu0
      %v941 = vadd.f32 0.0, %v940
      %942 = vmatmul.f32.gmra.mxu0 %v327
      %v943 = vpop.f32.mrf.mxu0
      %v944 = vadd.f32 0.0, %v943
      %945 = vmatmul.f32.gmra.mxu0 %v330
      %v946 = vpop.f32.mrf.mxu0
      %v947 = vadd.f32 0.0, %v946
      %948 = vmatmul.f32.gmra.mxu0 %v333
      %v949 = vpop.f32.mrf.mxu0
      %v950 = vadd.f32 0.0, %v949
      %951 = vmatmul.f32.gmra.mxu0 %v336
      %v952 = vpop.f32.mrf.mxu0
      %v953 = vadd.f32 0.0, %v952
      %954 = vmatmul.f32.gmra.mxu0 %v339
      %v955 = vpop.f32.mrf.mxu0
      %v956 = vadd.f32 0.0, %v955
      %957 = vmatmul.f32.gmra.mxu0 %v342
      %v958 = vpop.f32.mrf.mxu0
      %v959 = vadd.f32 0.0, %v958
      %960 = vmatmul.f32.gmra.mxu0 %v345
      %v961 = vpop.f32.mrf.mxu0
      %v962 = vadd.f32 0.0, %v961
      %963 = vmatmul.f32.gmra.mxu0 %v348
      %v964 = vpop.f32.mrf.mxu0
      %v965 = vadd.f32 0.0, %v964
      %966 = vmatmul.f32.gmra.mxu0 %v351
      %v967 = vpop.f32.mrf.mxu0
      %v968 = vadd.f32 0.0, %v967
      %969 = vmatmul.f32.gmra.mxu0 %v354
      %v970 = vpop.f32.mrf.mxu0
      %v971 = vadd.f32 0.0, %v970
      %972 = vmatmul.f32.gmra.mxu0 %v357
      %v973 = vpop.f32.mrf.mxu0
      %v974 = vadd.f32 0.0, %v973
      %975 = vmatmul.f32.gmra.mxu0 %v360
      %v976 = vpop.f32.mrf.mxu0
      %v977 = vadd.f32 0.0, %v976
      %978 = vmatmul.f32.gmra.mxu0 %v363
      %v979 = vpop.f32.mrf.mxu0
      %v980 = vadd.f32 0.0, %v979
      %981 = vmatmul.f32.gmra.mxu0 %v366
      %v982 = vpop.f32.mrf.mxu0
      %v983 = vadd.f32 0.0, %v982
      %984 = vdwg.mxu0
      %985 = vmatpush.msra.mxu0 0.0
      %986 = vmatpush.msra.mxu0 0.0
      %987 = vmatpush.msra.mxu0 0.0
      %988 = vmatpush.msra.mxu0 0.0
      %989 = vmatpush.msra.mxu0 0.0
      %990 = vmatpush.msra.mxu0 0.0
      %991 = vmatpush.msra.mxu0 0.0
      %992 = vmatpush.msra.mxu0 0.0
      %993 = vmatpush.msra.mxu0 0.0
      %994 = vmatpush.msra.mxu0 0.0
      %995 = vmatpush.msra.mxu0 0.0
      %996 = vmatpush.msra.mxu0 0.0
      %997 = vmatpush.msra.mxu0 0.0
      %998 = vmatpush.msra.mxu0 0.0
      %999 = vmatpush.msra.mxu0 %v394
      %1000 = vmatpush.msra.mxu0 %v263
      %1001 = vmatmul.f32.gmra.mxu0 %v321
      %v1002 = vpop.f32.mrf.mxu0
      %v1003 = vadd.f32 0.0, %v1002
      %1004 = vmatmul.f32.gmra.mxu0 %v324
      %v1005 = vpop.f32.mrf.mxu0
      %v1006 = vadd.f32 0.0, %v1005
      %1007 = vmatmul.f32.gmra.mxu0 %v327
      %v1008 = vpop.f32.mrf.mxu0
      %v1009 = vadd.f32 0.0, %v1008
      %1010 = vmatmul.f32.gmra.mxu0 %v330
      %v1011 = vpop.f32.mrf.mxu0
      %v1012 = vadd.f32 0.0, %v1011
      %1013 = vmatmul.f32.gmra.mxu0 %v333
      %v1014 = vpop.f32.mrf.mxu0
      %v1015 = vadd.f32 0.0, %v1014
      %1016 = vmatmul.f32.gmra.mxu0 %v336
      %v1017 = vpop.f32.mrf.mxu0
      %v1018 = vadd.f32 0.0, %v1017
      %1019 = vmatmul.f32.gmra.mxu0 %v339
      %v1020 = vpop.f32.mrf.mxu0
      %v1021 = vadd.f32 0.0, %v1020
      %1022 = vmatmul.f32.gmra.mxu0 %v342
      %v1023 = vpop.f32.mrf.mxu0
      %v1024 = vadd.f32 0.0, %v1023
      %1025 = vmatmul.f32.gmra.mxu0 %v345
      %v1026 = vpop.f32.mrf.mxu0
      %v1027 = vadd.f32 0.0, %v1026
      %1028 = vmatmul.f32.gmra.mxu0 %v348
      %v1029 = vpop.f32.mrf.mxu0
      %v1030 = vadd.f32 0.0, %v1029
      %1031 = vmatmul.f32.gmra.mxu0 %v351
      %v1032 = vpop.f32.mrf.mxu0
      %v1033 = vadd.f32 0.0, %v1032
      %1034 = vmatmul.f32.gmra.mxu0 %v354
      %v1035 = vpop.f32.mrf.mxu0
      %v1036 = vadd.f32 0.0, %v1035
      %1037 = vmatmul.f32.gmra.mxu0 %v357
      %v1038 = vpop.f32.mrf.mxu0
      %v1039 = vadd.f32 0.0, %v1038
      %1040 = vmatmul.f32.gmra.mxu0 %v360
      %v1041 = vpop.f32.mrf.mxu0
      %v1042 = vadd.f32 0.0, %v1041
      %1043 = vmatmul.f32.gmra.mxu0 %v363
      %v1044 = vpop.f32.mrf.mxu0
      %v1045 = vadd.f32 0.0, %v1044
      %1046 = vmatmul.f32.gmra.mxu0 %v366
      %v1047 = vpop.f32.mrf.mxu0
      %v1048 = vadd.f32 0.0, %v1047
      %1049 = vdwg.mxu0
      %1050 = vmatpush.msra.mxu0 0.0
      %1051 = vmatpush.msra.mxu0 0.0
      %1052 = vmatpush.msra.mxu0 0.0
      %1053 = vmatpush.msra.mxu0 0.0
      %1054 = vmatpush.msra.mxu0 0.0
      %1055 = vmatpush.msra.mxu0 0.0
      %1056 = vmatpush.msra.mxu0 0.0
      %1057 = vmatpush.msra.mxu0 0.0
      %1058 = vmatpush.msra.mxu0 0.0
      %1059 = vmatpush.msra.mxu0 0.0
      %1060 = vmatpush.msra.mxu0 0.0
      %1061 = vmatpush.msra.mxu0 0.0
      %1062 = vmatpush.msra.mxu0 0.0
      %1063 = vmatpush.msra.mxu0 0.0
      %1064 = vmatpush.msra.mxu0 %v397
      %1065 = vmatpush.msra.mxu0 %v264
      %1066 = vmatmul.f32.gmra.mxu0 %v321
      %v1067 = vpop.f32.mrf.mxu0
      %v1068 = vadd.f32 0.0, %v1067
      %1069 = vmatmul.f32.gmra.mxu0 %v324
      %v1070 = vpop.f32.mrf.mxu0
      %v1071 = vadd.f32 0.0, %v1070
      %1072 = vmatmul.f32.gmra.mxu0 %v327
      %v1073 = vpop.f32.mrf.mxu0
      %v1074 = vadd.f32 0.0, %v1073
      %1075 = vmatmul.f32.gmra.mxu0 %v330
      %v1076 = vpop.f32.mrf.mxu0
      %v1077 = vadd.f32 0.0, %v1076
      %1078 = vmatmul.f32.gmra.mxu0 %v333
      %v1079 = vpop.f32.mrf.mxu0
      %v1080 = vadd.f32 0.0, %v1079
      %1081 = vmatmul.f32.gmra.mxu0 %v336
      %v1082 = vpop.f32.mrf.mxu0
      %v1083 = vadd.f32 0.0, %v1082
      %1084 = vmatmul.f32.gmra.mxu0 %v339
      %v1085 = vpop.f32.mrf.mxu0
      %v1086 = vadd.f32 0.0, %v1085
      %1087 = vmatmul.f32.gmra.mxu0 %v342
      %v1088 = vpop.f32.mrf.mxu0
      %v1089 = vadd.f32 0.0, %v1088
      %1090 = vmatmul.f32.gmra.mxu0 %v345
      %v1091 = vpop.f32.mrf.mxu0
      %v1092 = vadd.f32 0.0, %v1091
      %1093 = vmatmul.f32.gmra.mxu0 %v348
      %v1094 = vpop.f32.mrf.mxu0
      %v1095 = vadd.f32 0.0, %v1094
      %1096 = vmatmul.f32.gmra.mxu0 %v351
      %v1097 = vpop.f32.mrf.mxu0
      %v1098 = vadd.f32 0.0, %v1097
      %1099 = vmatmul.f32.gmra.mxu0 %v354
      %v1100 = vpop.f32.mrf.mxu0
      %v1101 = vadd.f32 0.0, %v1100
      %1102 = vmatmul.f32.gmra.mxu0 %v357
      %v1103 = vpop.f32.mrf.mxu0
      %v1104 = vadd.f32 0.0, %v1103
      %1105 = vmatmul.f32.gmra.mxu0 %v360
      %v1106 = vpop.f32.mrf.mxu0
      %v1107 = vadd.f32 0.0, %v1106
      %1108 = vmatmul.f32.gmra.mxu0 %v363
      %v1109 = vpop.f32.mrf.mxu0
      %v1110 = vadd.f32 0.0, %v1109
      %1111 = vmatmul.f32.gmra.mxu0 %v366
      %v1112 = vpop.f32.mrf.mxu0
      %v1113 = vadd.f32 0.0, %v1112
      %1114 = vdwg.mxu0
      %1115 = vmatpush.msra.mxu0 0.0
      %1116 = vmatpush.msra.mxu0 0.0
      %1117 = vmatpush.msra.mxu0 0.0
      %1118 = vmatpush.msra.mxu0 0.0
      %1119 = vmatpush.msra.mxu0 0.0
      %1120 = vmatpush.msra.mxu0 0.0
      %1121 = vmatpush.msra.mxu0 0.0
      %1122 = vmatpush.msra.mxu0 0.0
      %1123 = vmatpush.msra.mxu0 0.0
      %1124 = vmatpush.msra.mxu0 0.0
      %1125 = vmatpush.msra.mxu0 0.0
      %1126 = vmatpush.msra.mxu0 0.0
      %1127 = vmatpush.msra.mxu0 0.0
      %1128 = vmatpush.msra.mxu0 0.0
      %1129 = vmatpush.msra.mxu0 %v400
      %1130 = vmatpush.msra.mxu0 %v265
      %1131 = vmatmul.f32.gmra.mxu0 %v321
      %v1132 = vpop.f32.mrf.mxu0
      %v1133 = vadd.f32 0.0, %v1132
      %1134 = vmatmul.f32.gmra.mxu0 %v324
      %v1135 = vpop.f32.mrf.mxu0
      %v1136 = vadd.f32 0.0, %v1135
      %1137 = vmatmul.f32.gmra.mxu0 %v327
      %v1138 = vpop.f32.mrf.mxu0
      %v1139 = vadd.f32 0.0, %v1138
      %1140 = vmatmul.f32.gmra.mxu0 %v330
      %v1141 = vpop.f32.mrf.mxu0
      %v1142 = vadd.f32 0.0, %v1141
      %1143 = vmatmul.f32.gmra.mxu0 %v333
      %v1144 = vpop.f32.mrf.mxu0
      %v1145 = vadd.f32 0.0, %v1144
      %1146 = vmatmul.f32.gmra.mxu0 %v336
      %v1147 = vpop.f32.mrf.mxu0
      %v1148 = vadd.f32 0.0, %v1147
      %1149 = vmatmul.f32.gmra.mxu0 %v339
      %v1150 = vpop.f32.mrf.mxu0
      %v1151 = vadd.f32 0.0, %v1150
      %1152 = vmatmul.f32.gmra.mxu0 %v342
      %v1153 = vpop.f32.mrf.mxu0
      %v1154 = vadd.f32 0.0, %v1153
      %1155 = vmatmul.f32.gmra.mxu0 %v345
      %v1156 = vpop.f32.mrf.mxu0
      %v1157 = vadd.f32 0.0, %v1156
      %1158 = vmatmul.f32.gmra.mxu0 %v348
      %v1159 = vpop.f32.mrf.mxu0
      %v1160 = vadd.f32 0.0, %v1159
      %1161 = vmatmul.f32.gmra.mxu0 %v351
      %v1162 = vpop.f32.mrf.mxu0
      %v1163 = vadd.f32 0.0, %v1162
      %1164 = vmatmul.f32.gmra.mxu0 %v354
      %v1165 = vpop.f32.mrf.mxu0
      %v1166 = vadd.f32 0.0, %v1165
      %1167 = vmatmul.f32.gmra.mxu0 %v357
      %v1168 = vpop.f32.mrf.mxu0
      %v1169 = vadd.f32 0.0, %v1168
      %1170 = vmatmul.f32.gmra.mxu0 %v360
      %v1171 = vpop.f32.mrf.mxu0
      %v1172 = vadd.f32 0.0, %v1171
      %1173 = vmatmul.f32.gmra.mxu0 %v363
      %v1174 = vpop.f32.mrf.mxu0
      %v1175 = vadd.f32 0.0, %v1174
      %1176 = vmatmul.f32.gmra.mxu0 %v366
      %v1177 = vpop.f32.mrf.mxu0
      %v1178 = vadd.f32 0.0, %v1177
      %1179 = vdwg.mxu0
      %1180 = vmatpush.msra.mxu0 0.0
      %1181 = vmatpush.msra.mxu0 0.0
      %1182 = vmatpush.msra.mxu0 0.0
      %1183 = vmatpush.msra.mxu0 0.0
      %1184 = vmatpush.msra.mxu0 0.0
      %1185 = vmatpush.msra.mxu0 0.0
      %1186 = vmatpush.msra.mxu0 0.0
      %1187 = vmatpush.msra.mxu0 0.0
      %1188 = vmatpush.msra.mxu0 0.0
      %1189 = vmatpush.msra.mxu0 0.0
      %1190 = vmatpush.msra.mxu0 0.0
      %1191 = vmatpush.msra.mxu0 0.0
      %1192 = vmatpush.msra.mxu0 0.0
      %1193 = vmatpush.msra.mxu0 0.0
      %1194 = vmatpush.msra.mxu0 %v403
      %1195 = vmatpush.msra.mxu0 %v266
      %1196 = vmatmul.f32.gmra.mxu0 %v321
      %v1197 = vpop.f32.mrf.mxu0
      %v1198 = vadd.f32 0.0, %v1197
      %1199 = vmatmul.f32.gmra.mxu0 %v324
      %v1200 = vpop.f32.mrf.mxu0
      %v1201 = vadd.f32 0.0, %v1200
      %1202 = vmatmul.f32.gmra.mxu0 %v327
      %v1203 = vpop.f32.mrf.mxu0
      %v1204 = vadd.f32 0.0, %v1203
      %1205 = vmatmul.f32.gmra.mxu0 %v330
      %v1206 = vpop.f32.mrf.mxu0
      %v1207 = vadd.f32 0.0, %v1206
      %1208 = vmatmul.f32.gmra.mxu0 %v333
      %v1209 = vpop.f32.mrf.mxu0
      %v1210 = vadd.f32 0.0, %v1209
      %1211 = vmatmul.f32.gmra.mxu0 %v336
      %v1212 = vpop.f32.mrf.mxu0
      %v1213 = vadd.f32 0.0, %v1212
      %1214 = vmatmul.f32.gmra.mxu0 %v339
      %v1215 = vpop.f32.mrf.mxu0
      %v1216 = vadd.f32 0.0, %v1215
      %1217 = vmatmul.f32.gmra.mxu0 %v342
      %v1218 = vpop.f32.mrf.mxu0
      %v1219 = vadd.f32 0.0, %v1218
      %1220 = vmatmul.f32.gmra.mxu0 %v345
      %v1221 = vpop.f32.mrf.mxu0
      %v1222 = vadd.f32 0.0, %v1221
      %1223 = vmatmul.f32.gmra.mxu0 %v348
      %v1224 = vpop.f32.mrf.mxu0
      %v1225 = vadd.f32 0.0, %v1224
      %1226 = vmatmul.f32.gmra.mxu0 %v351
      %v1227 = vpop.f32.mrf.mxu0
      %v1228 = vadd.f32 0.0, %v1227
      %1229 = vmatmul.f32.gmra.mxu0 %v354
      %v1230 = vpop.f32.mrf.mxu0
      %v1231 = vadd.f32 0.0, %v1230
      %1232 = vmatmul.f32.gmra.mxu0 %v357
      %v1233 = vpop.f32.mrf.mxu0
      %v1234 = vadd.f32 0.0, %v1233
      %1235 = vmatmul.f32.gmra.mxu0 %v360
      %v1236 = vpop.f32.mrf.mxu0
      %v1237 = vadd.f32 0.0, %v1236
      %1238 = vmatmul.f32.gmra.mxu0 %v363
      %v1239 = vpop.f32.mrf.mxu0
      %v1240 = vadd.f32 0.0, %v1239
      %1241 = vmatmul.f32.gmra.mxu0 %v366
      %v1242 = vpop.f32.mrf.mxu0
      %v1243 = vadd.f32 0.0, %v1242
      %1244 = vdwg.mxu0
      %1245 = vmatpush.msra.mxu0 0.0
      %1246 = vmatpush.msra.mxu0 0.0
      %1247 = vmatpush.msra.mxu0 0.0
      %1248 = vmatpush.msra.mxu0 0.0
      %1249 = vmatpush.msra.mxu0 0.0
      %1250 = vmatpush.msra.mxu0 0.0
      %1251 = vmatpush.msra.mxu0 0.0
      %1252 = vmatpush.msra.mxu0 0.0
      %1253 = vmatpush.msra.mxu0 0.0
      %1254 = vmatpush.msra.mxu0 0.0
      %1255 = vmatpush.msra.mxu0 0.0
      %1256 = vmatpush.msra.mxu0 0.0
      %1257 = vmatpush.msra.mxu0 0.0
      %1258 = vmatpush.msra.mxu0 0.0
      %1259 = vmatpush.msra.mxu0 %v406
      %1260 = vmatpush.msra.mxu0 %v267
      %1261 = vmatmul.f32.gmra.mxu0 %v321
      %v1262 = vpop.f32.mrf.mxu0
      %v1263 = vadd.f32 0.0, %v1262
      %1264 = vmatmul.f32.gmra.mxu0 %v324
      %v1265 = vpop.f32.mrf.mxu0
      %v1266 = vadd.f32 0.0, %v1265
      %1267 = vmatmul.f32.gmra.mxu0 %v327
      %v1268 = vpop.f32.mrf.mxu0
      %v1269 = vadd.f32 0.0, %v1268
      %1270 = vmatmul.f32.gmra.mxu0 %v330
      %v1271 = vpop.f32.mrf.mxu0
      %v1272 = vadd.f32 0.0, %v1271
      %1273 = vmatmul.f32.gmra.mxu0 %v333
      %v1274 = vpop.f32.mrf.mxu0
      %v1275 = vadd.f32 0.0, %v1274
      %1276 = vmatmul.f32.gmra.mxu0 %v336
      %v1277 = vpop.f32.mrf.mxu0
      %v1278 = vadd.f32 0.0, %v1277
      %1279 = vmatmul.f32.gmra.mxu0 %v339
      %v1280 = vpop.f32.mrf.mxu0
      %v1281 = vadd.f32 0.0, %v1280
      %1282 = vmatmul.f32.gmra.mxu0 %v342
      %v1283 = vpop.f32.mrf.mxu0
      %v1284 = vadd.f32 0.0, %v1283
      %1285 = vmatmul.f32.gmra.mxu0 %v345
      %v1286 = vpop.f32.mrf.mxu0
      %v1287 = vadd.f32 0.0, %v1286
      %1288 = vmatmul.f32.gmra.mxu0 %v348
      %v1289 = vpop.f32.mrf.mxu0
      %v1290 = vadd.f32 0.0, %v1289
      %1291 = vmatmul.f32.gmra.mxu0 %v351
      %v1292 = vpop.f32.mrf.mxu0
      %v1293 = vadd.f32 0.0, %v1292
      %1294 = vmatmul.f32.gmra.mxu0 %v354
      %v1295 = vpop.f32.mrf.mxu0
      %v1296 = vadd.f32 0.0, %v1295
      %1297 = vmatmul.f32.gmra.mxu0 %v357
      %v1298 = vpop.f32.mrf.mxu0
      %v1299 = vadd.f32 0.0, %v1298
      %1300 = vmatmul.f32.gmra.mxu0 %v360
      %v1301 = vpop.f32.mrf.mxu0
      %v1302 = vadd.f32 0.0, %v1301
      %1303 = vmatmul.f32.gmra.mxu0 %v363
      %v1304 = vpop.f32.mrf.mxu0
      %v1305 = vadd.f32 0.0, %v1304
      %1306 = vmatmul.f32.gmra.mxu0 %v366
      %v1307 = vpop.f32.mrf.mxu0
      %v1308 = vadd.f32 0.0, %v1307
      %1309 = vdwg.mxu0
      %1310 = vmatpush.msra.mxu0 0.0
      %1311 = vmatpush.msra.mxu0 0.0
      %1312 = vmatpush.msra.mxu0 0.0
      %1313 = vmatpush.msra.mxu0 0.0
      %1314 = vmatpush.msra.mxu0 0.0
      %1315 = vmatpush.msra.mxu0 0.0
      %1316 = vmatpush.msra.mxu0 0.0
      %1317 = vmatpush.msra.mxu0 0.0
      %1318 = vmatpush.msra.mxu0 0.0
      %1319 = vmatpush.msra.mxu0 0.0
      %1320 = vmatpush.msra.mxu0 0.0
      %1321 = vmatpush.msra.mxu0 0.0
      %1322 = vmatpush.msra.mxu0 0.0
      %1323 = vmatpush.msra.mxu0 0.0
      %1324 = vmatpush.msra.mxu0 %v409
      %1325 = vmatpush.msra.mxu0 %v268
      %1326 = vmatmul.f32.gmra.mxu0 %v321
      %v1327 = vpop.f32.mrf.mxu0
      %v1328 = vadd.f32 0.0, %v1327
      %1329 = vmatmul.f32.gmra.mxu0 %v324
      %v1330 = vpop.f32.mrf.mxu0
      %v1331 = vadd.f32 0.0, %v1330
      %1332 = vmatmul.f32.gmra.mxu0 %v327
      %v1333 = vpop.f32.mrf.mxu0
      %v1334 = vadd.f32 0.0, %v1333
      %1335 = vmatmul.f32.gmra.mxu0 %v330
      %v1336 = vpop.f32.mrf.mxu0
      %v1337 = vadd.f32 0.0, %v1336
      %1338 = vmatmul.f32.gmra.mxu0 %v333
      %v1339 = vpop.f32.mrf.mxu0
      %v1340 = vadd.f32 0.0, %v1339
      %1341 = vmatmul.f32.gmra.mxu0 %v336
      %v1342 = vpop.f32.mrf.mxu0
      %v1343 = vadd.f32 0.0, %v1342
      %1344 = vmatmul.f32.gmra.mxu0 %v339
      %v1345 = vpop.f32.mrf.mxu0
      %v1346 = vadd.f32 0.0, %v1345
      %1347 = vmatmul.f32.gmra.mxu0 %v342
      %v1348 = vpop.f32.mrf.mxu0
      %v1349 = vadd.f32 0.0, %v1348
      %1350 = vmatmul.f32.gmra.mxu0 %v345
      %v1351 = vpop.f32.mrf.mxu0
      %v1352 = vadd.f32 0.0, %v1351
      %1353 = vmatmul.f32.gmra.mxu0 %v348
      %v1354 = vpop.f32.mrf.mxu0
      %v1355 = vadd.f32 0.0, %v1354
      %1356 = vmatmul.f32.gmra.mxu0 %v351
      %v1357 = vpop.f32.mrf.mxu0
      %v1358 = vadd.f32 0.0, %v1357
      %1359 = vmatmul.f32.gmra.mxu0 %v354
      %v1360 = vpop.f32.mrf.mxu0
      %v1361 = vadd.f32 0.0, %v1360
      %1362 = vmatmul.f32.gmra.mxu0 %v357
      %v1363 = vpop.f32.mrf.mxu0
      %v1364 = vadd.f32 0.0, %v1363
      %1365 = vmatmul.f32.gmra.mxu0 %v360
      %v1366 = vpop.f32.mrf.mxu0
      %v1367 = vadd.f32 0.0, %v1366
      %1368 = vmatmul.f32.gmra.mxu0 %v363
      %v1369 = vpop.f32.mrf.mxu0
      %v1370 = vadd.f32 0.0, %v1369
      %1371 = vmatmul.f32.gmra.mxu0 %v366
      %v1372 = vpop.f32.mrf.mxu0
      %v1373 = vadd.f32 0.0, %v1372
      %1374 = vdwg.mxu0
      %1375 = vmatpush.msra.mxu0 0.0
      %1376 = vmatpush.msra.mxu0 0.0
      %1377 = vmatpush.msra.mxu0 0.0
      %1378 = vmatpush.msra.mxu0 0.0
      %1379 = vmatpush.msra.mxu0 0.0
      %1380 = vmatpush.msra.mxu0 0.0
      %1381 = vmatpush.msra.mxu0 0.0
      %1382 = vmatpush.msra.mxu0 0.0
      %1383 = vmatpush.msra.mxu0 0.0
      %1384 = vmatpush.msra.mxu0 0.0
      %1385 = vmatpush.msra.mxu0 0.0
      %1386 = vmatpush.msra.mxu0 0.0
      %1387 = vmatpush.msra.mxu0 0.0
      %1388 = vmatpush.msra.mxu0 0.0
      %1389 = vmatpush.msra.mxu0 %v412
      %1390 = vmatpush.msra.mxu0 %v269
      %1391 = vmatmul.f32.gmra.mxu0 %v321
      %v1392 = vpop.f32.mrf.mxu0
      %v1393 = vadd.f32 0.0, %v1392
      %1394 = vmatmul.f32.gmra.mxu0 %v324
      %v1395 = vpop.f32.mrf.mxu0
      %v1396 = vadd.f32 0.0, %v1395
      %1397 = vmatmul.f32.gmra.mxu0 %v327
      %v1398 = vpop.f32.mrf.mxu0
      %v1399 = vadd.f32 0.0, %v1398
      %1400 = vmatmul.f32.gmra.mxu0 %v330
      %v1401 = vpop.f32.mrf.mxu0
      %v1402 = vadd.f32 0.0, %v1401
      %1403 = vmatmul.f32.gmra.mxu0 %v333
      %v1404 = vpop.f32.mrf.mxu0
      %v1405 = vadd.f32 0.0, %v1404
      %1406 = vmatmul.f32.gmra.mxu0 %v336
      %v1407 = vpop.f32.mrf.mxu0
      %v1408 = vadd.f32 0.0, %v1407
      %1409 = vmatmul.f32.gmra.mxu0 %v339
      %v1410 = vpop.f32.mrf.mxu0
      %v1411 = vadd.f32 0.0, %v1410
      %1412 = vmatmul.f32.gmra.mxu0 %v342
      %v1413 = vpop.f32.mrf.mxu0
      %v1414 = vadd.f32 0.0, %v1413
      %1415 = vmatmul.f32.gmra.mxu0 %v345
      %v1416 = vpop.f32.mrf.mxu0
      %v1417 = vadd.f32 0.0, %v1416
      %1418 = vmatmul.f32.gmra.mxu0 %v348
      %v1419 = vpop.f32.mrf.mxu0
      %v1420 = vadd.f32 0.0, %v1419
      %1421 = vmatmul.f32.gmra.mxu0 %v351
      %v1422 = vpop.f32.mrf.mxu0
      %v1423 = vadd.f32 0.0, %v1422
      %1424 = vmatmul.f32.gmra.mxu0 %v354
      %v1425 = vpop.f32.mrf.mxu0
      %v1426 = vadd.f32 0.0, %v1425
      %1427 = vmatmul.f32.gmra.mxu0 %v357
      %v1428 = vpop.f32.mrf.mxu0
      %v1429 = vadd.f32 0.0, %v1428
      %1430 = vmatmul.f32.gmra.mxu0 %v360
      %v1431 = vpop.f32.mrf.mxu0
      %v1432 = vadd.f32 0.0, %v1431
      %1433 = vmatmul.f32.gmra.mxu0 %v363
      %v1434 = vpop.f32.mrf.mxu0
      %v1435 = vadd.f32 0.0, %v1434
      %1436 = vmatmul.f32.gmra.mxu0 %v366
      %v1437 = vpop.f32.mrf.mxu0
      %v1438 = vadd.f32 0.0, %v1437
      %1439 = vdwg.mxu0
      %1440 = vmatpush.msra.mxu0 0.0
      %1441 = vmatpush.msra.mxu0 0.0
      %1442 = vmatpush.msra.mxu0 0.0
      %1443 = vmatpush.msra.mxu0 0.0
      %1444 = vmatpush.msra.mxu0 0.0
      %1445 = vmatpush.msra.mxu0 0.0
      %1446 = vmatpush.msra.mxu0 0.0
      %1447 = vmatpush.msra.mxu0 0.0
      %1448 = vmatpush.msra.mxu0 0.0
      %1449 = vmatpush.msra.mxu0 0.0
      %1450 = vmatpush.msra.mxu0 0.0
      %1451 = vmatpush.msra.mxu0 0.0
      %1452 = vmatpush.msra.mxu0 0.0
      %1453 = vmatpush.msra.mxu0 0.0
      %1454 = vmatpush.msra.mxu0 %v415
      %1455 = vmatpush.msra.mxu0 %v270
      %1456 = vmatmul.f32.gmra.mxu0 %v321
      %v1457 = vpop.f32.mrf.mxu0
      %v1458 = vadd.f32 0.0, %v1457
      %1459 = vmatmul.f32.gmra.mxu0 %v324
      %v1460 = vpop.f32.mrf.mxu0
      %v1461 = vadd.f32 0.0, %v1460
      %1462 = vmatmul.f32.gmra.mxu0 %v327
      %v1463 = vpop.f32.mrf.mxu0
      %v1464 = vadd.f32 0.0, %v1463
      %1465 = vmatmul.f32.gmra.mxu0 %v330
      %v1466 = vpop.f32.mrf.mxu0
      %v1467 = vadd.f32 0.0, %v1466
      %1468 = vmatmul.f32.gmra.mxu0 %v333
      %v1469 = vpop.f32.mrf.mxu0
      %v1470 = vadd.f32 0.0, %v1469
      %1471 = vmatmul.f32.gmra.mxu0 %v336
      %v1472 = vpop.f32.mrf.mxu0
      %v1473 = vadd.f32 0.0, %v1472
      %1474 = vmatmul.f32.gmra.mxu0 %v339
      %v1475 = vpop.f32.mrf.mxu0
      %v1476 = vadd.f32 0.0, %v1475
      %1477 = vmatmul.f32.gmra.mxu0 %v342
      %v1478 = vpop.f32.mrf.mxu0
      %v1479 = vadd.f32 0.0, %v1478
      %1480 = vmatmul.f32.gmra.mxu0 %v345
      %v1481 = vpop.f32.mrf.mxu0
      %v1482 = vadd.f32 0.0, %v1481
      %1483 = vmatmul.f32.gmra.mxu0 %v348
      %v1484 = vpop.f32.mrf.mxu0
      %v1485 = vadd.f32 0.0, %v1484
      %1486 = vmatmul.f32.gmra.mxu0 %v351
      %v1487 = vpop.f32.mrf.mxu0
      %v1488 = vadd.f32 0.0, %v1487
      %1489 = vmatmul.f32.gmra.mxu0 %v354
      %v1490 = vpop.f32.mrf.mxu0
      %v1491 = vadd.f32 0.0, %v1490
      %1492 = vmatmul.f32.gmra.mxu0 %v357
      %v1493 = vpop.f32.mrf.mxu0
      %v1494 = vadd.f32 0.0, %v1493
      %1495 = vmatmul.f32.gmra.mxu0 %v360
      %v1496 = vpop.f32.mrf.mxu0
      %v1497 = vadd.f32 0.0, %v1496
      %1498 = vmatmul.f32.gmra.mxu0 %v363
      %v1499 = vpop.f32.mrf.mxu0
      %v1500 = vadd.f32 0.0, %v1499
      %1501 = vmatmul.f32.gmra.mxu0 %v366
      %v1502 = vpop.f32.mrf.mxu0
      %v1503 = vadd.f32 0.0, %v1502
      %1504 = vdwg.mxu0
      %1505 = vmatpush.msra.mxu0 0.0
      %1506 = vmatpush.msra.mxu0 0.0
      %1507 = vmatpush.msra.mxu0 0.0
      %1508 = vmatpush.msra.mxu0 0.0
      %1509 = vmatpush.msra.mxu0 0.0
      %1510 = vmatpush.msra.mxu0 0.0
      %1511 = vmatpush.msra.mxu0 0.0
      %1512 = vmatpush.msra.mxu0 0.0
      %1513 = vmatpush.msra.mxu0 0.0
      %1514 = vmatpush.msra.mxu0 0.0
      %1515 = vmatpush.msra.mxu0 0.0
      %1516 = vmatpush.msra.mxu0 0.0
      %1517 = vmatpush.msra.mxu0 0.0
      %1518 = vmatpush.msra.mxu0 0.0
      %1519 = vmatpush.msra.mxu0 %v418
      %1520 = vmatpush.msra.mxu0 %v271
      %1521 = vmatmul.f32.gmra.mxu0 %v321
      %v1522 = vpop.f32.mrf.mxu0
      %v1523 = vadd.f32 0.0, %v1522
      %1524 = vmatmul.f32.gmra.mxu0 %v324
      %v1525 = vpop.f32.mrf.mxu0
      %v1526 = vadd.f32 0.0, %v1525
      %1527 = vmatmul.f32.gmra.mxu0 %v327
      %v1528 = vpop.f32.mrf.mxu0
      %v1529 = vadd.f32 0.0, %v1528
      %1530 = vmatmul.f32.gmra.mxu0 %v330
      %v1531 = vpop.f32.mrf.mxu0
      %v1532 = vadd.f32 0.0, %v1531
      %1533 = vmatmul.f32.gmra.mxu0 %v333
      %v1534 = vpop.f32.mrf.mxu0
      %v1535 = vadd.f32 0.0, %v1534
      %1536 = vmatmul.f32.gmra.mxu0 %v336
      %v1537 = vpop.f32.mrf.mxu0
      %v1538 = vadd.f32 0.0, %v1537
      %1539 = vmatmul.f32.gmra.mxu0 %v339
      %v1540 = vpop.f32.mrf.mxu0
      %v1541 = vadd.f32 0.0, %v1540
      %1542 = vmatmul.f32.gmra.mxu0 %v342
      %v1543 = vpop.f32.mrf.mxu0
      %v1544 = vadd.f32 0.0, %v1543
      %1545 = vmatmul.f32.gmra.mxu0 %v345
      %v1546 = vpop.f32.mrf.mxu0
      %v1547 = vadd.f32 0.0, %v1546
      %1548 = vmatmul.f32.gmra.mxu0 %v348
      %v1549 = vpop.f32.mrf.mxu0
      %v1550 = vadd.f32 0.0, %v1549
      %1551 = vmatmul.f32.gmra.mxu0 %v351
      %v1552 = vpop.f32.mrf.mxu0
      %v1553 = vadd.f32 0.0, %v1552
      %1554 = vmatmul.f32.gmra.mxu0 %v354
      %v1555 = vpop.f32.mrf.mxu0
      %v1556 = vadd.f32 0.0, %v1555
      %1557 = vmatmul.f32.gmra.mxu0 %v357
      %v1558 = vpop.f32.mrf.mxu0
      %v1559 = vadd.f32 0.0, %v1558
      %1560 = vmatmul.f32.gmra.mxu0 %v360
      %v1561 = vpop.f32.mrf.mxu0
      %v1562 = vadd.f32 0.0, %v1561
      %1563 = vmatmul.f32.gmra.mxu0 %v363
      %v1564 = vpop.f32.mrf.mxu0
      %v1565 = vadd.f32 0.0, %v1564
      %1566 = vmatmul.f32.gmra.mxu0 %v366
      %v1567 = vpop.f32.mrf.mxu0
      %v1568 = vadd.f32 0.0, %v1567
      %1569 = vdwg.mxu0
      %1570 = vmatpush.msra.mxu0 0.0
      %1571 = vmatpush.msra.mxu0 0.0
      %1572 = vmatpush.msra.mxu0 0.0
      %1573 = vmatpush.msra.mxu0 0.0
      %1574 = vmatpush.msra.mxu0 0.0
      %1575 = vmatpush.msra.mxu0 0.0
      %1576 = vmatpush.msra.mxu0 0.0
      %1577 = vmatpush.msra.mxu0 0.0
      %1578 = vmatpush.msra.mxu0 0.0
      %1579 = vmatpush.msra.mxu0 0.0
      %1580 = vmatpush.msra.mxu0 0.0
      %1581 = vmatpush.msra.mxu0 0.0
      %1582 = vmatpush.msra.mxu0 0.0
      %1583 = vmatpush.msra.mxu0 0.0
      %1584 = vmatpush.msra.mxu0 %v421
      %1585 = vmatpush.msra.mxu0 %v272
      %1586 = vmatmul.f32.gmra.mxu0 %v321
      %v1587 = vpop.f32.mrf.mxu0
      %v1588 = vadd.f32 0.0, %v1587
      %1589 = vmatmul.f32.gmra.mxu0 %v324
      %v1590 = vpop.f32.mrf.mxu0
      %v1591 = vadd.f32 0.0, %v1590
      %1592 = vmatmul.f32.gmra.mxu0 %v327
      %v1593 = vpop.f32.mrf.mxu0
      %v1594 = vadd.f32 0.0, %v1593
      %1595 = vmatmul.f32.gmra.mxu0 %v330
      %v1596 = vpop.f32.mrf.mxu0
      %v1597 = vadd.f32 0.0, %v1596
      %1598 = vmatmul.f32.gmra.mxu0 %v333
      %v1599 = vpop.f32.mrf.mxu0
      %v1600 = vadd.f32 0.0, %v1599
      %1601 = vmatmul.f32.gmra.mxu0 %v336
      %v1602 = vpop.f32.mrf.mxu0
      %v1603 = vadd.f32 0.0, %v1602
      %1604 = vmatmul.f32.gmra.mxu0 %v339
      %v1605 = vpop.f32.mrf.mxu0
      %v1606 = vadd.f32 0.0, %v1605
      %1607 = vmatmul.f32.gmra.mxu0 %v342
      %v1608 = vpop.f32.mrf.mxu0
      %v1609 = vadd.f32 0.0, %v1608
      %1610 = vmatmul.f32.gmra.mxu0 %v345
      %v1611 = vpop.f32.mrf.mxu0
      %v1612 = vadd.f32 0.0, %v1611
      %1613 = vmatmul.f32.gmra.mxu0 %v348
      %v1614 = vpop.f32.mrf.mxu0
      %v1615 = vadd.f32 0.0, %v1614
      %1616 = vmatmul.f32.gmra.mxu0 %v351
      %v1617 = vpop.f32.mrf.mxu0
      %v1618 = vadd.f32 0.0, %v1617
      %1619 = vmatmul.f32.gmra.mxu0 %v354
      %v1620 = vpop.f32.mrf.mxu0
      %v1621 = vadd.f32 0.0, %v1620
      %1622 = vmatmul.f32.gmra.mxu0 %v357
      %v1623 = vpop.f32.mrf.mxu0
      %v1624 = vadd.f32 0.0, %v1623
      %1625 = vmatmul.f32.gmra.mxu0 %v360
      %v1626 = vpop.f32.mrf.mxu0
      %v1627 = vadd.f32 0.0, %v1626
      %1628 = vmatmul.f32.gmra.mxu0 %v363
      %v1629 = vpop.f32.mrf.mxu0
      %v1630 = vadd.f32 0.0, %v1629
      %1631 = vmatmul.f32.gmra.mxu0 %v366
      %v1632 = vpop.f32.mrf.mxu0
      %v1633 = vadd.f32 0.0, %v1632
      %1634 = vdwg.mxu0
      %1635 = vmatpush.msra.mxu0 0.0
      %1636 = vmatpush.msra.mxu0 0.0
      %1637 = vmatpush.msra.mxu0 0.0
      %1638 = vmatpush.msra.mxu0 0.0
      %1639 = vmatpush.msra.mxu0 0.0
      %1640 = vmatpush.msra.mxu0 0.0
      %1641 = vmatpush.msra.mxu0 0.0
      %1642 = vmatpush.msra.mxu0 0.0
      %1643 = vmatpush.msra.mxu0 0.0
      %1644 = vmatpush.msra.mxu0 0.0
      %1645 = vmatpush.msra.mxu0 0.0
      %1646 = vmatpush.msra.mxu0 0.0
      %1647 = vmatpush.msra.mxu0 0.0
      %1648 = vmatpush.msra.mxu0 0.0
      %1649 = vmatpush.msra.mxu0 %v424
      %1650 = vmatpush.msra.mxu0 %v273
      %1651 = vmatmul.f32.gmra.mxu0 %v321
      %v1652 = vpop.f32.mrf.mxu0
      %v1653 = vadd.f32 0.0, %v1652
      %1654 = vmatmul.f32.gmra.mxu0 %v324
      %v1655 = vpop.f32.mrf.mxu0
      %v1656 = vadd.f32 0.0, %v1655
      %1657 = vmatmul.f32.gmra.mxu0 %v327
      %v1658 = vpop.f32.mrf.mxu0
      %v1659 = vadd.f32 0.0, %v1658
      %1660 = vmatmul.f32.gmra.mxu0 %v330
      %v1661 = vpop.f32.mrf.mxu0
      %v1662 = vadd.f32 0.0, %v1661
      %1663 = vmatmul.f32.gmra.mxu0 %v333
      %v1664 = vpop.f32.mrf.mxu0
      %v1665 = vadd.f32 0.0, %v1664
      %1666 = vmatmul.f32.gmra.mxu0 %v336
      %v1667 = vpop.f32.mrf.mxu0
      %v1668 = vadd.f32 0.0, %v1667
      %1669 = vmatmul.f32.gmra.mxu0 %v339
      %v1670 = vpop.f32.mrf.mxu0
      %v1671 = vadd.f32 0.0, %v1670
      %1672 = vmatmul.f32.gmra.mxu0 %v342
      %v1673 = vpop.f32.mrf.mxu0
      %v1674 = vadd.f32 0.0, %v1673
      %1675 = vmatmul.f32.gmra.mxu0 %v345
      %v1676 = vpop.f32.mrf.mxu0
      %v1677 = vadd.f32 0.0, %v1676
      %1678 = vmatmul.f32.gmra.mxu0 %v348
      %v1679 = vpop.f32.mrf.mxu0
      %v1680 = vadd.f32 0.0, %v1679
      %1681 = vmatmul.f32.gmra.mxu0 %v351
      %v1682 = vpop.f32.mrf.mxu0
      %v1683 = vadd.f32 0.0, %v1682
      %1684 = vmatmul.f32.gmra.mxu0 %v354
      %v1685 = vpop.f32.mrf.mxu0
      %v1686 = vadd.f32 0.0, %v1685
      %1687 = vmatmul.f32.gmra.mxu0 %v357
      %v1688 = vpop.f32.mrf.mxu0
      %v1689 = vadd.f32 0.0, %v1688
      %1690 = vmatmul.f32.gmra.mxu0 %v360
      %v1691 = vpop.f32.mrf.mxu0
      %v1692 = vadd.f32 0.0, %v1691
      %1693 = vmatmul.f32.gmra.mxu0 %v363
      %v1694 = vpop.f32.mrf.mxu0
      %v1695 = vadd.f32 0.0, %v1694
      %1696 = vmatmul.f32.gmra.mxu0 %v366
      %v1697 = vpop.f32.mrf.mxu0
      %v1698 = vadd.f32 0.0, %v1697
      %1699 = vdwg.mxu0
      %1700 = vmatpush.msra.mxu0 0.0
      %1701 = vmatpush.msra.mxu0 0.0
      %1702 = vmatpush.msra.mxu0 0.0
      %1703 = vmatpush.msra.mxu0 0.0
      %1704 = vmatpush.msra.mxu0 0.0
      %1705 = vmatpush.msra.mxu0 0.0
      %1706 = vmatpush.msra.mxu0 0.0
      %1707 = vmatpush.msra.mxu0 0.0
      %1708 = vmatpush.msra.mxu0 0.0
      %1709 = vmatpush.msra.mxu0 0.0
      %1710 = vmatpush.msra.mxu0 0.0
      %1711 = vmatpush.msra.mxu0 0.0
      %1712 = vmatpush.msra.mxu0 0.0
      %1713 = vmatpush.msra.mxu0 0.0
      %1714 = vmatpush.msra.mxu0 %v427
      %1715 = vmatpush.msra.mxu0 %v274
      %1716 = vmatmul.f32.gmra.mxu0 %v321
      %v1717 = vpop.f32.mrf.mxu0
      %v1718 = vadd.f32 0.0, %v1717
      %1719 = vmatmul.f32.gmra.mxu0 %v324
      %v1720 = vpop.f32.mrf.mxu0
      %v1721 = vadd.f32 0.0, %v1720
      %1722 = vmatmul.f32.gmra.mxu0 %v327
      %v1723 = vpop.f32.mrf.mxu0
      %v1724 = vadd.f32 0.0, %v1723
      %1725 = vmatmul.f32.gmra.mxu0 %v330
      %v1726 = vpop.f32.mrf.mxu0
      %v1727 = vadd.f32 0.0, %v1726
      %1728 = vmatmul.f32.gmra.mxu0 %v333
      %v1729 = vpop.f32.mrf.mxu0
      %v1730 = vadd.f32 0.0, %v1729
      %1731 = vmatmul.f32.gmra.mxu0 %v336
      %v1732 = vpop.f32.mrf.mxu0
      %v1733 = vadd.f32 0.0, %v1732
      %1734 = vmatmul.f32.gmra.mxu0 %v339
      %v1735 = vpop.f32.mrf.mxu0
      %v1736 = vadd.f32 0.0, %v1735
      %1737 = vmatmul.f32.gmra.mxu0 %v342
      %v1738 = vpop.f32.mrf.mxu0
      %v1739 = vadd.f32 0.0, %v1738
      %1740 = vmatmul.f32.gmra.mxu0 %v345
      %v1741 = vpop.f32.mrf.mxu0
      %v1742 = vadd.f32 0.0, %v1741
      %1743 = vmatmul.f32.gmra.mxu0 %v348
      %v1744 = vpop.f32.mrf.mxu0
      %v1745 = vadd.f32 0.0, %v1744
      %1746 = vmatmul.f32.gmra.mxu0 %v351
      %v1747 = vpop.f32.mrf.mxu0
      %v1748 = vadd.f32 0.0, %v1747
      %1749 = vmatmul.f32.gmra.mxu0 %v354
      %v1750 = vpop.f32.mrf.mxu0
      %v1751 = vadd.f32 0.0, %v1750
      %1752 = vmatmul.f32.gmra.mxu0 %v357
      %v1753 = vpop.f32.mrf.mxu0
      %v1754 = vadd.f32 0.0, %v1753
      %1755 = vmatmul.f32.gmra.mxu0 %v360
      %v1756 = vpop.f32.mrf.mxu0
      %v1757 = vadd.f32 0.0, %v1756
      %1758 = vmatmul.f32.gmra.mxu0 %v363
      %v1759 = vpop.f32.mrf.mxu0
      %v1760 = vadd.f32 0.0, %v1759
      %1761 = vmatmul.f32.gmra.mxu0 %v366
      %v1762 = vpop.f32.mrf.mxu0
      %v1763 = vadd.f32 0.0, %v1762
      %1764 = vdwg.mxu0
      %1765 = vmatpush.msra.mxu0 0.0
      %1766 = vmatpush.msra.mxu0 0.0
      %1767 = vmatpush.msra.mxu0 0.0
      %1768 = vmatpush.msra.mxu0 0.0
      %1769 = vmatpush.msra.mxu0 0.0
      %1770 = vmatpush.msra.mxu0 0.0
      %1771 = vmatpush.msra.mxu0 0.0
      %1772 = vmatpush.msra.mxu0 0.0
      %1773 = vmatpush.msra.mxu0 0.0
      %1774 = vmatpush.msra.mxu0 0.0
      %1775 = vmatpush.msra.mxu0 0.0
      %1776 = vmatpush.msra.mxu0 0.0
      %1777 = vmatpush.msra.mxu0 0.0
      %1778 = vmatpush.msra.mxu0 0.0
      %1779 = vmatpush.msra.mxu0 %v430
      %1780 = vmatpush.msra.mxu0 %v275
      %1781 = vmatmul.f32.gmra.mxu0 %v321
      %v1782 = vpop.f32.mrf.mxu0
      %v1783 = vadd.f32 0.0, %v1782
      %1784 = vmatmul.f32.gmra.mxu0 %v324
      %v1785 = vpop.f32.mrf.mxu0
      %v1786 = vadd.f32 0.0, %v1785
      %1787 = vmatmul.f32.gmra.mxu0 %v327
      %v1788 = vpop.f32.mrf.mxu0
      %v1789 = vadd.f32 0.0, %v1788
      %1790 = vmatmul.f32.gmra.mxu0 %v330
      %v1791 = vpop.f32.mrf.mxu0
      %v1792 = vadd.f32 0.0, %v1791
      %1793 = vmatmul.f32.gmra.mxu0 %v333
      %v1794 = vpop.f32.mrf.mxu0
      %v1795 = vadd.f32 0.0, %v1794
      %1796 = vmatmul.f32.gmra.mxu0 %v336
      %v1797 = vpop.f32.mrf.mxu0
      %v1798 = vadd.f32 0.0, %v1797
      %1799 = vmatmul.f32.gmra.mxu0 %v339
      %v1800 = vpop.f32.mrf.mxu0
      %v1801 = vadd.f32 0.0, %v1800
      %1802 = vmatmul.f32.gmra.mxu0 %v342
      %v1803 = vpop.f32.mrf.mxu0
      %v1804 = vadd.f32 0.0, %v1803
      %1805 = vmatmul.f32.gmra.mxu0 %v345
      %v1806 = vpop.f32.mrf.mxu0
      %v1807 = vadd.f32 0.0, %v1806
      %1808 = vmatmul.f32.gmra.mxu0 %v348
      %v1809 = vpop.f32.mrf.mxu0
      %v1810 = vadd.f32 0.0, %v1809
      %1811 = vmatmul.f32.gmra.mxu0 %v351
      %v1812 = vpop.f32.mrf.mxu0
      %v1813 = vadd.f32 0.0, %v1812
      %1814 = vmatmul.f32.gmra.mxu0 %v354
      %v1815 = vpop.f32.mrf.mxu0
      %v1816 = vadd.f32 0.0, %v1815
      %1817 = vmatmul.f32.gmra.mxu0 %v357
      %v1818 = vpop.f32.mrf.mxu0
      %v1819 = vadd.f32 0.0, %v1818
      %1820 = vmatmul.f32.gmra.mxu0 %v360
      %v1821 = vpop.f32.mrf.mxu0
      %v1822 = vadd.f32 0.0, %v1821
      %1823 = vmatmul.f32.gmra.mxu0 %v363
      %v1824 = vpop.f32.mrf.mxu0
      %v1825 = vadd.f32 0.0, %v1824
      %1826 = vmatmul.f32.gmra.mxu0 %v366
      %v1827 = vpop.f32.mrf.mxu0
      %v1828 = vadd.f32 0.0, %v1827
      %1829 = vdwg.mxu0
      %1830 = vmatpush.msra.mxu0 0.0
      %1831 = vmatpush.msra.mxu0 0.0
      %1832 = vmatpush.msra.mxu0 0.0
      %1833 = vmatpush.msra.mxu0 0.0
      %1834 = vmatpush.msra.mxu0 0.0
      %1835 = vmatpush.msra.mxu0 0.0
      %1836 = vmatpush.msra.mxu0 0.0
      %1837 = vmatpush.msra.mxu0 0.0
      %1838 = vmatpush.msra.mxu0 0.0
      %1839 = vmatpush.msra.mxu0 0.0
      %1840 = vmatpush.msra.mxu0 0.0
      %1841 = vmatpush.msra.mxu0 0.0
      %1842 = vmatpush.msra.mxu0 0.0
      %1843 = vmatpush.msra.mxu0 0.0
      %1844 = vmatpush.msra.mxu0 %v433
      %1845 = vmatpush.msra.mxu0 %v276
      %1846 = vmatmul.f32.gmra.mxu0 %v321
      %v1847 = vpop.f32.mrf.mxu0
      %v1848 = vadd.f32 0.0, %v1847
      %1849 = vmatmul.f32.gmra.mxu0 %v324
      %v1850 = vpop.f32.mrf.mxu0
      %v1851 = vadd.f32 0.0, %v1850
      %1852 = vmatmul.f32.gmra.mxu0 %v327
      %v1853 = vpop.f32.mrf.mxu0
      %v1854 = vadd.f32 0.0, %v1853
      %1855 = vmatmul.f32.gmra.mxu0 %v330
      %v1856 = vpop.f32.mrf.mxu0
      %v1857 = vadd.f32 0.0, %v1856
      %1858 = vmatmul.f32.gmra.mxu0 %v333
      %v1859 = vpop.f32.mrf.mxu0
      %v1860 = vadd.f32 0.0, %v1859
      %1861 = vmatmul.f32.gmra.mxu0 %v336
      %v1862 = vpop.f32.mrf.mxu0
      %v1863 = vadd.f32 0.0, %v1862
      %1864 = vmatmul.f32.gmra.mxu0 %v339
      %v1865 = vpop.f32.mrf.mxu0
      %v1866 = vadd.f32 0.0, %v1865
      %1867 = vmatmul.f32.gmra.mxu0 %v342
      %v1868 = vpop.f32.mrf.mxu0
      %v1869 = vadd.f32 0.0, %v1868
      %1870 = vmatmul.f32.gmra.mxu0 %v345
      %v1871 = vpop.f32.mrf.mxu0
      %v1872 = vadd.f32 0.0, %v1871
      %1873 = vmatmul.f32.gmra.mxu0 %v348
      %v1874 = vpop.f32.mrf.mxu0
      %v1875 = vadd.f32 0.0, %v1874
      %1876 = vmatmul.f32.gmra.mxu0 %v351
      %v1877 = vpop.f32.mrf.mxu0
      %v1878 = vadd.f32 0.0, %v1877
      %1879 = vmatmul.f32.gmra.mxu0 %v354
      %v1880 = vpop.f32.mrf.mxu0
      %v1881 = vadd.f32 0.0, %v1880
      %1882 = vmatmul.f32.gmra.mxu0 %v357
      %v1883 = vpop.f32.mrf.mxu0
      %v1884 = vadd.f32 0.0, %v1883
      %1885 = vmatmul.f32.gmra.mxu0 %v360
      %v1886 = vpop.f32.mrf.mxu0
      %v1887 = vadd.f32 0.0, %v1886
      %1888 = vmatmul.f32.gmra.mxu0 %v363
      %v1889 = vpop.f32.mrf.mxu0
      %v1890 = vadd.f32 0.0, %v1889
      %1891 = vmatmul.f32.gmra.mxu0 %v366
      %v1892 = vpop.f32.mrf.mxu0
      %v1893 = vadd.f32 0.0, %v1892
      %1894 = vdwg.mxu0
      %1895 = vmatpush.msra.mxu0 0.0
      %1896 = vmatpush.msra.mxu0 0.0
      %1897 = vmatpush.msra.mxu0 0.0
      %1898 = vmatpush.msra.mxu0 0.0
      %1899 = vmatpush.msra.mxu0 0.0
      %1900 = vmatpush.msra.mxu0 0.0
      %1901 = vmatpush.msra.mxu0 0.0
      %1902 = vmatpush.msra.mxu0 0.0
      %1903 = vmatpush.msra.mxu0 0.0
      %1904 = vmatpush.msra.mxu0 0.0
      %1905 = vmatpush.msra.mxu0 0.0
      %1906 = vmatpush.msra.mxu0 0.0
      %1907 = vmatpush.msra.mxu0 0.0
      %1908 = vmatpush.msra.mxu0 0.0
      %1909 = vmatpush.msra.mxu0 %v436
      %1910 = vmatpush.msra.mxu0 %v277
      %1911 = vmatmul.f32.gmra.mxu0 %v321
      %v1912 = vpop.f32.mrf.mxu0
      %v1913 = vadd.f32 0.0, %v1912
      %1914 = vmatmul.f32.gmra.mxu0 %v324
      %v1915 = vpop.f32.mrf.mxu0
      %v1916 = vadd.f32 0.0, %v1915
      %1917 = vmatmul.f32.gmra.mxu0 %v327
      %v1918 = vpop.f32.mrf.mxu0
      %v1919 = vadd.f32 0.0, %v1918
      %1920 = vmatmul.f32.gmra.mxu0 %v330
      %v1921 = vpop.f32.mrf.mxu0
      %v1922 = vadd.f32 0.0, %v1921
      %1923 = vmatmul.f32.gmra.mxu0 %v333
      %v1924 = vpop.f32.mrf.mxu0
      %v1925 = vadd.f32 0.0, %v1924
      %1926 = vmatmul.f32.gmra.mxu0 %v336
      %v1927 = vpop.f32.mrf.mxu0
      %v1928 = vadd.f32 0.0, %v1927
      %1929 = vmatmul.f32.gmra.mxu0 %v339
      %v1930 = vpop.f32.mrf.mxu0
      %v1931 = vadd.f32 0.0, %v1930
      %1932 = vmatmul.f32.gmra.mxu0 %v342
      %v1933 = vpop.f32.mrf.mxu0
      %v1934 = vadd.f32 0.0, %v1933
      %1935 = vmatmul.f32.gmra.mxu0 %v345
      %v1936 = vpop.f32.mrf.mxu0
      %v1937 = vadd.f32 0.0, %v1936
      %1938 = vmatmul.f32.gmra.mxu0 %v348
      %v1939 = vpop.f32.mrf.mxu0
      %v1940 = vadd.f32 0.0, %v1939
      %1941 = vmatmul.f32.gmra.mxu0 %v351
      %v1942 = vpop.f32.mrf.mxu0
      %v1943 = vadd.f32 0.0, %v1942
      %1944 = vmatmul.f32.gmra.mxu0 %v354
      %v1945 = vpop.f32.mrf.mxu0
      %v1946 = vadd.f32 0.0, %v1945
      %1947 = vmatmul.f32.gmra.mxu0 %v357
      %v1948 = vpop.f32.mrf.mxu0
      %v1949 = vadd.f32 0.0, %v1948
      %1950 = vmatmul.f32.gmra.mxu0 %v360
      %v1951 = vpop.f32.mrf.mxu0
      %v1952 = vadd.f32 0.0, %v1951
      %1953 = vmatmul.f32.gmra.mxu0 %v363
      %v1954 = vpop.f32.mrf.mxu0
      %v1955 = vadd.f32 0.0, %v1954
      %1956 = vmatmul.f32.gmra.mxu0 %v366
      %v1957 = vpop.f32.mrf.mxu0
      %v1958 = vadd.f32 0.0, %v1957
      %1959 = vdwg.mxu0
      %1960 = vmatpush.msra.mxu0 0.0
      %1961 = vmatpush.msra.mxu0 0.0
      %1962 = vmatpush.msra.mxu0 0.0
      %1963 = vmatpush.msra.mxu0 0.0
      %1964 = vmatpush.msra.mxu0 0.0
      %1965 = vmatpush.msra.mxu0 0.0
      %1966 = vmatpush.msra.mxu0 0.0
      %1967 = vmatpush.msra.mxu0 0.0
      %1968 = vmatpush.msra.mxu0 0.0
      %1969 = vmatpush.msra.mxu0 0.0
      %1970 = vmatpush.msra.mxu0 0.0
      %1971 = vmatpush.msra.mxu0 0.0
      %1972 = vmatpush.msra.mxu0 0.0
      %1973 = vmatpush.msra.mxu0 0.0
      %1974 = vmatpush.msra.mxu0 %v439
      %1975 = vmatpush.msra.mxu0 %v278
      %1976 = vmatmul.f32.gmra.mxu0 %v321
      %v1977 = vpop.f32.mrf.mxu0
      %v1978 = vadd.f32 0.0, %v1977
      %1979 = vmatmul.f32.gmra.mxu0 %v324
      %v1980 = vpop.f32.mrf.mxu0
      %v1981 = vadd.f32 0.0, %v1980
      %1982 = vmatmul.f32.gmra.mxu0 %v327
      %v1983 = vpop.f32.mrf.mxu0
      %v1984 = vadd.f32 0.0, %v1983
      %1985 = vmatmul.f32.gmra.mxu0 %v330
      %v1986 = vpop.f32.mrf.mxu0
      %v1987 = vadd.f32 0.0, %v1986
      %1988 = vmatmul.f32.gmra.mxu0 %v333
      %v1989 = vpop.f32.mrf.mxu0
      %v1990 = vadd.f32 0.0, %v1989
      %1991 = vmatmul.f32.gmra.mxu0 %v336
      %v1992 = vpop.f32.mrf.mxu0
      %v1993 = vadd.f32 0.0, %v1992
      %1994 = vmatmul.f32.gmra.mxu0 %v339
      %v1995 = vpop.f32.mrf.mxu0
      %v1996 = vadd.f32 0.0, %v1995
      %1997 = vmatmul.f32.gmra.mxu0 %v342
      %v1998 = vpop.f32.mrf.mxu0
      %v1999 = vadd.f32 0.0, %v1998
      %2000 = vmatmul.f32.gmra.mxu0 %v345
      %v2001 = vpop.f32.mrf.mxu0
      %v2002 = vadd.f32 0.0, %v2001
      %2003 = vmatmul.f32.gmra.mxu0 %v348
      %v2004 = vpop.f32.mrf.mxu0
      %v2005 = vadd.f32 0.0, %v2004
      %2006 = vmatmul.f32.gmra.mxu0 %v351
      %v2007 = vpop.f32.mrf.mxu0
      %v2008 = vadd.f32 0.0, %v2007
      %2009 = vmatmul.f32.gmra.mxu0 %v354
      %v2010 = vpop.f32.mrf.mxu0
      %v2011 = vadd.f32 0.0, %v2010
      %2012 = vmatmul.f32.gmra.mxu0 %v357
      %v2013 = vpop.f32.mrf.mxu0
      %v2014 = vadd.f32 0.0, %v2013
      %2015 = vmatmul.f32.gmra.mxu0 %v360
      %v2016 = vpop.f32.mrf.mxu0
      %v2017 = vadd.f32 0.0, %v2016
      %2018 = vmatmul.f32.gmra.mxu0 %v363
      %v2019 = vpop.f32.mrf.mxu0
      %v2020 = vadd.f32 0.0, %v2019
      %2021 = vmatmul.f32.gmra.mxu0 %v366
      %v2022 = vpop.f32.mrf.mxu0
      %v2023 = vadd.f32 0.0, %v2022
      %2024 = vdwg.mxu0
      %2025 = vmatpush.msra.mxu0 0.0
      %2026 = vmatpush.msra.mxu0 0.0
      %2027 = vmatpush.msra.mxu0 0.0
      %2028 = vmatpush.msra.mxu0 0.0
      %2029 = vmatpush.msra.mxu0 0.0
      %2030 = vmatpush.msra.mxu0 0.0
      %2031 = vmatpush.msra.mxu0 0.0
      %2032 = vmatpush.msra.mxu0 0.0
      %2033 = vmatpush.msra.mxu0 0.0
      %2034 = vmatpush.msra.mxu0 0.0
      %2035 = vmatpush.msra.mxu0 0.0
      %2036 = vmatpush.msra.mxu0 0.0
      %2037 = vmatpush.msra.mxu0 0.0
      %2038 = vmatpush.msra.mxu0 0.0
      %2039 = vmatpush.msra.mxu0 %v442
      %2040 = vmatpush.msra.mxu0 %v279
      %2041 = vmatmul.f32.gmra.mxu0 %v321
      %v2042 = vpop.f32.mrf.mxu0
      %v2043 = vadd.f32 0.0, %v2042
      %2044 = vmatmul.f32.gmra.mxu0 %v324
      %v2045 = vpop.f32.mrf.mxu0
      %v2046 = vadd.f32 0.0, %v2045
      %2047 = vmatmul.f32.gmra.mxu0 %v327
      %v2048 = vpop.f32.mrf.mxu0
      %v2049 = vadd.f32 0.0, %v2048
      %2050 = vmatmul.f32.gmra.mxu0 %v330
      %v2051 = vpop.f32.mrf.mxu0
      %v2052 = vadd.f32 0.0, %v2051
      %2053 = vmatmul.f32.gmra.mxu0 %v333
      %v2054 = vpop.f32.mrf.mxu0
      %v2055 = vadd.f32 0.0, %v2054
      %2056 = vmatmul.f32.gmra.mxu0 %v336
      %v2057 = vpop.f32.mrf.mxu0
      %v2058 = vadd.f32 0.0, %v2057
      %2059 = vmatmul.f32.gmra.mxu0 %v339
      %v2060 = vpop.f32.mrf.mxu0
      %v2061 = vadd.f32 0.0, %v2060
      %2062 = vmatmul.f32.gmra.mxu0 %v342
      %v2063 = vpop.f32.mrf.mxu0
      %v2064 = vadd.f32 0.0, %v2063
      %2065 = vmatmul.f32.gmra.mxu0 %v345
      %v2066 = vpop.f32.mrf.mxu0
      %v2067 = vadd.f32 0.0, %v2066
      %2068 = vmatmul.f32.gmra.mxu0 %v348
      %v2069 = vpop.f32.mrf.mxu0
      %v2070 = vadd.f32 0.0, %v2069
      %2071 = vmatmul.f32.gmra.mxu0 %v351
      %v2072 = vpop.f32.mrf.mxu0
      %v2073 = vadd.f32 0.0, %v2072
      %2074 = vmatmul.f32.gmra.mxu0 %v354
      %v2075 = vpop.f32.mrf.mxu0
      %v2076 = vadd.f32 0.0, %v2075
      %2077 = vmatmul.f32.gmra.mxu0 %v357
      %v2078 = vpop.f32.mrf.mxu0
      %v2079 = vadd.f32 0.0, %v2078
      %2080 = vmatmul.f32.gmra.mxu0 %v360
      %v2081 = vpop.f32.mrf.mxu0
      %v2082 = vadd.f32 0.0, %v2081
      %2083 = vmatmul.f32.gmra.mxu0 %v363
      %v2084 = vpop.f32.mrf.mxu0
      %v2085 = vadd.f32 0.0, %v2084
      %2086 = vmatmul.f32.gmra.mxu0 %v366
      %v2087 = vpop.f32.mrf.mxu0
      %v2088 = vadd.f32 0.0, %v2087
      %2089 = vdwg.mxu0
      %2090 = vmatpush.msra.mxu0 0.0
      %2091 = vmatpush.msra.mxu0 0.0
      %2092 = vmatpush.msra.mxu0 0.0
      %2093 = vmatpush.msra.mxu0 0.0
      %2094 = vmatpush.msra.mxu0 0.0
      %2095 = vmatpush.msra.mxu0 0.0
      %2096 = vmatpush.msra.mxu0 0.0
      %2097 = vmatpush.msra.mxu0 0.0
      %2098 = vmatpush.msra.mxu0 0.0
      %2099 = vmatpush.msra.mxu0 0.0
      %2100 = vmatpush.msra.mxu0 0.0
      %2101 = vmatpush.msra.mxu0 0.0
      %2102 = vmatpush.msra.mxu0 0.0
      %2103 = vmatpush.msra.mxu0 0.0
      %2104 = vmatpush.msra.mxu0 %v445
      %2105 = vmatpush.msra.mxu0 %v280
      %2106 = vmatmul.f32.gmra.mxu0 %v321
      %v2107 = vpop.f32.mrf.mxu0
      %v2108 = vadd.f32 0.0, %v2107
      %2109 = vmatmul.f32.gmra.mxu0 %v324
      %v2110 = vpop.f32.mrf.mxu0
      %v2111 = vadd.f32 0.0, %v2110
      %2112 = vmatmul.f32.gmra.mxu0 %v327
      %v2113 = vpop.f32.mrf.mxu0
      %v2114 = vadd.f32 0.0, %v2113
      %2115 = vmatmul.f32.gmra.mxu0 %v330
      %v2116 = vpop.f32.mrf.mxu0
      %v2117 = vadd.f32 0.0, %v2116
      %2118 = vmatmul.f32.gmra.mxu0 %v333
      %v2119 = vpop.f32.mrf.mxu0
      %v2120 = vadd.f32 0.0, %v2119
      %2121 = vmatmul.f32.gmra.mxu0 %v336
      %v2122 = vpop.f32.mrf.mxu0
      %v2123 = vadd.f32 0.0, %v2122
      %2124 = vmatmul.f32.gmra.mxu0 %v339
      %v2125 = vpop.f32.mrf.mxu0
      %v2126 = vadd.f32 0.0, %v2125
      %2127 = vmatmul.f32.gmra.mxu0 %v342
      %v2128 = vpop.f32.mrf.mxu0
      %v2129 = vadd.f32 0.0, %v2128
      %2130 = vmatmul.f32.gmra.mxu0 %v345
      %v2131 = vpop.f32.mrf.mxu0
      %v2132 = vadd.f32 0.0, %v2131
      %2133 = vmatmul.f32.gmra.mxu0 %v348
      %v2134 = vpop.f32.mrf.mxu0
      %v2135 = vadd.f32 0.0, %v2134
      %2136 = vmatmul.f32.gmra.mxu0 %v351
      %v2137 = vpop.f32.mrf.mxu0
      %v2138 = vadd.f32 0.0, %v2137
      %2139 = vmatmul.f32.gmra.mxu0 %v354
      %v2140 = vpop.f32.mrf.mxu0
      %v2141 = vadd.f32 0.0, %v2140
      %2142 = vmatmul.f32.gmra.mxu0 %v357
      %v2143 = vpop.f32.mrf.mxu0
      %v2144 = vadd.f32 0.0, %v2143
      %2145 = vmatmul.f32.gmra.mxu0 %v360
      %v2146 = vpop.f32.mrf.mxu0
      %v2147 = vadd.f32 0.0, %v2146
      %2148 = vmatmul.f32.gmra.mxu0 %v363
      %v2149 = vpop.f32.mrf.mxu0
      %v2150 = vadd.f32 0.0, %v2149
      %2151 = vmatmul.f32.gmra.mxu0 %v366
      %v2152 = vpop.f32.mrf.mxu0
      %v2153 = vadd.f32 0.0, %v2152
      %2154 = vdwg.mxu0
      %2155 = vmatpush.msra.mxu0 0.0
      %2156 = vmatpush.msra.mxu0 0.0
      %2157 = vmatpush.msra.mxu0 0.0
      %2158 = vmatpush.msra.mxu0 0.0
      %2159 = vmatpush.msra.mxu0 0.0
      %2160 = vmatpush.msra.mxu0 0.0
      %2161 = vmatpush.msra.mxu0 0.0
      %2162 = vmatpush.msra.mxu0 0.0
      %2163 = vmatpush.msra.mxu0 0.0
      %2164 = vmatpush.msra.mxu0 0.0
      %2165 = vmatpush.msra.mxu0 0.0
      %2166 = vmatpush.msra.mxu0 0.0
      %2167 = vmatpush.msra.mxu0 0.0
      %2168 = vmatpush.msra.mxu0 0.0
      %2169 = vmatpush.msra.mxu0 %v448
      %2170 = vmatpush.msra.mxu0 %v281
      %2171 = vmatmul.f32.gmra.mxu0 %v321
      %v2172 = vpop.f32.mrf.mxu0
      %v2173 = vadd.f32 0.0, %v2172
      %2174 = vmatmul.f32.gmra.mxu0 %v324
      %v2175 = vpop.f32.mrf.mxu0
      %v2176 = vadd.f32 0.0, %v2175
      %2177 = vmatmul.f32.gmra.mxu0 %v327
      %v2178 = vpop.f32.mrf.mxu0
      %v2179 = vadd.f32 0.0, %v2178
      %2180 = vmatmul.f32.gmra.mxu0 %v330
      %v2181 = vpop.f32.mrf.mxu0
      %v2182 = vadd.f32 0.0, %v2181
      %2183 = vmatmul.f32.gmra.mxu0 %v333
      %v2184 = vpop.f32.mrf.mxu0
      %v2185 = vadd.f32 0.0, %v2184
      %2186 = vmatmul.f32.gmra.mxu0 %v336
      %v2187 = vpop.f32.mrf.mxu0
      %v2188 = vadd.f32 0.0, %v2187
      %2189 = vmatmul.f32.gmra.mxu0 %v339
      %v2190 = vpop.f32.mrf.mxu0
      %v2191 = vadd.f32 0.0, %v2190
      %2192 = vmatmul.f32.gmra.mxu0 %v342
      %v2193 = vpop.f32.mrf.mxu0
      %v2194 = vadd.f32 0.0, %v2193
      %2195 = vmatmul.f32.gmra.mxu0 %v345
      %v2196 = vpop.f32.mrf.mxu0
      %v2197 = vadd.f32 0.0, %v2196
      %2198 = vmatmul.f32.gmra.mxu0 %v348
      %v2199 = vpop.f32.mrf.mxu0
      %v2200 = vadd.f32 0.0, %v2199
      %2201 = vmatmul.f32.gmra.mxu0 %v351
      %v2202 = vpop.f32.mrf.mxu0
      %v2203 = vadd.f32 0.0, %v2202
      %2204 = vmatmul.f32.gmra.mxu0 %v354
      %v2205 = vpop.f32.mrf.mxu0
      %v2206 = vadd.f32 0.0, %v2205
      %2207 = vmatmul.f32.gmra.mxu0 %v357
      %v2208 = vpop.f32.mrf.mxu0
      %v2209 = vadd.f32 0.0, %v2208
      %2210 = vmatmul.f32.gmra.mxu0 %v360
      %v2211 = vpop.f32.mrf.mxu0
      %v2212 = vadd.f32 0.0, %v2211
      %2213 = vmatmul.f32.gmra.mxu0 %v363
      %v2214 = vpop.f32.mrf.mxu0
      %v2215 = vadd.f32 0.0, %v2214
      %2216 = vmatmul.f32.gmra.mxu0 %v366
      %v2217 = vpop.f32.mrf.mxu0
      %v2218 = vadd.f32 0.0, %v2217
      %2219 = vdwg.mxu0
      %2220 = vmatpush.msra.mxu0 0.0
      %2221 = vmatpush.msra.mxu0 0.0
      %2222 = vmatpush.msra.mxu0 0.0
      %2223 = vmatpush.msra.mxu0 0.0
      %2224 = vmatpush.msra.mxu0 0.0
      %2225 = vmatpush.msra.mxu0 0.0
      %2226 = vmatpush.msra.mxu0 0.0
      %2227 = vmatpush.msra.mxu0 0.0
      %2228 = vmatpush.msra.mxu0 0.0
      %2229 = vmatpush.msra.mxu0 0.0
      %2230 = vmatpush.msra.mxu0 0.0
      %2231 = vmatpush.msra.mxu0 0.0
      %2232 = vmatpush.msra.mxu0 0.0
      %2233 = vmatpush.msra.mxu0 0.0
      %2234 = vmatpush.msra.mxu0 %v451
      %2235 = vmatpush.msra.mxu0 %v282
      %2236 = vmatmul.f32.gmra.mxu0 %v321
      %v2237 = vpop.f32.mrf.mxu0
      %v2238 = vadd.f32 0.0, %v2237
      %2239 = vmatmul.f32.gmra.mxu0 %v324
      %v2240 = vpop.f32.mrf.mxu0
      %v2241 = vadd.f32 0.0, %v2240
      %2242 = vmatmul.f32.gmra.mxu0 %v327
      %v2243 = vpop.f32.mrf.mxu0
      %v2244 = vadd.f32 0.0, %v2243
      %2245 = vmatmul.f32.gmra.mxu0 %v330
      %v2246 = vpop.f32.mrf.mxu0
      %v2247 = vadd.f32 0.0, %v2246
      %2248 = vmatmul.f32.gmra.mxu0 %v333
      %v2249 = vpop.f32.mrf.mxu0
      %v2250 = vadd.f32 0.0, %v2249
      %2251 = vmatmul.f32.gmra.mxu0 %v336
      %v2252 = vpop.f32.mrf.mxu0
      %v2253 = vadd.f32 0.0, %v2252
      %2254 = vmatmul.f32.gmra.mxu0 %v339
      %v2255 = vpop.f32.mrf.mxu0
      %v2256 = vadd.f32 0.0, %v2255
      %2257 = vmatmul.f32.gmra.mxu0 %v342
      %v2258 = vpop.f32.mrf.mxu0
      %v2259 = vadd.f32 0.0, %v2258
      %2260 = vmatmul.f32.gmra.mxu0 %v345
      %v2261 = vpop.f32.mrf.mxu0
      %v2262 = vadd.f32 0.0, %v2261
      %2263 = vmatmul.f32.gmra.mxu0 %v348
      %v2264 = vpop.f32.mrf.mxu0
      %v2265 = vadd.f32 0.0, %v2264
      %2266 = vmatmul.f32.gmra.mxu0 %v351
      %v2267 = vpop.f32.mrf.mxu0
      %v2268 = vadd.f32 0.0, %v2267
      %2269 = vmatmul.f32.gmra.mxu0 %v354
      %v2270 = vpop.f32.mrf.mxu0
      %v2271 = vadd.f32 0.0, %v2270
      %2272 = vmatmul.f32.gmra.mxu0 %v357
      %v2273 = vpop.f32.mrf.mxu0
      %v2274 = vadd.f32 0.0, %v2273
      %2275 = vmatmul.f32.gmra.mxu0 %v360
      %v2276 = vpop.f32.mrf.mxu0
      %v2277 = vadd.f32 0.0, %v2276
      %2278 = vmatmul.f32.gmra.mxu0 %v363
      %v2279 = vpop.f32.mrf.mxu0
      %v2280 = vadd.f32 0.0, %v2279
      %2281 = vmatmul.f32.gmra.mxu0 %v366
      %v2282 = vpop.f32.mrf.mxu0
      %v2283 = vadd.f32 0.0, %v2282
      %2284 = vdwg.mxu0
      %2285 = vmatpush.msra.mxu0 0.0
      %2286 = vmatpush.msra.mxu0 0.0
      %2287 = vmatpush.msra.mxu0 0.0
      %2288 = vmatpush.msra.mxu0 0.0
      %2289 = vmatpush.msra.mxu0 0.0
      %2290 = vmatpush.msra.mxu0 0.0
      %2291 = vmatpush.msra.mxu0 0.0
      %2292 = vmatpush.msra.mxu0 0.0
      %2293 = vmatpush.msra.mxu0 0.0
      %2294 = vmatpush.msra.mxu0 0.0
      %2295 = vmatpush.msra.mxu0 0.0
      %2296 = vmatpush.msra.mxu0 0.0
      %2297 = vmatpush.msra.mxu0 0.0
      %2298 = vmatpush.msra.mxu0 0.0
      %2299 = vmatpush.msra.mxu0 %v454
      %2300 = vmatpush.msra.mxu0 %v283
      %2301 = vmatmul.f32.gmra.mxu0 %v321
      %v2302 = vpop.f32.mrf.mxu0
      %v2303 = vadd.f32 0.0, %v2302
      %2304 = vmatmul.f32.gmra.mxu0 %v324
      %v2305 = vpop.f32.mrf.mxu0
      %v2306 = vadd.f32 0.0, %v2305
      %2307 = vmatmul.f32.gmra.mxu0 %v327
      %v2308 = vpop.f32.mrf.mxu0
      %v2309 = vadd.f32 0.0, %v2308
      %2310 = vmatmul.f32.gmra.mxu0 %v330
      %v2311 = vpop.f32.mrf.mxu0
      %v2312 = vadd.f32 0.0, %v2311
      %2313 = vmatmul.f32.gmra.mxu0 %v333
      %v2314 = vpop.f32.mrf.mxu0
      %v2315 = vadd.f32 0.0, %v2314
      %2316 = vmatmul.f32.gmra.mxu0 %v336
      %v2317 = vpop.f32.mrf.mxu0
      %v2318 = vadd.f32 0.0, %v2317
      %2319 = vmatmul.f32.gmra.mxu0 %v339
      %v2320 = vpop.f32.mrf.mxu0
      %v2321 = vadd.f32 0.0, %v2320
      %2322 = vmatmul.f32.gmra.mxu0 %v342
      %v2323 = vpop.f32.mrf.mxu0
      %v2324 = vadd.f32 0.0, %v2323
      %2325 = vmatmul.f32.gmra.mxu0 %v345
      %v2326 = vpop.f32.mrf.mxu0
      %v2327 = vadd.f32 0.0, %v2326
      %2328 = vmatmul.f32.gmra.mxu0 %v348
      %v2329 = vpop.f32.mrf.mxu0
      %v2330 = vadd.f32 0.0, %v2329
      %2331 = vmatmul.f32.gmra.mxu0 %v351
      %v2332 = vpop.f32.mrf.mxu0
      %v2333 = vadd.f32 0.0, %v2332
      %2334 = vmatmul.f32.gmra.mxu0 %v354
      %v2335 = vpop.f32.mrf.mxu0
      %v2336 = vadd.f32 0.0, %v2335
      %2337 = vmatmul.f32.gmra.mxu0 %v357
      %v2338 = vpop.f32.mrf.mxu0
      %v2339 = vadd.f32 0.0, %v2338
      %2340 = vmatmul.f32.gmra.mxu0 %v360
      %v2341 = vpop.f32.mrf.mxu0
      %v2342 = vadd.f32 0.0, %v2341
      %2343 = vmatmul.f32.gmra.mxu0 %v363
      %v2344 = vpop.f32.mrf.mxu0
      %v2345 = vadd.f32 0.0, %v2344
      %2346 = vmatmul.f32.gmra.mxu0 %v366
      %v2347 = vpop.f32.mrf.mxu0
      %v2348 = vadd.f32 0.0, %v2347
      %2349 = vdwg.mxu0
      %2350 = vmatpush.msra.mxu0 0.0
      %2351 = vmatpush.msra.mxu0 0.0
      %2352 = vmatpush.msra.mxu0 0.0
      %2353 = vmatpush.msra.mxu0 0.0
      %2354 = vmatpush.msra.mxu0 0.0
      %2355 = vmatpush.msra.mxu0 0.0
      %2356 = vmatpush.msra.mxu0 0.0
      %2357 = vmatpush.msra.mxu0 0.0
      %2358 = vmatpush.msra.mxu0 0.0
      %2359 = vmatpush.msra.mxu0 0.0
      %2360 = vmatpush.msra.mxu0 0.0
      %2361 = vmatpush.msra.mxu0 0.0
      %2362 = vmatpush.msra.mxu0 0.0
      %2363 = vmatpush.msra.mxu0 0.0
      %2364 = vmatpush.msra.mxu0 %v457
      %2365 = vmatpush.msra.mxu0 %v284
      %2366 = vmatmul.f32.gmra.mxu0 %v321
      %v2367 = vpop.f32.mrf.mxu0
      %v2368 = vadd.f32 0.0, %v2367
      %2369 = vmatmul.f32.gmra.mxu0 %v324
      %v2370 = vpop.f32.mrf.mxu0
      %v2371 = vadd.f32 0.0, %v2370
      %2372 = vmatmul.f32.gmra.mxu0 %v327
      %v2373 = vpop.f32.mrf.mxu0
      %v2374 = vadd.f32 0.0, %v2373
      %2375 = vmatmul.f32.gmra.mxu0 %v330
      %v2376 = vpop.f32.mrf.mxu0
      %v2377 = vadd.f32 0.0, %v2376
      %2378 = vmatmul.f32.gmra.mxu0 %v333
      %v2379 = vpop.f32.mrf.mxu0
      %v2380 = vadd.f32 0.0, %v2379
      %2381 = vmatmul.f32.gmra.mxu0 %v336
      %v2382 = vpop.f32.mrf.mxu0
      %v2383 = vadd.f32 0.0, %v2382
      %2384 = vmatmul.f32.gmra.mxu0 %v339
      %v2385 = vpop.f32.mrf.mxu0
      %v2386 = vadd.f32 0.0, %v2385
      %2387 = vmatmul.f32.gmra.mxu0 %v342
      %v2388 = vpop.f32.mrf.mxu0
      %v2389 = vadd.f32 0.0, %v2388
      %2390 = vmatmul.f32.gmra.mxu0 %v345
      %v2391 = vpop.f32.mrf.mxu0
      %v2392 = vadd.f32 0.0, %v2391
      %2393 = vmatmul.f32.gmra.mxu0 %v348
      %v2394 = vpop.f32.mrf.mxu0
      %v2395 = vadd.f32 0.0, %v2394
      %2396 = vmatmul.f32.gmra.mxu0 %v351
      %v2397 = vpop.f32.mrf.mxu0
      %v2398 = vadd.f32 0.0, %v2397
      %2399 = vmatmul.f32.gmra.mxu0 %v354
      %v2400 = vpop.f32.mrf.mxu0
      %v2401 = vadd.f32 0.0, %v2400
      %2402 = vmatmul.f32.gmra.mxu0 %v357
      %v2403 = vpop.f32.mrf.mxu0
      %v2404 = vadd.f32 0.0, %v2403
      %2405 = vmatmul.f32.gmra.mxu0 %v360
      %v2406 = vpop.f32.mrf.mxu0
      %v2407 = vadd.f32 0.0, %v2406
      %2408 = vmatmul.f32.gmra.mxu0 %v363
      %v2409 = vpop.f32.mrf.mxu0
      %v2410 = vadd.f32 0.0, %v2409
      %2411 = vmatmul.f32.gmra.mxu0 %v366
      %v2412 = vpop.f32.mrf.mxu0
      %v2413 = vadd.f32 0.0, %v2412
      %2414 = vdwg.mxu0
      %2415 = vmatpush.msra.mxu0 0.0
      %2416 = vmatpush.msra.mxu0 0.0
      %2417 = vmatpush.msra.mxu0 0.0
      %2418 = vmatpush.msra.mxu0 0.0
      %2419 = vmatpush.msra.mxu0 0.0
      %2420 = vmatpush.msra.mxu0 0.0
      %2421 = vmatpush.msra.mxu0 0.0
      %2422 = vmatpush.msra.mxu0 0.0
      %2423 = vmatpush.msra.mxu0 0.0
      %2424 = vmatpush.msra.mxu0 0.0
      %2425 = vmatpush.msra.mxu0 0.0
      %2426 = vmatpush.msra.mxu0 0.0
      %2427 = vmatpush.msra.mxu0 0.0
      %2428 = vmatpush.msra.mxu0 0.0
      %2429 = vmatpush.msra.mxu0 %v460
      %2430 = vmatpush.msra.mxu0 %v285
      %2431 = vmatmul.f32.gmra.mxu0 %v321
      %v2432 = vpop.f32.mrf.mxu0
      %v2433 = vadd.f32 0.0, %v2432
      %2434 = vmatmul.f32.gmra.mxu0 %v324
      %v2435 = vpop.f32.mrf.mxu0
      %v2436 = vadd.f32 0.0, %v2435
      %2437 = vmatmul.f32.gmra.mxu0 %v327
      %v2438 = vpop.f32.mrf.mxu0
      %v2439 = vadd.f32 0.0, %v2438
      %2440 = vmatmul.f32.gmra.mxu0 %v330
      %v2441 = vpop.f32.mrf.mxu0
      %v2442 = vadd.f32 0.0, %v2441
      %2443 = vmatmul.f32.gmra.mxu0 %v333
      %v2444 = vpop.f32.mrf.mxu0
      %v2445 = vadd.f32 0.0, %v2444
      %2446 = vmatmul.f32.gmra.mxu0 %v336
      %v2447 = vpop.f32.mrf.mxu0
      %v2448 = vadd.f32 0.0, %v2447
      %2449 = vmatmul.f32.gmra.mxu0 %v339
      %v2450 = vpop.f32.mrf.mxu0
      %v2451 = vadd.f32 0.0, %v2450
      %2452 = vmatmul.f32.gmra.mxu0 %v342
      %v2453 = vpop.f32.mrf.mxu0
      %v2454 = vadd.f32 0.0, %v2453
      %2455 = vmatmul.f32.gmra.mxu0 %v345
      %v2456 = vpop.f32.mrf.mxu0
      %v2457 = vadd.f32 0.0, %v2456
      %2458 = vmatmul.f32.gmra.mxu0 %v348
      %v2459 = vpop.f32.mrf.mxu0
      %v2460 = vadd.f32 0.0, %v2459
      %2461 = vmatmul.f32.gmra.mxu0 %v351
      %v2462 = vpop.f32.mrf.mxu0
      %v2463 = vadd.f32 0.0, %v2462
      %2464 = vmatmul.f32.gmra.mxu0 %v354
      %v2465 = vpop.f32.mrf.mxu0
      %v2466 = vadd.f32 0.0, %v2465
      %2467 = vmatmul.f32.gmra.mxu0 %v357
      %v2468 = vpop.f32.mrf.mxu0
      %v2469 = vadd.f32 0.0, %v2468
      %2470 = vmatmul.f32.gmra.mxu0 %v360
      %v2471 = vpop.f32.mrf.mxu0
      %v2472 = vadd.f32 0.0, %v2471
      %2473 = vmatmul.f32.gmra.mxu0 %v363
      %v2474 = vpop.f32.mrf.mxu0
      %v2475 = vadd.f32 0.0, %v2474
      %2476 = vmatmul.f32.gmra.mxu0 %v366
      %v2477 = vpop.f32.mrf.mxu0
      %v2478 = vadd.f32 0.0, %v2477
      %2479 = vdwg.mxu0
      %2480 = vmatpush.msra.mxu0 0.0
      %2481 = vmatpush.msra.mxu0 0.0
      %2482 = vmatpush.msra.mxu0 0.0
      %2483 = vmatpush.msra.mxu0 0.0
      %2484 = vmatpush.msra.mxu0 0.0
      %2485 = vmatpush.msra.mxu0 0.0
      %2486 = vmatpush.msra.mxu0 0.0
      %2487 = vmatpush.msra.mxu0 0.0
      %2488 = vmatpush.msra.mxu0 0.0
      %2489 = vmatpush.msra.mxu0 0.0
      %2490 = vmatpush.msra.mxu0 0.0
      %2491 = vmatpush.msra.mxu0 0.0
      %2492 = vmatpush.msra.mxu0 0.0
      %2493 = vmatpush.msra.mxu0 0.0
      %2494 = vmatpush.msra.mxu0 %v463
      %2495 = vmatpush.msra.mxu0 %v286
      %2496 = vmatmul.f32.gmra.mxu0 %v321
      %v2497 = vpop.f32.mrf.mxu0
      %v2498 = vadd.f32 0.0, %v2497
      %2499 = vmatmul.f32.gmra.mxu0 %v324
      %v2500 = vpop.f32.mrf.mxu0
      %v2501 = vadd.f32 0.0, %v2500
      %2502 = vmatmul.f32.gmra.mxu0 %v327
      %v2503 = vpop.f32.mrf.mxu0
      %v2504 = vadd.f32 0.0, %v2503
      %2505 = vmatmul.f32.gmra.mxu0 %v330
      %v2506 = vpop.f32.mrf.mxu0
      %v2507 = vadd.f32 0.0, %v2506
      %2508 = vmatmul.f32.gmra.mxu0 %v333
      %v2509 = vpop.f32.mrf.mxu0
      %v2510 = vadd.f32 0.0, %v2509
      %2511 = vmatmul.f32.gmra.mxu0 %v336
      %v2512 = vpop.f32.mrf.mxu0
      %v2513 = vadd.f32 0.0, %v2512
      %2514 = vmatmul.f32.gmra.mxu0 %v339
      %v2515 = vpop.f32.mrf.mxu0
      %v2516 = vadd.f32 0.0, %v2515
      %2517 = vmatmul.f32.gmra.mxu0 %v342
      %v2518 = vpop.f32.mrf.mxu0
      %v2519 = vadd.f32 0.0, %v2518
      %2520 = vmatmul.f32.gmra.mxu0 %v345
      %v2521 = vpop.f32.mrf.mxu0
      %v2522 = vadd.f32 0.0, %v2521
      %2523 = vmatmul.f32.gmra.mxu0 %v348
      %v2524 = vpop.f32.mrf.mxu0
      %v2525 = vadd.f32 0.0, %v2524
      %2526 = vmatmul.f32.gmra.mxu0 %v351
      %v2527 = vpop.f32.mrf.mxu0
      %v2528 = vadd.f32 0.0, %v2527
      %2529 = vmatmul.f32.gmra.mxu0 %v354
      %v2530 = vpop.f32.mrf.mxu0
      %v2531 = vadd.f32 0.0, %v2530
      %2532 = vmatmul.f32.gmra.mxu0 %v357
      %v2533 = vpop.f32.mrf.mxu0
      %v2534 = vadd.f32 0.0, %v2533
      %2535 = vmatmul.f32.gmra.mxu0 %v360
      %v2536 = vpop.f32.mrf.mxu0
      %v2537 = vadd.f32 0.0, %v2536
      %2538 = vmatmul.f32.gmra.mxu0 %v363
      %v2539 = vpop.f32.mrf.mxu0
      %v2540 = vadd.f32 0.0, %v2539
      %2541 = vmatmul.f32.gmra.mxu0 %v366
      %v2542 = vpop.f32.mrf.mxu0
      %v2543 = vadd.f32 0.0, %v2542
      %2544 = vdwg.mxu0
      %2545 = vst [vmem:[%s236] sm:$0xff] %v483
      %2546 = vst [vmem:[%s236 + $0x8] sm:$0xff] %v548
      %2547 = vst [vmem:[%s236 + $0x10] sm:$0xff] %v613
      %2548 = vst [vmem:[%s236 + $0x18] sm:$0xff] %v678
      %2549 = vst [vmem:[%s236 + $0x20] sm:$0xff] %v743
      %2550 = vst [vmem:[%s236 + $0x28] sm:$0xff] %v808
      %2551 = vst [vmem:[%s236 + $0x30] sm:$0xff] %v873
      %2552 = vst [vmem:[%s236 + $0x38] sm:$0xff] %v938
      %2553 = vst [vmem:[%s236 + $0x40] sm:$0xff] %v1003
      %2554 = vst [vmem:[%s236 + $0x48] sm:$0xff] %v1068
      %2555 = vst [vmem:[%s236 + $0x50] sm:$0xff] %v1133
      %2556 = vst [vmem:[%s236 + $0x58] sm:$0xff] %v1198
      %2557 = vst [vmem:[%s236 + $0x60] sm:$0xff] %v1263
      %2558 = vst [vmem:[%s236 + $0x68] sm:$0xff] %v1328
      %2559 = vst [vmem:[%s236 + $0x70] sm:$0xff] %v1393
      %2560 = vst [vmem:[%s236 + $0x78] sm:$0xff] %v1458
      %2561 = vst [vmem:[%s236 + $0x80] sm:$0xff] %v1523
      %2562 = vst [vmem:[%s236 + $0x88] sm:$0xff] %v1588
      %2563 = vst [vmem:[%s236 + $0x90] sm:$0xff] %v1653
      %2564 = vst [vmem:[%s236 + $0x98] sm:$0xff] %v1718
      %2565 = vst [vmem:[%s236 + $0xa0] sm:$0xff] %v1783
      %2566 = vst [vmem:[%s236 + $0xa8] sm:$0xff] %v1848
      %2567 = vst [vmem:[%s236 + $0xb0] sm:$0xff] %v1913
      %2568 = vst [vmem:[%s236 + $0xb8] sm:$0xff] %v1978
      %2569 = vst [vmem:[%s236 + $0xc0] sm:$0xff] %v2043
      %2570 = vst [vmem:[%s236 + $0xc8] sm:$0xff] %v2108
      %2571 = vst [vmem:[%s236 + $0xd0] sm:$0xff] %v2173
      %2572 = vst [vmem:[%s236 + $0xd8] sm:$0xff] %v2238
      %2573 = vst [vmem:[%s236 + $0xe0] sm:$0xff] %v2303
      %2574 = vst [vmem:[%s236 + $0xe8] sm:$0xff] %v2368
      %2575 = vst [vmem:[%s236 + $0xf0] sm:$0xff] %v2433
      %2576 = vst [vmem:[%s236 + $0xf8] sm:$0xff] %v2498
      %2577 = vst [vmem:[%s236 + $0x100] sm:$0xff] %v486
      %2578 = vst [vmem:[%s236 + $0x108] sm:$0xff] %v551
      %2579 = vst [vmem:[%s236 + $0x110] sm:$0xff] %v616
      %2580 = vst [vmem:[%s236 + $0x118] sm:$0xff] %v681
      %2581 = vst [vmem:[%s236 + $0x120] sm:$0xff] %v746
      %2582 = vst [vmem:[%s236 + $0x128] sm:$0xff] %v811
      %2583 = vst [vmem:[%s236 + $0x130] sm:$0xff] %v876
      %2584 = vst [vmem:[%s236 + $0x138] sm:$0xff] %v941
      %2585 = vst [vmem:[%s236 + $0x140] sm:$0xff] %v1006
      %2586 = vst [vmem:[%s236 + $0x148] sm:$0xff] %v1071
      %2587 = vst [vmem:[%s236 + $0x150] sm:$0xff] %v1136
      %2588 = vst [vmem:[%s236 + $0x158] sm:$0xff] %v1201
      %2589 = vst [vmem:[%s236 + $0x160] sm:$0xff] %v1266
      %2590 = vst [vmem:[%s236 + $0x168] sm:$0xff] %v1331
      %2591 = vst [vmem:[%s236 + $0x170] sm:$0xff] %v1396
      %2592 = vst [vmem:[%s236 + $0x178] sm:$0xff] %v1461
      %2593 = vst [vmem:[%s236 + $0x180] sm:$0xff] %v1526
      %2594 = vst [vmem:[%s236 + $0x188] sm:$0xff] %v1591
      %2595 = vst [vmem:[%s236 + $0x190] sm:$0xff] %v1656
      %2596 = vst [vmem:[%s236 + $0x198] sm:$0xff] %v1721
      %2597 = vst [vmem:[%s236 + $0x1a0] sm:$0xff] %v1786
      %2598 = vst [vmem:[%s236 + $0x1a8] sm:$0xff] %v1851
      %2599 = vst [vmem:[%s236 + $0x1b0] sm:$0xff] %v1916
      %2600 = vst [vmem:[%s236 + $0x1b8] sm:$0xff] %v1981
      %2601 = vst [vmem:[%s236 + $0x1c0] sm:$0xff] %v2046
      %2602 = vst [vmem:[%s236 + $0x1c8] sm:$0xff] %v2111
      %2603 = vst [vmem:[%s236 + $0x1d0] sm:$0xff] %v2176
      %2604 = vst [vmem:[%s236 + $0x1d8] sm:$0xff] %v2241
      %2605 = vst [vmem:[%s236 + $0x1e0] sm:$0xff] %v2306
      %2606 = vst [vmem:[%s236 + $0x1e8] sm:$0xff] %v2371
      %2607 = vst [vmem:[%s236 + $0x1f0] sm:$0xff] %v2436
      %2608 = vst [vmem:[%s236 + $0x1f8] sm:$0xff] %v2501
      %2609 = vst [vmem:[%s236 + $0x200] sm:$0xff] %v489
      %2610 = vst [vmem:[%s236 + $0x208] sm:$0xff] %v554
      %2611 = vst [vmem:[%s236 + $0x210] sm:$0xff] %v619
      %2612 = vst [vmem:[%s236 + $0x218] sm:$0xff] %v684
      %2613 = vst [vmem:[%s236 + $0x220] sm:$0xff] %v749
      %2614 = vst [vmem:[%s236 + $0x228] sm:$0xff] %v814
      %2615 = vst [vmem:[%s236 + $0x230] sm:$0xff] %v879
      %2616 = vst [vmem:[%s236 + $0x238] sm:$0xff] %v944
      %2617 = vst [vmem:[%s236 + $0x240] sm:$0xff] %v1009
      %2618 = vst [vmem:[%s236 + $0x248] sm:$0xff] %v1074
      %2619 = vst [vmem:[%s236 + $0x250] sm:$0xff] %v1139
      %2620 = vst [vmem:[%s236 + $0x258] sm:$0xff] %v1204
      %2621 = vst [vmem:[%s236 + $0x260] sm:$0xff] %v1269
      %2622 = vst [vmem:[%s236 + $0x268] sm:$0xff] %v1334
      %2623 = vst [vmem:[%s236 + $0x270] sm:$0xff] %v1399
      %2624 = vst [vmem:[%s236 + $0x278] sm:$0xff] %v1464
      %2625 = vst [vmem:[%s236 + $0x280] sm:$0xff] %v1529
      %2626 = vst [vmem:[%s236 + $0x288] sm:$0xff] %v1594
      %2627 = vst [vmem:[%s236 + $0x290] sm:$0xff] %v1659
      %2628 = vst [vmem:[%s236 + $0x298] sm:$0xff] %v1724
      %2629 = vst [vmem:[%s236 + $0x2a0] sm:$0xff] %v1789
      %2630 = vst [vmem:[%s236 + $0x2a8] sm:$0xff] %v1854
      %2631 = vst [vmem:[%s236 + $0x2b0] sm:$0xff] %v1919
      %2632 = vst [vmem:[%s236 + $0x2b8] sm:$0xff] %v1984
      %2633 = vst [vmem:[%s236 + $0x2c0] sm:$0xff] %v2049
      %2634 = vst [vmem:[%s236 + $0x2c8] sm:$0xff] %v2114
      %2635 = vst [vmem:[%s236 + $0x2d0] sm:$0xff] %v2179
      %2636 = vst [vmem:[%s236 + $0x2d8] sm:$0xff] %v2244
      %2637 = vst [vmem:[%s236 + $0x2e0] sm:$0xff] %v2309
      %2638 = vst [vmem:[%s236 + $0x2e8] sm:$0xff] %v2374
      %2639 = vst [vmem:[%s236 + $0x2f0] sm:$0xff] %v2439
      %2640 = vst [vmem:[%s236 + $0x2f8] sm:$0xff] %v2504
      %2641 = vst [vmem:[%s236 + $0x300] sm:$0xff] %v492
      %2642 = vst [vmem:[%s236 + $0x308] sm:$0xff] %v557
      %2643 = vst [vmem:[%s236 + $0x310] sm:$0xff] %v622
      %2644 = vst [vmem:[%s236 + $0x318] sm:$0xff] %v687
      %2645 = vst [vmem:[%s236 + $0x320] sm:$0xff] %v752
      %2646 = vst [vmem:[%s236 + $0x328] sm:$0xff] %v817
      %2647 = vst [vmem:[%s236 + $0x330] sm:$0xff] %v882
      %2648 = vst [vmem:[%s236 + $0x338] sm:$0xff] %v947
      %2649 = vst [vmem:[%s236 + $0x340] sm:$0xff] %v1012
      %2650 = vst [vmem:[%s236 + $0x348] sm:$0xff] %v1077
      %2651 = vst [vmem:[%s236 + $0x350] sm:$0xff] %v1142
      %2652 = vst [vmem:[%s236 + $0x358] sm:$0xff] %v1207
      %2653 = vst [vmem:[%s236 + $0x360] sm:$0xff] %v1272
      %2654 = vst [vmem:[%s236 + $0x368] sm:$0xff] %v1337
      %2655 = vst [vmem:[%s236 + $0x370] sm:$0xff] %v1402
      %2656 = vst [vmem:[%s236 + $0x378] sm:$0xff] %v1467
      %2657 = vst [vmem:[%s236 + $0x380] sm:$0xff] %v1532
      %2658 = vst [vmem:[%s236 + $0x388] sm:$0xff] %v1597
      %2659 = vst [vmem:[%s236 + $0x390] sm:$0xff] %v1662
      %2660 = vst [vmem:[%s236 + $0x398] sm:$0xff] %v1727
      %2661 = vst [vmem:[%s236 + $0x3a0] sm:$0xff] %v1792
      %2662 = vst [vmem:[%s236 + $0x3a8] sm:$0xff] %v1857
      %2663 = vst [vmem:[%s236 + $0x3b0] sm:$0xff] %v1922
      %2664 = vst [vmem:[%s236 + $0x3b8] sm:$0xff] %v1987
      %2665 = vst [vmem:[%s236 + $0x3c0] sm:$0xff] %v2052
      %2666 = vst [vmem:[%s236 + $0x3c8] sm:$0xff] %v2117
      %2667 = vst [vmem:[%s236 + $0x3d0] sm:$0xff] %v2182
      %2668 = vst [vmem:[%s236 + $0x3d8] sm:$0xff] %v2247
      %2669 = vst [vmem:[%s236 + $0x3e0] sm:$0xff] %v2312
      %2670 = vst [vmem:[%s236 + $0x3e8] sm:$0xff] %v2377
      %2671 = vst [vmem:[%s236 + $0x3f0] sm:$0xff] %v2442
      %2672 = vst [vmem:[%s236 + $0x3f8] sm:$0xff] %v2507
      %2673 = vst [vmem:[%s236 + $0x400] sm:$0xff] %v495
      %2674 = vst [vmem:[%s236 + $0x408] sm:$0xff] %v560
      %2675 = vst [vmem:[%s236 + $0x410] sm:$0xff] %v625
      %2676 = vst [vmem:[%s236 + $0x418] sm:$0xff] %v690
      %2677 = vst [vmem:[%s236 + $0x420] sm:$0xff] %v755
      %2678 = vst [vmem:[%s236 + $0x428] sm:$0xff] %v820
      %2679 = vst [vmem:[%s236 + $0x430] sm:$0xff] %v885
      %2680 = vst [vmem:[%s236 + $0x438] sm:$0xff] %v950
      %2681 = vst [vmem:[%s236 + $0x440] sm:$0xff] %v1015
      %2682 = vst [vmem:[%s236 + $0x448] sm:$0xff] %v1080
      %2683 = vst [vmem:[%s236 + $0x450] sm:$0xff] %v1145
      %2684 = vst [vmem:[%s236 + $0x458] sm:$0xff] %v1210
      %2685 = vst [vmem:[%s236 + $0x460] sm:$0xff] %v1275
      %2686 = vst [vmem:[%s236 + $0x468] sm:$0xff] %v1340
      %2687 = vst [vmem:[%s236 + $0x470] sm:$0xff] %v1405
      %2688 = vst [vmem:[%s236 + $0x478] sm:$0xff] %v1470
      %2689 = vst [vmem:[%s236 + $0x480] sm:$0xff] %v1535
      %2690 = vst [vmem:[%s236 + $0x488] sm:$0xff] %v1600
      %2691 = vst [vmem:[%s236 + $0x490] sm:$0xff] %v1665
      %2692 = vst [vmem:[%s236 + $0x498] sm:$0xff] %v1730
      %2693 = vst [vmem:[%s236 + $0x4a0] sm:$0xff] %v1795
      %2694 = vst [vmem:[%s236 + $0x4a8] sm:$0xff] %v1860
      %2695 = vst [vmem:[%s236 + $0x4b0] sm:$0xff] %v1925
      %2696 = vst [vmem:[%s236 + $0x4b8] sm:$0xff] %v1990
      %2697 = vst [vmem:[%s236 + $0x4c0] sm:$0xff] %v2055
      %2698 = vst [vmem:[%s236 + $0x4c8] sm:$0xff] %v2120
      %2699 = vst [vmem:[%s236 + $0x4d0] sm:$0xff] %v2185
      %2700 = vst [vmem:[%s236 + $0x4d8] sm:$0xff] %v2250
      %2701 = vst [vmem:[%s236 + $0x4e0] sm:$0xff] %v2315
      %2702 = vst [vmem:[%s236 + $0x4e8] sm:$0xff] %v2380
      %2703 = vst [vmem:[%s236 + $0x4f0] sm:$0xff] %v2445
      %2704 = vst [vmem:[%s236 + $0x4f8] sm:$0xff] %v2510
      %2705 = vst [vmem:[%s236 + $0x500] sm:$0xff] %v498
      %2706 = vst [vmem:[%s236 + $0x508] sm:$0xff] %v563
      %2707 = vst [vmem:[%s236 + $0x510] sm:$0xff] %v628
      %2708 = vst [vmem:[%s236 + $0x518] sm:$0xff] %v693
      %2709 = vst [vmem:[%s236 + $0x520] sm:$0xff] %v758
      %2710 = vst [vmem:[%s236 + $0x528] sm:$0xff] %v823
      %2711 = vst [vmem:[%s236 + $0x530] sm:$0xff] %v888
      %2712 = vst [vmem:[%s236 + $0x538] sm:$0xff] %v953
      %2713 = vst [vmem:[%s236 + $0x540] sm:$0xff] %v1018
      %2714 = vst [vmem:[%s236 + $0x548] sm:$0xff] %v1083
      %2715 = vst [vmem:[%s236 + $0x550] sm:$0xff] %v1148
      %2716 = vst [vmem:[%s236 + $0x558] sm:$0xff] %v1213
      %2717 = vst [vmem:[%s236 + $0x560] sm:$0xff] %v1278
      %2718 = vst [vmem:[%s236 + $0x568] sm:$0xff] %v1343
      %2719 = vst [vmem:[%s236 + $0x570] sm:$0xff] %v1408
      %2720 = vst [vmem:[%s236 + $0x578] sm:$0xff] %v1473
      %2721 = vst [vmem:[%s236 + $0x580] sm:$0xff] %v1538
      %2722 = vst [vmem:[%s236 + $0x588] sm:$0xff] %v1603
      %2723 = vst [vmem:[%s236 + $0x590] sm:$0xff] %v1668
      %2724 = vst [vmem:[%s236 + $0x598] sm:$0xff] %v1733
      %2725 = vst [vmem:[%s236 + $0x5a0] sm:$0xff] %v1798
      %2726 = vst [vmem:[%s236 + $0x5a8] sm:$0xff] %v1863
      %2727 = vst [vmem:[%s236 + $0x5b0] sm:$0xff] %v1928
      %2728 = vst [vmem:[%s236 + $0x5b8] sm:$0xff] %v1993
      %2729 = vst [vmem:[%s236 + $0x5c0] sm:$0xff] %v2058
      %2730 = vst [vmem:[%s236 + $0x5c8] sm:$0xff] %v2123
      %2731 = vst [vmem:[%s236 + $0x5d0] sm:$0xff] %v2188
      %2732 = vst [vmem:[%s236 + $0x5d8] sm:$0xff] %v2253
      %2733 = vst [vmem:[%s236 + $0x5e0] sm:$0xff] %v2318
      %2734 = vst [vmem:[%s236 + $0x5e8] sm:$0xff] %v2383
      %2735 = vst [vmem:[%s236 + $0x5f0] sm:$0xff] %v2448
      %2736 = vst [vmem:[%s236 + $0x5f8] sm:$0xff] %v2513
      %2737 = vst [vmem:[%s236 + $0x600] sm:$0xff] %v501
      %2738 = vst [vmem:[%s236 + $0x608] sm:$0xff] %v566
      %2739 = vst [vmem:[%s236 + $0x610] sm:$0xff] %v631
      %2740 = vst [vmem:[%s236 + $0x618] sm:$0xff] %v696
      %2741 = vst [vmem:[%s236 + $0x620] sm:$0xff] %v761
      %2742 = vst [vmem:[%s236 + $0x628] sm:$0xff] %v826
      %2743 = vst [vmem:[%s236 + $0x630] sm:$0xff] %v891
      %2744 = vst [vmem:[%s236 + $0x638] sm:$0xff] %v956
      %2745 = vst [vmem:[%s236 + $0x640] sm:$0xff] %v1021
      %2746 = vst [vmem:[%s236 + $0x648] sm:$0xff] %v1086
      %2747 = vst [vmem:[%s236 + $0x650] sm:$0xff] %v1151
      %2748 = vst [vmem:[%s236 + $0x658] sm:$0xff] %v1216
      %2749 = vst [vmem:[%s236 + $0x660] sm:$0xff] %v1281
      %2750 = vst [vmem:[%s236 + $0x668] sm:$0xff] %v1346
      %2751 = vst [vmem:[%s236 + $0x670] sm:$0xff] %v1411
      %2752 = vst [vmem:[%s236 + $0x678] sm:$0xff] %v1476
      %2753 = vst [vmem:[%s236 + $0x680] sm:$0xff] %v1541
      %2754 = vst [vmem:[%s236 + $0x688] sm:$0xff] %v1606
      %2755 = vst [vmem:[%s236 + $0x690] sm:$0xff] %v1671
      %2756 = vst [vmem:[%s236 + $0x698] sm:$0xff] %v1736
      %2757 = vst [vmem:[%s236 + $0x6a0] sm:$0xff] %v1801
      %2758 = vst [vmem:[%s236 + $0x6a8] sm:$0xff] %v1866
      %2759 = vst [vmem:[%s236 + $0x6b0] sm:$0xff] %v1931
      %2760 = vst [vmem:[%s236 + $0x6b8] sm:$0xff] %v1996
      %2761 = vst [vmem:[%s236 + $0x6c0] sm:$0xff] %v2061
      %2762 = vst [vmem:[%s236 + $0x6c8] sm:$0xff] %v2126
      %2763 = vst [vmem:[%s236 + $0x6d0] sm:$0xff] %v2191
      %2764 = vst [vmem:[%s236 + $0x6d8] sm:$0xff] %v2256
      %2765 = vst [vmem:[%s236 + $0x6e0] sm:$0xff] %v2321
      %2766 = vst [vmem:[%s236 + $0x6e8] sm:$0xff] %v2386
      %2767 = vst [vmem:[%s236 + $0x6f0] sm:$0xff] %v2451
      %2768 = vst [vmem:[%s236 + $0x6f8] sm:$0xff] %v2516
      %2769 = vst [vmem:[%s236 + $0x700] sm:$0xff] %v504
      %2770 = vst [vmem:[%s236 + $0x708] sm:$0xff] %v569
      %2771 = vst [vmem:[%s236 + $0x710] sm:$0xff] %v634
      %2772 = vst [vmem:[%s236 + $0x718] sm:$0xff] %v699
      %2773 = vst [vmem:[%s236 + $0x720] sm:$0xff] %v764
      %2774 = vst [vmem:[%s236 + $0x728] sm:$0xff] %v829
      %2775 = vst [vmem:[%s236 + $0x730] sm:$0xff] %v894
      %2776 = vst [vmem:[%s236 + $0x738] sm:$0xff] %v959
      %2777 = vst [vmem:[%s236 + $0x740] sm:$0xff] %v1024
      %2778 = vst [vmem:[%s236 + $0x748] sm:$0xff] %v1089
      %2779 = vst [vmem:[%s236 + $0x750] sm:$0xff] %v1154
      %2780 = vst [vmem:[%s236 + $0x758] sm:$0xff] %v1219
      %2781 = vst [vmem:[%s236 + $0x760] sm:$0xff] %v1284
      %2782 = vst [vmem:[%s236 + $0x768] sm:$0xff] %v1349
      %2783 = vst [vmem:[%s236 + $0x770] sm:$0xff] %v1414
      %2784 = vst [vmem:[%s236 + $0x778] sm:$0xff] %v1479
      %2785 = vst [vmem:[%s236 + $0x780] sm:$0xff] %v1544
      %2786 = vst [vmem:[%s236 + $0x788] sm:$0xff] %v1609
      %2787 = vst [vmem:[%s236 + $0x790] sm:$0xff] %v1674
      %2788 = vst [vmem:[%s236 + $0x798] sm:$0xff] %v1739
      %2789 = vst [vmem:[%s236 + $0x7a0] sm:$0xff] %v1804
      %2790 = vst [vmem:[%s236 + $0x7a8] sm:$0xff] %v1869
      %2791 = vst [vmem:[%s236 + $0x7b0] sm:$0xff] %v1934
      %2792 = vst [vmem:[%s236 + $0x7b8] sm:$0xff] %v1999
      %2793 = vst [vmem:[%s236 + $0x7c0] sm:$0xff] %v2064
      %2794 = vst [vmem:[%s236 + $0x7c8] sm:$0xff] %v2129
      %2795 = vst [vmem:[%s236 + $0x7d0] sm:$0xff] %v2194
      %2796 = vst [vmem:[%s236 + $0x7d8] sm:$0xff] %v2259
      %2797 = vst [vmem:[%s236 + $0x7e0] sm:$0xff] %v2324
      %2798 = vst [vmem:[%s236 + $0x7e8] sm:$0xff] %v2389
      %2799 = vst [vmem:[%s236 + $0x7f0] sm:$0xff] %v2454
      %2800 = vst [vmem:[%s236 + $0x7f8] sm:$0xff] %v2519
      %2801 = vst [vmem:[%s236 + $0x800] sm:$0xff] %v507
      %2802 = vst [vmem:[%s236 + $0x808] sm:$0xff] %v572
      %2803 = vst [vmem:[%s236 + $0x810] sm:$0xff] %v637
      %2804 = vst [vmem:[%s236 + $0x818] sm:$0xff] %v702
      %2805 = vst [vmem:[%s236 + $0x820] sm:$0xff] %v767
      %2806 = vst [vmem:[%s236 + $0x828] sm:$0xff] %v832
      %2807 = vst [vmem:[%s236 + $0x830] sm:$0xff] %v897
      %2808 = vst [vmem:[%s236 + $0x838] sm:$0xff] %v962
      %2809 = vst [vmem:[%s236 + $0x840] sm:$0xff] %v1027
      %2810 = vst [vmem:[%s236 + $0x848] sm:$0xff] %v1092
      %2811 = vst [vmem:[%s236 + $0x850] sm:$0xff] %v1157
      %2812 = vst [vmem:[%s236 + $0x858] sm:$0xff] %v1222
      %2813 = vst [vmem:[%s236 + $0x860] sm:$0xff] %v1287
      %2814 = vst [vmem:[%s236 + $0x868] sm:$0xff] %v1352
      %2815 = vst [vmem:[%s236 + $0x870] sm:$0xff] %v1417
      %2816 = vst [vmem:[%s236 + $0x878] sm:$0xff] %v1482
      %2817 = vst [vmem:[%s236 + $0x880] sm:$0xff] %v1547
      %2818 = vst [vmem:[%s236 + $0x888] sm:$0xff] %v1612
      %2819 = vst [vmem:[%s236 + $0x890] sm:$0xff] %v1677
      %2820 = vst [vmem:[%s236 + $0x898] sm:$0xff] %v1742
      %2821 = vst [vmem:[%s236 + $0x8a0] sm:$0xff] %v1807
      %2822 = vst [vmem:[%s236 + $0x8a8] sm:$0xff] %v1872
      %2823 = vst [vmem:[%s236 + $0x8b0] sm:$0xff] %v1937
      %2824 = vst [vmem:[%s236 + $0x8b8] sm:$0xff] %v2002
      %2825 = vst [vmem:[%s236 + $0x8c0] sm:$0xff] %v2067
      %2826 = vst [vmem:[%s236 + $0x8c8] sm:$0xff] %v2132
      %2827 = vst [vmem:[%s236 + $0x8d0] sm:$0xff] %v2197
      %2828 = vst [vmem:[%s236 + $0x8d8] sm:$0xff] %v2262
      %2829 = vst [vmem:[%s236 + $0x8e0] sm:$0xff] %v2327
      %2830 = vst [vmem:[%s236 + $0x8e8] sm:$0xff] %v2392
      %2831 = vst [vmem:[%s236 + $0x8f0] sm:$0xff] %v2457
      %2832 = vst [vmem:[%s236 + $0x8f8] sm:$0xff] %v2522
      %2833 = vst [vmem:[%s236 + $0x900] sm:$0xff] %v510
      %2834 = vst [vmem:[%s236 + $0x908] sm:$0xff] %v575
      %2835 = vst [vmem:[%s236 + $0x910] sm:$0xff] %v640
      %2836 = vst [vmem:[%s236 + $0x918] sm:$0xff] %v705
      %2837 = vst [vmem:[%s236 + $0x920] sm:$0xff] %v770
      %2838 = vst [vmem:[%s236 + $0x928] sm:$0xff] %v835
      %2839 = vst [vmem:[%s236 + $0x930] sm:$0xff] %v900
      %2840 = vst [vmem:[%s236 + $0x938] sm:$0xff] %v965
      %2841 = vst [vmem:[%s236 + $0x940] sm:$0xff] %v1030
      %2842 = vst [vmem:[%s236 + $0x948] sm:$0xff] %v1095
      %2843 = vst [vmem:[%s236 + $0x950] sm:$0xff] %v1160
      %2844 = vst [vmem:[%s236 + $0x958] sm:$0xff] %v1225
      %2845 = vst [vmem:[%s236 + $0x960] sm:$0xff] %v1290
      %2846 = vst [vmem:[%s236 + $0x968] sm:$0xff] %v1355
      %2847 = vst [vmem:[%s236 + $0x970] sm:$0xff] %v1420
      %2848 = vst [vmem:[%s236 + $0x978] sm:$0xff] %v1485
      %2849 = vst [vmem:[%s236 + $0x980] sm:$0xff] %v1550
      %2850 = vst [vmem:[%s236 + $0x988] sm:$0xff] %v1615
      %2851 = vst [vmem:[%s236 + $0x990] sm:$0xff] %v1680
      %2852 = vst [vmem:[%s236 + $0x998] sm:$0xff] %v1745
      %2853 = vst [vmem:[%s236 + $0x9a0] sm:$0xff] %v1810
      %2854 = vst [vmem:[%s236 + $0x9a8] sm:$0xff] %v1875
      %2855 = vst [vmem:[%s236 + $0x9b0] sm:$0xff] %v1940
      %2856 = vst [vmem:[%s236 + $0x9b8] sm:$0xff] %v2005
      %2857 = vst [vmem:[%s236 + $0x9c0] sm:$0xff] %v2070
      %2858 = vst [vmem:[%s236 + $0x9c8] sm:$0xff] %v2135
      %2859 = vst [vmem:[%s236 + $0x9d0] sm:$0xff] %v2200
      %2860 = vst [vmem:[%s236 + $0x9d8] sm:$0xff] %v2265
      %2861 = vst [vmem:[%s236 + $0x9e0] sm:$0xff] %v2330
      %2862 = vst [vmem:[%s236 + $0x9e8] sm:$0xff] %v2395
      %2863 = vst [vmem:[%s236 + $0x9f0] sm:$0xff] %v2460
      %2864 = vst [vmem:[%s236 + $0x9f8] sm:$0xff] %v2525
      %2865 = vst [vmem:[%s236 + $0xa00] sm:$0xff] %v513
      %2866 = vst [vmem:[%s236 + $0xa08] sm:$0xff] %v578
      %2867 = vst [vmem:[%s236 + $0xa10] sm:$0xff] %v643
      %2868 = vst [vmem:[%s236 + $0xa18] sm:$0xff] %v708
      %2869 = vst [vmem:[%s236 + $0xa20] sm:$0xff] %v773
      %2870 = vst [vmem:[%s236 + $0xa28] sm:$0xff] %v838
      %2871 = vst [vmem:[%s236 + $0xa30] sm:$0xff] %v903
      %2872 = vst [vmem:[%s236 + $0xa38] sm:$0xff] %v968
      %2873 = vst [vmem:[%s236 + $0xa40] sm:$0xff] %v1033
      %2874 = vst [vmem:[%s236 + $0xa48] sm:$0xff] %v1098
      %2875 = vst [vmem:[%s236 + $0xa50] sm:$0xff] %v1163
      %2876 = vst [vmem:[%s236 + $0xa58] sm:$0xff] %v1228
      %2877 = vst [vmem:[%s236 + $0xa60] sm:$0xff] %v1293
      %2878 = vst [vmem:[%s236 + $0xa68] sm:$0xff] %v1358
      %2879 = vst [vmem:[%s236 + $0xa70] sm:$0xff] %v1423
      %2880 = vst [vmem:[%s236 + $0xa78] sm:$0xff] %v1488
      %2881 = vst [vmem:[%s236 + $0xa80] sm:$0xff] %v1553
      %2882 = vst [vmem:[%s236 + $0xa88] sm:$0xff] %v1618
      %2883 = vst [vmem:[%s236 + $0xa90] sm:$0xff] %v1683
      %2884 = vst [vmem:[%s236 + $0xa98] sm:$0xff] %v1748
      %2885 = vst [vmem:[%s236 + $0xaa0] sm:$0xff] %v1813
      %2886 = vst [vmem:[%s236 + $0xaa8] sm:$0xff] %v1878
      %2887 = vst [vmem:[%s236 + $0xab0] sm:$0xff] %v1943
      %2888 = vst [vmem:[%s236 + $0xab8] sm:$0xff] %v2008
      %2889 = vst [vmem:[%s236 + $0xac0] sm:$0xff] %v2073
      %2890 = vst [vmem:[%s236 + $0xac8] sm:$0xff] %v2138
      %2891 = vst [vmem:[%s236 + $0xad0] sm:$0xff] %v2203
      %2892 = vst [vmem:[%s236 + $0xad8] sm:$0xff] %v2268
      %2893 = vst [vmem:[%s236 + $0xae0] sm:$0xff] %v2333
      %2894 = vst [vmem:[%s236 + $0xae8] sm:$0xff] %v2398
      %2895 = vst [vmem:[%s236 + $0xaf0] sm:$0xff] %v2463
      %2896 = vst [vmem:[%s236 + $0xaf8] sm:$0xff] %v2528
      %2897 = vst [vmem:[%s236 + $0xb00] sm:$0xff] %v516
      %2898 = vst [vmem:[%s236 + $0xb08] sm:$0xff] %v581
      %2899 = vst [vmem:[%s236 + $0xb10] sm:$0xff] %v646
      %2900 = vst [vmem:[%s236 + $0xb18] sm:$0xff] %v711
      %2901 = vst [vmem:[%s236 + $0xb20] sm:$0xff] %v776
      %2902 = vst [vmem:[%s236 + $0xb28] sm:$0xff] %v841
      %2903 = vst [vmem:[%s236 + $0xb30] sm:$0xff] %v906
      %2904 = vst [vmem:[%s236 + $0xb38] sm:$0xff] %v971
      %2905 = vst [vmem:[%s236 + $0xb40] sm:$0xff] %v1036
      %2906 = vst [vmem:[%s236 + $0xb48] sm:$0xff] %v1101
      %2907 = vst [vmem:[%s236 + $0xb50] sm:$0xff] %v1166
      %2908 = vst [vmem:[%s236 + $0xb58] sm:$0xff] %v1231
      %2909 = vst [vmem:[%s236 + $0xb60] sm:$0xff] %v1296
      %2910 = vst [vmem:[%s236 + $0xb68] sm:$0xff] %v1361
      %2911 = vst [vmem:[%s236 + $0xb70] sm:$0xff] %v1426
      %2912 = vst [vmem:[%s236 + $0xb78] sm:$0xff] %v1491
      %2913 = vst [vmem:[%s236 + $0xb80] sm:$0xff] %v1556
      %2914 = vst [vmem:[%s236 + $0xb88] sm:$0xff] %v1621
      %2915 = vst [vmem:[%s236 + $0xb90] sm:$0xff] %v1686
      %2916 = vst [vmem:[%s236 + $0xb98] sm:$0xff] %v1751
      %2917 = vst [vmem:[%s236 + $0xba0] sm:$0xff] %v1816
      %2918 = vst [vmem:[%s236 + $0xba8] sm:$0xff] %v1881
      %2919 = vst [vmem:[%s236 + $0xbb0] sm:$0xff] %v1946
      %2920 = vst [vmem:[%s236 + $0xbb8] sm:$0xff] %v2011
      %2921 = vst [vmem:[%s236 + $0xbc0] sm:$0xff] %v2076
      %2922 = vst [vmem:[%s236 + $0xbc8] sm:$0xff] %v2141
      %2923 = vst [vmem:[%s236 + $0xbd0] sm:$0xff] %v2206
      %2924 = vst [vmem:[%s236 + $0xbd8] sm:$0xff] %v2271
      %2925 = vst [vmem:[%s236 + $0xbe0] sm:$0xff] %v2336
      %2926 = vst [vmem:[%s236 + $0xbe8] sm:$0xff] %v2401
      %2927 = vst [vmem:[%s236 + $0xbf0] sm:$0xff] %v2466
      %2928 = vst [vmem:[%s236 + $0xbf8] sm:$0xff] %v2531
      %2929 = vst [vmem:[%s236 + $0xc00] sm:$0xff] %v519
      %2930 = vst [vmem:[%s236 + $0xc08] sm:$0xff] %v584
      %2931 = vst [vmem:[%s236 + $0xc10] sm:$0xff] %v649
      %2932 = vst [vmem:[%s236 + $0xc18] sm:$0xff] %v714
      %2933 = vst [vmem:[%s236 + $0xc20] sm:$0xff] %v779
      %2934 = vst [vmem:[%s236 + $0xc28] sm:$0xff] %v844
      %2935 = vst [vmem:[%s236 + $0xc30] sm:$0xff] %v909
      %2936 = vst [vmem:[%s236 + $0xc38] sm:$0xff] %v974
      %2937 = vst [vmem:[%s236 + $0xc40] sm:$0xff] %v1039
      %2938 = vst [vmem:[%s236 + $0xc48] sm:$0xff] %v1104
      %2939 = vst [vmem:[%s236 + $0xc50] sm:$0xff] %v1169
      %2940 = vst [vmem:[%s236 + $0xc58] sm:$0xff] %v1234
      %2941 = vst [vmem:[%s236 + $0xc60] sm:$0xff] %v1299
      %2942 = vst [vmem:[%s236 + $0xc68] sm:$0xff] %v1364
      %2943 = vst [vmem:[%s236 + $0xc70] sm:$0xff] %v1429
      %2944 = vst [vmem:[%s236 + $0xc78] sm:$0xff] %v1494
      %2945 = vst [vmem:[%s236 + $0xc80] sm:$0xff] %v1559
      %2946 = vst [vmem:[%s236 + $0xc88] sm:$0xff] %v1624
      %2947 = vst [vmem:[%s236 + $0xc90] sm:$0xff] %v1689
      %2948 = vst [vmem:[%s236 + $0xc98] sm:$0xff] %v1754
      %2949 = vst [vmem:[%s236 + $0xca0] sm:$0xff] %v1819
      %2950 = vst [vmem:[%s236 + $0xca8] sm:$0xff] %v1884
      %2951 = vst [vmem:[%s236 + $0xcb0] sm:$0xff] %v1949
      %2952 = vst [vmem:[%s236 + $0xcb8] sm:$0xff] %v2014
      %2953 = vst [vmem:[%s236 + $0xcc0] sm:$0xff] %v2079
      %2954 = vst [vmem:[%s236 + $0xcc8] sm:$0xff] %v2144
      %2955 = vst [vmem:[%s236 + $0xcd0] sm:$0xff] %v2209
      %2956 = vst [vmem:[%s236 + $0xcd8] sm:$0xff] %v2274
      %2957 = vst [vmem:[%s236 + $0xce0] sm:$0xff] %v2339
      %2958 = vst [vmem:[%s236 + $0xce8] sm:$0xff] %v2404
      %2959 = vst [vmem:[%s236 + $0xcf0] sm:$0xff] %v2469
      %2960 = vst [vmem:[%s236 + $0xcf8] sm:$0xff] %v2534
      %2961 = vst [vmem:[%s236 + $0xd00] sm:$0xff] %v522
      %2962 = vst [vmem:[%s236 + $0xd08] sm:$0xff] %v587
      %2963 = vst [vmem:[%s236 + $0xd10] sm:$0xff] %v652
      %2964 = vst [vmem:[%s236 + $0xd18] sm:$0xff] %v717
      %2965 = vst [vmem:[%s236 + $0xd20] sm:$0xff] %v782
      %2966 = vst [vmem:[%s236 + $0xd28] sm:$0xff] %v847
      %2967 = vst [vmem:[%s236 + $0xd30] sm:$0xff] %v912
      %2968 = vst [vmem:[%s236 + $0xd38] sm:$0xff] %v977
      %2969 = vst [vmem:[%s236 + $0xd40] sm:$0xff] %v1042
      %2970 = vst [vmem:[%s236 + $0xd48] sm:$0xff] %v1107
      %2971 = vst [vmem:[%s236 + $0xd50] sm:$0xff] %v1172
      %2972 = vst [vmem:[%s236 + $0xd58] sm:$0xff] %v1237
      %2973 = vst [vmem:[%s236 + $0xd60] sm:$0xff] %v1302
      %2974 = vst [vmem:[%s236 + $0xd68] sm:$0xff] %v1367
      %2975 = vst [vmem:[%s236 + $0xd70] sm:$0xff] %v1432
      %2976 = vst [vmem:[%s236 + $0xd78] sm:$0xff] %v1497
      %2977 = vst [vmem:[%s236 + $0xd80] sm:$0xff] %v1562
      %2978 = vst [vmem:[%s236 + $0xd88] sm:$0xff] %v1627
      %2979 = vst [vmem:[%s236 + $0xd90] sm:$0xff] %v1692
      %2980 = vst [vmem:[%s236 + $0xd98] sm:$0xff] %v1757
      %2981 = vst [vmem:[%s236 + $0xda0] sm:$0xff] %v1822
      %2982 = vst [vmem:[%s236 + $0xda8] sm:$0xff] %v1887
      %2983 = vst [vmem:[%s236 + $0xdb0] sm:$0xff] %v1952
      %2984 = vst [vmem:[%s236 + $0xdb8] sm:$0xff] %v2017
      %2985 = vst [vmem:[%s236 + $0xdc0] sm:$0xff] %v2082
      %2986 = vst [vmem:[%s236 + $0xdc8] sm:$0xff] %v2147
      %2987 = vst [vmem:[%s236 + $0xdd0] sm:$0xff] %v2212
      %2988 = vst [vmem:[%s236 + $0xdd8] sm:$0xff] %v2277
      %2989 = vst [vmem:[%s236 + $0xde0] sm:$0xff] %v2342
      %2990 = vst [vmem:[%s236 + $0xde8] sm:$0xff] %v2407
      %2991 = vst [vmem:[%s236 + $0xdf0] sm:$0xff] %v2472
      %2992 = vst [vmem:[%s236 + $0xdf8] sm:$0xff] %v2537
      %2993 = vst [vmem:[%s236 + $0xe00] sm:$0xff] %v525
      %2994 = vst [vmem:[%s236 + $0xe08] sm:$0xff] %v590
      %2995 = vst [vmem:[%s236 + $0xe10] sm:$0xff] %v655
      %2996 = vst [vmem:[%s236 + $0xe18] sm:$0xff] %v720
      %2997 = vst [vmem:[%s236 + $0xe20] sm:$0xff] %v785
      %2998 = vst [vmem:[%s236 + $0xe28] sm:$0xff] %v850
      %2999 = vst [vmem:[%s236 + $0xe30] sm:$0xff] %v915
      %3000 = vst [vmem:[%s236 + $0xe38] sm:$0xff] %v980
      %3001 = vst [vmem:[%s236 + $0xe40] sm:$0xff] %v1045
      %3002 = vst [vmem:[%s236 + $0xe48] sm:$0xff] %v1110
      %3003 = vst [vmem:[%s236 + $0xe50] sm:$0xff] %v1175
      %3004 = vst [vmem:[%s236 + $0xe58] sm:$0xff] %v1240
      %3005 = vst [vmem:[%s236 + $0xe60] sm:$0xff] %v1305
      %3006 = vst [vmem:[%s236 + $0xe68] sm:$0xff] %v1370
      %3007 = vst [vmem:[%s236 + $0xe70] sm:$0xff] %v1435
      %3008 = vst [vmem:[%s236 + $0xe78] sm:$0xff] %v1500
      %3009 = vst [vmem:[%s236 + $0xe80] sm:$0xff] %v1565
      %3010 = vst [vmem:[%s236 + $0xe88] sm:$0xff] %v1630
      %3011 = vst [vmem:[%s236 + $0xe90] sm:$0xff] %v1695
      %3012 = vst [vmem:[%s236 + $0xe98] sm:$0xff] %v1760
      %3013 = vst [vmem:[%s236 + $0xea0] sm:$0xff] %v1825
      %3014 = vst [vmem:[%s236 + $0xea8] sm:$0xff] %v1890
      %3015 = vst [vmem:[%s236 + $0xeb0] sm:$0xff] %v1955
      %3016 = vst [vmem:[%s236 + $0xeb8] sm:$0xff] %v2020
      %3017 = vst [vmem:[%s236 + $0xec0] sm:$0xff] %v2085
      %3018 = vst [vmem:[%s236 + $0xec8] sm:$0xff] %v2150
      %3019 = vst [vmem:[%s236 + $0xed0] sm:$0xff] %v2215
      %3020 = vst [vmem:[%s236 + $0xed8] sm:$0xff] %v2280
      %3021 = vst [vmem:[%s236 + $0xee0] sm:$0xff] %v2345
      %3022 = vst [vmem:[%s236 + $0xee8] sm:$0xff] %v2410
      %3023 = vst [vmem:[%s236 + $0xef0] sm:$0xff] %v2475
      %3024 = vst [vmem:[%s236 + $0xef8] sm:$0xff] %v2540
      %3025 = vst [vmem:[%s236 + $0xf00] sm:$0xff] %v528
      %3026 = vst [vmem:[%s236 + $0xf08] sm:$0xff] %v593
      %3027 = vst [vmem:[%s236 + $0xf10] sm:$0xff] %v658
      %3028 = vst [vmem:[%s236 + $0xf18] sm:$0xff] %v723
      %3029 = vst [vmem:[%s236 + $0xf20] sm:$0xff] %v788
      %3030 = vst [vmem:[%s236 + $0xf28] sm:$0xff] %v853
      %3031 = vst [vmem:[%s236 + $0xf30] sm:$0xff] %v918
      %3032 = vst [vmem:[%s236 + $0xf38] sm:$0xff] %v983
      %3033 = vst [vmem:[%s236 + $0xf40] sm:$0xff] %v1048
      %3034 = vst [vmem:[%s236 + $0xf48] sm:$0xff] %v1113
      %3035 = vst [vmem:[%s236 + $0xf50] sm:$0xff] %v1178
      %3036 = vst [vmem:[%s236 + $0xf58] sm:$0xff] %v1243
      %3037 = vst [vmem:[%s236 + $0xf60] sm:$0xff] %v1308
      %3038 = vst [vmem:[%s236 + $0xf68] sm:$0xff] %v1373
      %3039 = vst [vmem:[%s236 + $0xf70] sm:$0xff] %v1438
      %3040 = vst [vmem:[%s236 + $0xf78] sm:$0xff] %v1503
      %3041 = vst [vmem:[%s236 + $0xf80] sm:$0xff] %v1568
      %3042 = vst [vmem:[%s236 + $0xf88] sm:$0xff] %v1633
      %3043 = vst [vmem:[%s236 + $0xf90] sm:$0xff] %v1698
      %3044 = vst [vmem:[%s236 + $0xf98] sm:$0xff] %v1763
      %3045 = vst [vmem:[%s236 + $0xfa0] sm:$0xff] %v1828
      %3046 = vst [vmem:[%s236 + $0xfa8] sm:$0xff] %v1893
      %3047 = vst [vmem:[%s236 + $0xfb0] sm:$0xff] %v1958
      %3048 = vst [vmem:[%s236 + $0xfb8] sm:$0xff] %v2023
      %3049 = vst [vmem:[%s236 + $0xfc0] sm:$0xff] %v2088
      %3050 = vst [vmem:[%s236 + $0xfc8] sm:$0xff] %v2153
      %3051 = vst [vmem:[%s236 + $0xfd0] sm:$0xff] %v2218
      %3052 = vst [vmem:[%s236 + $0xfd8] sm:$0xff] %v2283
      %3053 = vst [vmem:[%s236 + $0xfe0] sm:$0xff] %v2348
      %3054 = vst [vmem:[%s236 + $0xfe8] sm:$0xff] %v2413
      %3055 = vst [vmem:[%s236 + $0xff0] sm:$0xff] %v2478
      %3056 = vst [vmem:[%s236 + $0xff8] sm:$0xff] %v2543
      %s3057 = smul.u32 16, %s20
      %s3058 = smul.u32 32, %s19
      %p3059 = scmp.lt.s32.totalorder %s18, 1
      %s3060 = scalar_select %p3059, %s18, 1
      %p3061 = scmp.lt.s32.totalorder %s3057, 15
      %s3062 = scalar_select %p3061, %s3057, 15
      %p3063 = scmp.lt.s32.totalorder %s3058, 31
      %s3064 = scalar_select %p3063, %s3058, 31
      %s3065 = smul.addr %s3062, 32
      %s3066 = sadd.s32 %s3064, %s3065
      %s3067 = smul.addr %s3060, 512
      %s3068 = sadd.s32 %s3066, %s3067
      %s3069 = smul.addr %s3068, 8
      %s3070 = scalar_lea.vmem %s2, %s3069
      // Predicated region
      $region29: #{atom_pair_projection.3} parent=27 // pred_check
        %p3071 = pneg %p110
      $region30: #{atom_pair_projection.3} parent=27 // pred_check_branch
        %3073 = sbr.rel (%p3071) target = $region32
      $region31: #{atom_pair_projection.3} parent=27 // pred_region
        %s3074 = smul.u32 16, %s20
        %s3075 = smul.u32 32, %s19
      $region32: #{atom_pair_projection.3} parent=27 // pred_fallthru
        _
    $region28: #{atom_pair_projection.3} parent=5 // pred_fallthru
      _
    %p3076 = scmp.le.s32.totalorder 2, %s8
    // Predicated region
    $region33: #{atom_pair_projection.3} parent=5 // pred_check
      %p3077 = pneg %p3076
    $region34: #{atom_pair_projection.3} parent=5 // pred_check_branch
      %3079 = sbr.rel (%p3077) target = $region36
    $region35: #{atom_pair_projection.3} parent=5 // pred_region
      %s3080 = ssub.s32 %s8, 2
      // Predicated region
      $region37: #{atom_pair_projection.3} parent=35 // pred_check
        %p3081 = pneg %p116
      $region38: #{atom_pair_projection.3} parent=35 // pred_check_branch
        %3083 = sbr.rel (%p3081) target = $region40
      $region39: #{atom_pair_projection.3} parent=35 // pred_region
        %s3084 = smul.u32 16, %s23
        %s3085 = smul.u32 32, %s22
        %p3086 = scmp.lt.s32.totalorder %s21, 1
        %s3087 = scalar_select %p3086, %s21, 1
        %p3088 = scmp.lt.s32.totalorder %s3084, 15
        %s3089 = scalar_select %p3088, %s3084, 15
        %p3090 = scmp.lt.s32.totalorder %s3085, 31
        %s3091 = scalar_select %p3090, %s3085, 31
        %s3092 = smul.addr %s3089, 32
        %s3093 = sadd.s32 %s3091, %s3092
        %s3094 = smul.addr %s3087, 512
        %s3095 = sadd.s32 %s3093, %s3094
        %s3096 = smul.addr %s3095, 8
        %s3097 = scalar_lea.vmem %s2, %s3096
      $region40: #{atom_pair_projection.3} parent=35 // pred_fallthru
        _
    $region36: #{atom_pair_projection.3} parent=5 // pred_fallthru
      _
  $region6: #{atom_pair_projection.3} parent=0 // loop_footer
    %s12 = sadd.s32 1, %s8
  $region7: #{atom_pair_projection.3} parent=0 // loop_footer_branch
    %7 = sbr.rel target = $region3
  $region8: #{atom_pair_projection.3} parent=0 // loop_exit
    _

</llo_original>
